<compile_context>
chip_gen: v6e
topology: v6e:2x2x1
jax: 0.10.0
libtpu: 0.0.40
codegen_flags: <defaults>
</compile_context>

<pallas_src>
import jax
import jax.numpy as jnp
from jax import lax
from jax.experimental import pallas as pl
from jax.experimental.pallas import tpu as pltpu

_SEQ_CHUNK = 128  # VPU reduction chunk along S (keeps per-iteration live ranges small)


def _clf_head_kernel(h_ref, m_ref, w_ref, b_ref, out_ref, acc_ref):
    """One (B-tile, S-tile) grid step.

    h_ref  : (TB, TS, H)  activations (bf16/f32), streamed & double-buffered.
    m_ref  : (TB, TS, 1)  mask in h's dtype (1.0 where input_id != 1).
    w_ref  : (H, C)       classifier weight, pre-transposed (contract H).
    b_ref  : (1, C)       classifier bias.
    out_ref: (TB, C)      log-probs, written only on the last S step.
    acc_ref: (TB, H) f32  VMEM accumulator for the masked sum over S.
    """
    s_idx = pl.program_id(1)

    @pl.when(s_idx == 0)
    def _init():
        acc_ref[...] = jnp.zeros_like(acc_ref)

    tb, ts, hdim = h_ref.shape

    # ---- masked sum over this S tile, on the VPU ---------------------------
    # Chunked multiply (in the streaming dtype; bf16 is native on v6e/v7x, the
    # compiler inserts converts on v5e where there is ample DMA slack) and a
    # sublane add-reduce with f32 accumulation.  The chunk loop is a runtime
    # scf.for (not fully unrolled): each iteration is several hundred cycles of
    # VALU work so loop overhead is negligible, and the non-unrolled loop keeps
    # code size and vreg live ranges bounded (only the (TB, H) f32 carry is
    # loop-carried).  No (TB, TS, H) broadcast temporary is ever materialized.
    zero = jnp.zeros((tb, hdim), jnp.float32)
    if ts % _SEQ_CHUNK == 0 and ts > _SEQ_CHUNK:
        n_chunks = ts // _SEQ_CHUNK

        def chunk_body(c, carry):
            off = pl.multiple_of(c * _SEQ_CHUNK, _SEQ_CHUNK)
            hc = h_ref[:, pl.ds(off, _SEQ_CHUNK), :]      # (TB, 128, H)
            mc = m_ref[:, pl.ds(off, _SEQ_CHUNK), :]      # (TB, 128, 1)
            prod = hc * mc                                 # VPU, streaming dtype
            return carry + jnp.sum(prod.astype(jnp.float32), axis=1)

        partial = lax.fori_loop(0, n_chunks, chunk_body, zero)
    else:
        # Small / odd sequence tile: single chunk over the whole tile.
        prod = h_ref[...] * m_ref[...]
        partial = jnp.sum(prod.astype(jnp.float32), axis=1)

    # One dense full-tile accumulate per grid step (no per-row partial stores).
    acc_ref[...] += partial

    @pl.when(s_idx == pl.num_programs(1) - 1)
    def _finalize():
        pooled = acc_ref[...]                              # (TB, H) f32
        # F.normalize(p=2, dim=1) is scale invariant, so the divide by the
        # token count (the "mean" in mean-pool) is mathematically redundant.
        # TODO(synk): a row that is entirely padding becomes a zero vector here
        # (logits collapse to the bias) instead of the NaNs PyTorch's 0/0
        # mean-pool would produce.
        sumsq = jnp.sum(pooled * pooled, axis=-1, keepdims=True)   # (TB, 1)
        x = pooled * lax.rsqrt(jnp.maximum(sumsq, 1e-24))          # (TB, H)
        # Linear(768 -> 6): x @ W_T + b, weight already (H, C).
        logits = jnp.dot(x, w_ref[...],
                         preferred_element_type=jnp.float32) + b_ref[...]
        # log_softmax over the class axis.
        mx = jnp.max(logits, axis=-1, keepdims=True)
        shifted = logits - mx
        lse = jnp.log(jnp.sum(jnp.exp(shifted), axis=-1, keepdims=True))
        out_ref[...] = shifted - lse


def _vmem_capacity_bytes():
    try:
        info = pltpu.get_tpu_info()
        cap = int(getattr(info, "vmem_capacity_bytes", 0) or 0)
        if cap > 0:
            return cap
    except Exception:
        pass
    return 64 << 20  # conservative (v7x-sized) fallback


def _pick_seq_tile(S, ts_cap):
    """Largest sequence tile <= ts_cap that divides S (prefer multiples of 128)."""
    if S <= ts_cap:
        return S
    for t in range((ts_cap // 128) * 128, 0, -128):
        if S % t == 0:
            return t
    for t in range((ts_cap // 8) * 8, 0, -8):
        if S % t == 0:
            return t
    return S


def clf_head_pallas(last_hidden, mask, lin_w, lin_b, *, max_seq_tile=None):
    """last_hidden: (B,S,H) bf16/f32; mask: (B,S) bool/num; lin_w: (C,H); lin_b: (C,)."""
    B, S, H = last_hidden.shape
    C = lin_w.shape[0]
    dt = last_hidden.dtype
    itemsize = jnp.dtype(dt).itemsize

    # Mask shaped (B, S, 1) in the activation dtype: the kernel's broadcast
    # multiply against (TB, chunk, H) then needs no in-kernel lane<->sublane
    # relayout (the size-1 minor dim is the canonical broadcast layout).
    # TODO(synk): the size-1 minor dim lane-pads in HBM/VMEM (~H/6 extra bytes
    # vs. the activations); a lane-dense (B,S) mask with an in-kernel relayout
    # (or an int8 mask) would shave that once verified to lower cleanly.
    mask3 = mask.astype(dt).reshape(B, S, 1)
    w_t = lin_w.astype(jnp.float32).T            # (H, C): contract H directly
    bias2 = lin_b.astype(jnp.float32).reshape(1, C)

    # Tile sizes.  TB=8 batch rows per tile (f32 sublane height); for B >= 16
    # this leaves the "parallel" B axis with >= 2 tiles so both v7x TensorCores
    # get work.  The sequence tile is sized so the double-buffered activation +
    # mask blocks use about half of the chip's VMEM (TS ~ 1024 on 64-MiB v7x,
    # ~ 2048 on 128-MiB v5e/v6e for bf16), amortizing per-step overhead and
    # keeping DMAs long.
    TB = 8 if B % 8 == 0 else B
    vmem_cap = _vmem_capacity_bytes()
    ts_cap = max(8, vmem_cap // (4 * TB * (H + 128) * itemsize))
    if max_seq_tile is not None:
        ts_cap = min(ts_cap, max_seq_tile)
    TS = _pick_seq_tile(S, ts_cap)
    grid = (B // TB, S // TS)

    h_blk = TB * TS * H * itemsize               # activation block
    m_blk = TB * TS * 128 * itemsize             # mask block (lane-padded)
    fixed = 2 * (H * 128 * 4) + TB * H * 4 + (256 << 10)   # weight/bias/out/acc
    vmem_limit = int(min(vmem_cap - (4 << 20),
                         2 * (h_blk + m_blk) + fixed + (8 << 20)))

    # NOTE: activation input left at default double-buffering; bump to
    # pipeline_mode=pl.Buffered(3) only if xprof shows exposed DMA.
    return pl.pallas_call(
        _clf_head_kernel,
        out_shape=jax.ShapeDtypeStruct((B, C), jnp.float32),
        grid_spec=pltpu.PrefetchScalarGridSpec(
            num_scalar_prefetch=0,
            grid=grid,
            in_specs=[
                pl.BlockSpec((TB, TS, H), lambda b, s: (b, s, 0)),   # activations
                pl.BlockSpec((TB, TS, 1), lambda b, s: (b, s, 0)),   # mask
                pl.BlockSpec((H, C), lambda b, s: (0, 0)),           # weight (H, C)
                pl.BlockSpec((1, C), lambda b, s: (0, 0)),           # bias
            ],
            out_specs=pl.BlockSpec((TB, C), lambda b, s: (b, 0)),
            scratch_shapes=[pltpu.VMEM((TB, H), jnp.float32)],
        ),
        compiler_params=pltpu.CompilerParams(
            dimension_semantics=("parallel", "arbitrary"),
            vmem_limit_bytes=vmem_limit,
        ),
    )(last_hidden, mask3, w_t, bias2)


# ------------------------- synthetic encoder (plain JAX glue) ----------------
def synthetic_encoder(input_ids, emb_table):
    """Deterministic stand-in for the external transformer encoder.

    Returns (last_hidden_state, pooler_out, hidden_states) mimicking the
    HF-style tuple indexing used by CLFModel (output[0], output[2]).  The bf16
    cast is fused into the encoder's final op, so bf16 is what lands in HBM
    (no separate f32->bf16 conversion pass before the head kernel)."""
    emb = emb_table[input_ids]                                   # (B, S, H) f32
    last_hidden = (jnp.tanh(emb) + 0.1 * emb).astype(jnp.bfloat16)
    hidden_states = (emb, last_hidden)                           # "all hidden states"
    return (last_hidden, None, hidden_states)


def clf_model_forward(input_ids, emb_table, lin_w, lin_b):
    """Full CLFModel.forward: encoder (glue) + Pallas classification head."""
    output = synthetic_encoder(input_ids, emb_table)
    hidden_state = output[2]
    last_hidden = output[0]                      # already bf16 straight from HBM
    mask = input_ids != 1                        # input_ids.ne(1)
    prob = clf_head_pallas(last_hidden, mask, lin_w, lin_b)
    return prob, hidden_state


# ------------------------------- reference -----------------------------------
def clf_head_ref(last_hidden, mask_f32, lin_w, lin_b):
    pooled = (last_hidden * mask_f32[:, :, None]).sum(1) / mask_f32.sum(-1)[:, None]
    norm = jnp.sqrt(jnp.sum(pooled * pooled, axis=1, keepdims=True))
    x = pooled / jnp.maximum(norm, 1e-12)
    logits = x @ lin_w.T + lin_b
    return jax.nn.log_softmax(logits, axis=-1)


if __name__ == "__main__":
    # H=768 and C=6 are fixed by nn.Linear(768, 6).
    B, S, H, C, V = 8, 1024, 768, 6, 50
    key = jax.random.PRNGKey(0)
    k_ids, k_emb, k_w, k_b = jax.random.split(key, 4)

    input_ids = jax.random.randint(k_ids, (B, S), 2, V, dtype=jnp.int32)
    # force some (not all) padding positions; token id 1 == pad
    input_ids = input_ids.at[0, S // 2:].set(1)
    input_ids = input_ids.at[1, 3 * S // 4:].set(1)
    input_ids = input_ids.at[2, 5].set(1)        # a pad token in the middle too

    emb_table = jax.random.normal(k_emb, (V, H), dtype=jnp.float32) * 0.02
    lin_w = jax.random.normal(k_w, (C, H), dtype=jnp.float32) * 0.05  # Linear(768,6).weight
    lin_b = jax.random.normal(k_b, (C,), dtype=jnp.float32) * 0.01    # bias

    # Full forward with capacity-derived (large) tiles.
    prob, hidden_state = clf_model_forward(input_ids, emb_table, lin_w, lin_b)
    prob = jax.block_until_ready(prob)

    # Also exercise the multi-S-step accumulation path with a forced small tile.
    last_hidden = synthetic_encoder(input_ids, emb_table)[0]
    mask_bool = input_ids != 1
    prob_small = jax.block_until_ready(
        clf_head_pallas(last_hidden, mask_bool, lin_w, lin_b, max_seq_tile=256))

    # Pure-JAX reference on the same bf16-rounded activations the kernel sees.
    last_hidden_f32 = last_hidden.astype(jnp.float32)
    mask_f32 = mask_bool.astype(jnp.float32)
    ref = clf_head_ref(last_hidden_f32, mask_f32, lin_w, lin_b)

    assert prob.shape == (B, C)
    assert not jnp.any(jnp.isnan(prob))
    assert jnp.allclose(prob, ref, atol=5e-3, rtol=1e-3), (prob, ref)
    assert jnp.allclose(prob_small, ref, atol=5e-3, rtol=1e-3), (prob_small, ref)

    print("KERNEL_OK")
</pallas_src>

<mosaic_0001>
module attributes {stable_mosaic.version = 11 : i64} {
  func.func @_clf_head_kernel(%arg0: i32, %arg1: i32, %arg2: memref<8x1024x768xbf16, #tpu.memory_space<vmem>>, %arg3: memref<8x1024x1xbf16, #tpu.memory_space<vmem>>, %arg4: memref<768x6xf32, #tpu.memory_space<vmem>>, %arg5: memref<1x6xf32, #tpu.memory_space<vmem>>, %arg6: memref<8x6xf32, #tpu.memory_space<vmem>>, %arg7: memref<8x768xf32, #tpu.memory_space<vmem>>) attributes {dimension_semantics = [#tpu.dimension_semantics<parallel>, #tpu.dimension_semantics<arbitrary>], iteration_bounds = array<i64: 1, 1>, scalar_prefetch = 0 : i64, scratch_operands = 1 : i64, tpu.core_type = #tpu.core_type<tc>, window_params = [{transform_indices = @transform_0, window_bounds = array<i64: 8, 1024, 768>}, {transform_indices = @transform_1, window_bounds = array<i64: 8, 1024, 1>}, {pipeline_mode = #tpu.pipeline_mode<synchronous>, transform_indices = @transform_2, window_bounds = array<i64: 768, 6>}, {pipeline_mode = #tpu.pipeline_mode<synchronous>, transform_indices = @transform_3, window_bounds = array<i64: 1, 6>}, {transform_indices = @transform_4, window_bounds = array<i64: 8, 6>}]} {
    %c0_i32 = arith.constant 0 : i32
    %0 = arith.cmpi eq, %arg1, %c0_i32 : i32
    %1 = arith.extui %0 : i1 to i32
    %c0_i32_0 = arith.constant 0 : i32
    %2 = arith.cmpi ne, %1, %c0_i32_0 : i32
    scf.if %2 {
      %cst_8 = arith.constant 0.000000e+00 : f32
      %12 = vector.broadcast %cst_8 : f32 to vector<8x768xf32>
      %c0_9 = arith.constant 0 : index
      %c0_10 = arith.constant 0 : index
      %13 = vector.load %arg7[%c0_9, %c0_10] : memref<8x768xf32, #tpu.memory_space<vmem>>, vector<8x768xf32>
      tpu.vector_store %arg7[%c0_9, %c0_10], %12 {strides = array<i32>} : memref<8x768xf32, #tpu.memory_space<vmem>>, vector<8x768xf32>,
    } else {
    }
    %cst = arith.constant 0.000000e+00 : f32
    %3 = vector.broadcast %cst : f32 to vector<8x768xf32>
    %c0_i32_1 = arith.constant 0 : i32
    %c8_i32 = arith.constant 8 : i32
    %4 = arith.addi %c0_i32_1, %c8_i32 : i32
    %c1_i32 = arith.constant 1 : i32
    %5 = scf.for %arg8 = %c0_i32_1 to %4 step %c1_i32 iter_args(%arg9 = %3) -> (vector<8x768xf32>)  : i32 {
      %c128_i32 = arith.constant 128 : i32
      %12 = arith.muli %arg8, %c128_i32 : i32
      %13 = tpu.assume_multiple %12, 128 : i32
      %c0_8 = arith.constant 0 : index
      %14 = arith.index_cast %13 : i32 to index
      %c0_9 = arith.constant 0 : index
      %15 = vector.load %arg2[%c0_8, %14, %c0_9] : memref<8x1024x768xbf16, #tpu.memory_space<vmem>>, vector<8x128x768xbf16>
      %c0_10 = arith.constant 0 : index
      %16 = arith.index_cast %13 : i32 to index
      %c0_11 = arith.constant 0 : index
      %17 = vector.load %arg3[%c0_10, %16, %c0_11] : memref<8x1024x1xbf16, #tpu.memory_space<vmem>>, vector<8x128x1xbf16>
      %18 = vector.broadcast %17 : vector<8x128x1xbf16> to vector<8x128x768xbf16>
      %19 = arith.mulf %15, %18 : vector<8x128x768xbf16>
      %20 = arith.extf %19 : vector<8x128x768xbf16> to vector<8x128x768xf32>
      %cst_12 = arith.constant dense<0.000000e+00> : vector<8x768xf32>
      %21 = vector.multi_reduction <add>, %20, %cst_12 [1] : vector<8x128x768xf32> to vector<8x768xf32>
      %22 = arith.addf %arg9, %21 : vector<8x768xf32>
      scf.yield %22 : vector<8x768xf32>
    }
    %c8_i32_2 = arith.constant 8 : i32
    %c0 = arith.constant 0 : index
    %c0_3 = arith.constant 0 : index
    %6 = vector.load %arg7[%c0, %c0_3] : memref<8x768xf32, #tpu.memory_space<vmem>>, vector<8x768xf32>
    %7 = arith.addf %6, %5 : vector<8x768xf32>
    %c0_4 = arith.constant 0 : index
    %c0_5 = arith.constant 0 : index
    %8 = vector.load %arg7[%c0_4, %c0_5] : memref<8x768xf32, #tpu.memory_space<vmem>>, vector<8x768xf32>
    tpu.vector_store %arg7[%c0_4, %c0_5], %7 {strides = array<i32>} : memref<8x768xf32, #tpu.memory_space<vmem>>, vector<8x768xf32>,
    %c0_i32_6 = arith.constant 0 : i32
    %9 = arith.cmpi eq, %arg1, %c0_i32_6 : i32
    %10 = arith.extui %9 : i1 to i32
    %c0_i32_7 = arith.constant 0 : i32
    %11 = arith.cmpi ne, %10, %c0_i32_7 : i32
    scf.if %11 {
      %c0_8 = arith.constant 0 : index
      %c0_9 = arith.constant 0 : index
      %12 = vector.load %arg7[%c0_8, %c0_9] : memref<8x768xf32, #tpu.memory_space<vmem>>, vector<8x768xf32>
      %13 = arith.mulf %12, %12 : vector<8x768xf32>
      %cst_10 = arith.constant dense<0.000000e+00> : vector<8xf32>
      %14 = vector.multi_reduction <add>, %13, %cst_10 [1] : vector<8x768xf32> to vector<8xf32>
      %15 = vector.shape_cast %14 : vector<8xf32> to vector<8x1xf32>
      %cst_11 = arith.constant 1.000000e-24 : f32
      %16 = vector.broadcast %cst_11 : f32 to vector<8x1xf32>
      %17 = arith.maximumf %15, %16 : vector<8x1xf32>
      %18 = math.rsqrt %17 : vector<8x1xf32>
      %19 = vector.broadcast %18 : vector<8x1xf32> to vector<8x768xf32>
      %20 = arith.mulf %12, %19 : vector<8x768xf32>
      %c0_12 = arith.constant 0 : index
      %c0_13 = arith.constant 0 : index
      %21 = vector.load %arg4[%c0_12, %c0_13] : memref<768x6xf32, #tpu.memory_space<vmem>>, vector<768x6xf32>
      %cst_14 = arith.constant dense<0.000000e+00> : vector<8x6xf32>
      %22 = tpu.matmul %20, %21, %cst_14 {dimension_numbers = #tpu.dot_dimension_numbers<[1], [0], [0], [1], [0, 0, 1, 1], [], []>} : vector<8x768xf32>, vector<768x6xf32>, vector<8x6xf32> -> vector<8x6xf32>
      %c0_15 = arith.constant 0 : index
      %c0_16 = arith.constant 0 : index
      %23 = vector.load %arg5[%c0_15, %c0_16] : memref<1x6xf32, #tpu.memory_space<vmem>>, vector<1x6xf32>
      %24 = vector.broadcast %23 : vector<1x6xf32> to vector<8x6xf32>
      %25 = arith.addf %22, %24 : vector<8x6xf32>
      %cst_17 = arith.constant dense<0xFF800000> : vector<8xf32>
      %26 = vector.multi_reduction <maximumf>, %25, %cst_17 [1] : vector<8x6xf32> to vector<8xf32>
      %27 = vector.shape_cast %26 : vector<8xf32> to vector<8x1xf32>
      %28 = vector.broadcast %27 : vector<8x1xf32> to vector<8x6xf32>
      %29 = arith.subf %25, %28 : vector<8x6xf32>
      %30 = math.exp %29 : vector<8x6xf32>
      %cst_18 = arith.constant dense<0.000000e+00> : vector<8xf32>
      %31 = vector.multi_reduction <add>, %30, %cst_18 [1] : vector<8x6xf32> to vector<8xf32>
      %32 = vector.shape_cast %31 : vector<8xf32> to vector<8x1xf32>
      %33 = math.log %32 : vector<8x1xf32>
      %34 = vector.broadcast %33 : vector<8x1xf32> to vector<8x6xf32>
      %35 = arith.subf %29, %34 : vector<8x6xf32>
      %c0_19 = arith.constant 0 : index
      %c0_20 = arith.constant 0 : index
      %36 = vector.load %arg6[%c0_19, %c0_20] : memref<8x6xf32, #tpu.memory_space<vmem>>, vector<8x6xf32>
      tpu.vector_store %arg6[%c0_19, %c0_20], %35 {strides = array<i32>} : memref<8x6xf32, #tpu.memory_space<vmem>>, vector<8x6xf32>,
    } else {
    }
    return
  }
  func.func @transform_0(%arg0: i32, %arg1: i32) -> (i32, i32, i32) {
    %c0_i32 = arith.constant 0 : i32
    %c0_i32_0 = arith.constant 0 : i32
    return %arg0, %arg1, %c0_i32 : i32, i32, i32
  }
  func.func @transform_1(%arg0: i32, %arg1: i32) -> (i32, i32, i32) {
    %c0_i32 = arith.constant 0 : i32
    %c0_i32_0 = arith.constant 0 : i32
    return %arg0, %arg1, %c0_i32 : i32, i32, i32
  }
  func.func @transform_2(%arg0: i32, %arg1: i32) -> (i32, i32) {
    %c0_i32 = arith.constant 0 : i32
    %c0_i32_0 = arith.constant 0 : i32
    %c0_i32_1 = arith.constant 0 : i32
    return %c0_i32, %c0_i32_0 : i32, i32
  }
  func.func @transform_3(%arg0: i32, %arg1: i32) -> (i32, i32) {
    %c0_i32 = arith.constant 0 : i32
    %c0_i32_0 = arith.constant 0 : i32
    %c0_i32_1 = arith.constant 0 : i32
    return %c0_i32, %c0_i32_0 : i32, i32
  }
  func.func @transform_4(%arg0: i32, %arg1: i32) -> (i32, i32) {
    %c0_i32 = arith.constant 0 : i32
    %c0_i32_0 = arith.constant 0 : i32
    return %arg0, %c0_i32 : i32, i32
  }
}

</mosaic_0001>

<llo_original>
// kernel: tpu_custom_call.1
$region0: #{tpu_custom_call.1}
  #allocation0 [shape = 'u32[]', space=smem, size = 0x4, offset = 0x4, fixed_abs, tag = 'smem constant byte address 0x4 - core index']
  #allocation1 [shape = 'u32[144,128]{1,0:T(1,128)}', space=vmem, size = 0x12000, scoped, tag = 'internal scratch']
  #allocation2 [shape = 'f32[8,768]{1,0:T(8,128)}', space=vmem, size = 0x6000, scoped, tag = 'scratch operand']
  %s0 = inlined_call_operand.hbm [shape: bf16[8,1024,768], index: 0, kind: input, shape index: {}]
  %s1 = inlined_call_operand.vmem [shape: bf16[8,1024,1], index: 1, kind: input, shape index: {}]
  %s2 = inlined_call_operand.vmem [shape: f32[768,6], index: 2, kind: input, shape index: {}]
  %s3 = inlined_call_operand.hbm [shape: f32[1,6], index: 3, kind: input, shape index: {}]
  %s4 = inlined_call_operand.hbm [shape: f32[8,6], index: 4, kind: output, shape index: {}]
  %s5 = sld [smem:[#allocation0]]
  $region49: #{tpu_custom_call.1} parent=0
    _
  %s7 = ssub.s32 1, %s5
  %s8 = scalar_select 0, %s7, %s5
  $region1: #{tpu_custom_call.1} parent=0
    #allocation3 [shape = 'u8[12582912]{0}', space=vmem, size = 0xc00000, scoped, tag = 'input window, operand 0, single buffered']
    #allocation4 [shape = 's32[1]{0}', space=sflag, size = 0x4, scoped, tag = 'scoped memory for tpu_custom_call.1']
    #allocation5 [shape = 's32[1]{0}', space=sflag, size = 0x4, scoped, tag = 'scoped memory for tpu_custom_call.1']
    #allocation6 [shape = 'u8[512]{0}', space=vmem, size = 0x400, scoped, tag = 'input window, operand 3, single buffered']
    #allocation7 [shape = 's32[1]{0}', space=sflag, size = 0x4, scoped, tag = 'scoped memory for tpu_custom_call.1']
    #allocation8 [shape = 'u8[4096]{0}', space=vmem, size = 0x1000, scoped, tag = 'output window, operand 0, single buffered']
    %9 = vsyncpa [#allocation4], 0
    %10 = vsyncpa [#allocation7], 0
    %11 = vsyncpa [#allocation5], 0
    // Predicated region
    $region2: #{tpu_custom_call.1} parent=1 // pred_check
      _
    $region3: #{tpu_custom_call.1} parent=1 // pred_check_branch
      %13 = sbr.rel (0) target = $region5
    $region4: #{tpu_custom_call.1} parent=1 // pred_region
      %s15 = ssub.s32 393216, 393216
      %16 = vsyncadd [#allocation4], %s15
      %s17 = sshll.u32 [#allocation3], 4
      %s18 = int_to_ptr.vmem [resolvable:$true] %s17
      %23 = dma.hbm_to_vmem [thread:$0]  %s0, 393216, %s18, [#allocation4], 384, 384, 24
    $region5: #{tpu_custom_call.1} parent=1 // pred_fallthru
      _
    // Predicated region
    $region6: #{tpu_custom_call.1} parent=1 // pred_check
      _
    $region7: #{tpu_custom_call.1} parent=1 // pred_check_branch
      %25 = sbr.rel (0) target = $region9
    $region8: #{tpu_custom_call.1} parent=1 // pred_region
      _
    $region9: #{tpu_custom_call.1} parent=1 // pred_fallthru
      _
    // Predicated region
    $region10: #{tpu_custom_call.1} parent=1 // pred_check
      _
    $region11: #{tpu_custom_call.1} parent=1 // pred_check_branch
      %27 = sbr.rel (0) target = $region13
    $region12: #{tpu_custom_call.1} parent=1 // pred_region
      _
    $region13: #{tpu_custom_call.1} parent=1 // pred_fallthru
      _
    // Predicated region
    $region14: #{tpu_custom_call.1} parent=1 // pred_check
      _
    $region15: #{tpu_custom_call.1} parent=1 // pred_check_branch
      %29 = sbr.rel (0) target = $region17
    $region16: #{tpu_custom_call.1} parent=1 // pred_region
      %s31 = ssub.s32 16, 16
      %32 = vsyncadd [#allocation7], %s31
      %s34 = sshll.u32 [#allocation6], 4
      %s35 = int_to_ptr.vmem [resolvable:$true] %s34
      %37 = dma.hbm_to_vmem [thread:$0]  %s3, 16, %s35, [#allocation7]
    $region17: #{tpu_custom_call.1} parent=1 // pred_fallthru
      _
    // Predicated region
    $region18: #{tpu_custom_call.1} parent=1 // pred_check
      _
    $region19: #{tpu_custom_call.1} parent=1 // pred_check_branch
      %39 = sbr.rel (0) target = $region21
    $region20: #{tpu_custom_call.1} parent=1 // pred_region
      %40 = dma.done [#allocation4], 393216
    $region21: #{tpu_custom_call.1} parent=1 // pred_fallthru
      _
    // Predicated region
    $region22: #{tpu_custom_call.1} parent=1 // pred_check
      _
    $region23: #{tpu_custom_call.1} parent=1 // pred_check_branch
      %42 = sbr.rel (0) target = $region25
    $region24: #{tpu_custom_call.1} parent=1 // pred_region
      %43 = dma.done [#allocation7], 16
    $region25: #{tpu_custom_call.1} parent=1 // pred_fallthru
      _
    %p44 = scmp.eq.s32.totalorder 0, 0
    // Predicated region
    $region26: #{tpu_custom_call.1} parent=1 // pred_check
      %p45 = pneg %p44
    $region27: #{tpu_custom_call.1} parent=1 // pred_check_branch
      %47 = sbr.rel (%p45) target = $region29
    $region28: #{tpu_custom_call.1} parent=1 // pred_region
      %48 = vst [vmem:[#allocation2] sm:$0xff] 0.0
      %49 = vst [vmem:[#allocation2 + $0x8] sm:$0xff] 0.0
      %50 = vst [vmem:[#allocation2 + $0x10] sm:$0xff] 0.0
      %51 = vst [vmem:[#allocation2 + $0x18] sm:$0xff] 0.0
      %52 = vst [vmem:[#allocation2 + $0x20] sm:$0xff] 0.0
      %53 = vst [vmem:[#allocation2 + $0x28] sm:$0xff] 0.0
    $region29: #{tpu_custom_call.1} parent=1 // pred_fallthru
      _
    loop: start=0, step=1, limit=8
    $region30: #{tpu_custom_call.1} parent=1 // loop_pre_header
      _
    $region31: #{tpu_custom_call.1} parent=1 // loop_header
      %s55 = sphi 0, %s59
      %p56 = scmp.ge.s32.totalorder %s55, 8
      %v60 = vphi 0.0, %v4324
      %v61 = vphi 0.0, %v4325
      %v62 = vphi 0.0, %v4326
      %v63 = vphi 0.0, %v4327
      %v64 = vphi 0.0, %v4328
      %v65 = vphi 0.0, %v4329
      %v66 = vphi 0.0, %v4330
      %v67 = vphi 0.0, %v4331
      %v68 = vphi 0.0, %v4332
      %v69 = vphi 0.0, %v4333
      %v70 = vphi 0.0, %v4334
      %v71 = vphi 0.0, %v4335
      %v72 = vphi 0.0, %v4336
      %v73 = vphi 0.0, %v4337
      %v74 = vphi 0.0, %v4338
      %v75 = vphi 0.0, %v4339
      %v76 = vphi 0.0, %v4340
      %v77 = vphi 0.0, %v4341
      %v78 = vphi 0.0, %v4342
      %v79 = vphi 0.0, %v4343
      %v80 = vphi 0.0, %v4344
      %v81 = vphi 0.0, %v4345
      %v82 = vphi 0.0, %v4346
      %v83 = vphi 0.0, %v4347
      %v84 = vphi 0.0, %v4348
      %v85 = vphi 0.0, %v4349
      %v86 = vphi 0.0, %v4350
      %v87 = vphi 0.0, %v4351
      %v88 = vphi 0.0, %v4352
      %v89 = vphi 0.0, %v4353
      %v90 = vphi 0.0, %v4354
      %v91 = vphi 0.0, %v4355
      %v92 = vphi 0.0, %v4356
      %v93 = vphi 0.0, %v4357
      %v94 = vphi 0.0, %v4358
      %v95 = vphi 0.0, %v4359
      %v96 = vphi 0.0, %v4360
      %v97 = vphi 0.0, %v4361
      %v98 = vphi 0.0, %v4362
      %v99 = vphi 0.0, %v4363
      %v100 = vphi 0.0, %v4364
      %v101 = vphi 0.0, %v4365
      %v102 = vphi 0.0, %v4366
      %v103 = vphi 0.0, %v4367
      %v104 = vphi 0.0, %v4368
      %v105 = vphi 0.0, %v4369
      %v106 = vphi 0.0, %v4370
      %v107 = vphi 0.0, %v4371
    $region32: #{tpu_custom_call.1} parent=1 // loop_header_branch
      %58 = sbr.rel (%p56) target = $region36
    $region33: #{tpu_custom_call.1} parent=1 // loop_body
      %s108 = smul.u32 %s55, 128
      %s109 = sshra.s32 %s108, 3
      %s110 = sand.u32 %s108, 7
      %s111 = smul.u32 %s109, 6
      %s112 = smul.addr %s111, 4
      %s113 = scalar_lea.vmem [#allocation3], %s112
      %v114 = vld [vmem:[%s113] sm:$0xff]
      %v115 = vld [vmem:[%s113 + $0x8] sm:$0xff]
      %v116 = vld [vmem:[%s113 + $0x10] sm:$0xff]
      %v117 = vld [vmem:[%s113 + $0x18] sm:$0xff]
      %v118 = vld [vmem:[%s113 + $0x20] sm:$0xff]
      %v119 = vld [vmem:[%s113 + $0x28] sm:$0xff]
      %v120 = vld [vmem:[%s113 + $0x30] sm:$0xff]
      %v121 = vld [vmem:[%s113 + $0x38] sm:$0xff]
      %v122 = vld [vmem:[%s113 + $0x40] sm:$0xff]
      %v123 = vld [vmem:[%s113 + $0x48] sm:$0xff]
      %v124 = vld [vmem:[%s113 + $0x50] sm:$0xff]
      %v125 = vld [vmem:[%s113 + $0x58] sm:$0xff]
      %v126 = vld [vmem:[%s113 + $0x60] sm:$0xff]
      %v127 = vld [vmem:[%s113 + $0x68] sm:$0xff]
      %v128 = vld [vmem:[%s113 + $0x70] sm:$0xff]
      %v129 = vld [vmem:[%s113 + $0x78] sm:$0xff]
      %v130 = vld [vmem:[%s113 + $0x80] sm:$0xff]
      %v131 = vld [vmem:[%s113 + $0x88] sm:$0xff]
      %v132 = vld [vmem:[%s113 + $0x90] sm:$0xff]
      %v133 = vld [vmem:[%s113 + $0x98] sm:$0xff]
      %v134 = vld [vmem:[%s113 + $0xa0] sm:$0xff]
      %v135 = vld [vmem:[%s113 + $0xa8] sm:$0xff]
      %v136 = vld [vmem:[%s113 + $0xb0] sm:$0xff]
      %v137 = vld [vmem:[%s113 + $0xb8] sm:$0xff]
      %v138 = vld [vmem:[%s113 + $0xc0] sm:$0xff]
      %v139 = vld [vmem:[%s113 + $0xc8] sm:$0xff]
      %v140 = vld [vmem:[%s113 + $0xd0] sm:$0xff]
      %v141 = vld [vmem:[%s113 + $0xd8] sm:$0xff]
      %v142 = vld [vmem:[%s113 + $0xe0] sm:$0xff]
      %v143 = vld [vmem:[%s113 + $0xe8] sm:$0xff]
      %v144 = vld [vmem:[%s113 + $0xf0] sm:$0xff]
      %v145 = vld [vmem:[%s113 + $0xf8] sm:$0xff]
      %v146 = vld [vmem:[%s113 + $0x100] sm:$0xff]
      %v147 = vld [vmem:[%s113 + $0x108] sm:$0xff]
      %v148 = vld [vmem:[%s113 + $0x110] sm:$0xff]
      %v149 = vld [vmem:[%s113 + $0x118] sm:$0xff]
      %v150 = vld [vmem:[%s113 + $0x120] sm:$0xff]
      %v151 = vld [vmem:[%s113 + $0x128] sm:$0xff]
      %v152 = vld [vmem:[%s113 + $0x130] sm:$0xff]
      %v153 = vld [vmem:[%s113 + $0x138] sm:$0xff]
      %v154 = vld [vmem:[%s113 + $0x140] sm:$0xff]
      %v155 = vld [vmem:[%s113 + $0x148] sm:$0xff]
      %v156 = vld [vmem:[%s113 + $0x150] sm:$0xff]
      %v157 = vld [vmem:[%s113 + $0x158] sm:$0xff]
      %v158 = vld [vmem:[%s113 + $0x160] sm:$0xff]
      %v159 = vld [vmem:[%s113 + $0x168] sm:$0xff]
      %v160 = vld [vmem:[%s113 + $0x170] sm:$0xff]
      %v161 = vld [vmem:[%s113 + $0x178] sm:$0xff]
      %v162 = vld [vmem:[%s113 + $0xc00] sm:$0xff]
      %v163 = vld [vmem:[%s113 + $0xc08] sm:$0xff]
      %v164 = vld [vmem:[%s113 + $0xc10] sm:$0xff]
      %v165 = vld [vmem:[%s113 + $0xc18] sm:$0xff]
      %v166 = vld [vmem:[%s113 + $0xc20] sm:$0xff]
      %v167 = vld [vmem:[%s113 + $0xc28] sm:$0xff]
      %v168 = vld [vmem:[%s113 + $0xc30] sm:$0xff]
      %v169 = vld [vmem:[%s113 + $0xc38] sm:$0xff]
      %v170 = vld [vmem:[%s113 + $0xc40] sm:$0xff]
      %v171 = vld [vmem:[%s113 + $0xc48] sm:$0xff]
      %v172 = vld [vmem:[%s113 + $0xc50] sm:$0xff]
      %v173 = vld [vmem:[%s113 + $0xc58] sm:$0xff]
      %v174 = vld [vmem:[%s113 + $0xc60] sm:$0xff]
      %v175 = vld [vmem:[%s113 + $0xc68] sm:$0xff]
      %v176 = vld [vmem:[%s113 + $0xc70] sm:$0xff]
      %v177 = vld [vmem:[%s113 + $0xc78] sm:$0xff]
      %v178 = vld [vmem:[%s113 + $0xc80] sm:$0xff]
      %v179 = vld [vmem:[%s113 + $0xc88] sm:$0xff]
      %v180 = vld [vmem:[%s113 + $0xc90] sm:$0xff]
      %v181 = vld [vmem:[%s113 + $0xc98] sm:$0xff]
      %v182 = vld [vmem:[%s113 + $0xca0] sm:$0xff]
      %v183 = vld [vmem:[%s113 + $0xca8] sm:$0xff]
      %v184 = vld [vmem:[%s113 + $0xcb0] sm:$0xff]
      %v185 = vld [vmem:[%s113 + $0xcb8] sm:$0xff]
      %v186 = vld [vmem:[%s113 + $0xcc0] sm:$0xff]
      %v187 = vld [vmem:[%s113 + $0xcc8] sm:$0xff]
      %v188 = vld [vmem:[%s113 + $0xcd0] sm:$0xff]
      %v189 = vld [vmem:[%s113 + $0xcd8] sm:$0xff]
      %v190 = vld [vmem:[%s113 + $0xce0] sm:$0xff]
      %v191 = vld [vmem:[%s113 + $0xce8] sm:$0xff]
      %v192 = vld [vmem:[%s113 + $0xcf0] sm:$0xff]
      %v193 = vld [vmem:[%s113 + $0xcf8] sm:$0xff]
      %v194 = vld [vmem:[%s113 + $0xd00] sm:$0xff]
      %v195 = vld [vmem:[%s113 + $0xd08] sm:$0xff]
      %v196 = vld [vmem:[%s113 + $0xd10] sm:$0xff]
      %v197 = vld [vmem:[%s113 + $0xd18] sm:$0xff]
      %v198 = vld [vmem:[%s113 + $0xd20] sm:$0xff]
      %v199 = vld [vmem:[%s113 + $0xd28] sm:$0xff]
      %v200 = vld [vmem:[%s113 + $0xd30] sm:$0xff]
      %v201 = vld [vmem:[%s113 + $0xd38] sm:$0xff]
      %v202 = vld [vmem:[%s113 + $0xd40] sm:$0xff]
      %v203 = vld [vmem:[%s113 + $0xd48] sm:$0xff]
      %v204 = vld [vmem:[%s113 + $0xd50] sm:$0xff]
      %v205 = vld [vmem:[%s113 + $0xd58] sm:$0xff]
      %v206 = vld [vmem:[%s113 + $0xd60] sm:$0xff]
      %v207 = vld [vmem:[%s113 + $0xd68] sm:$0xff]
      %v208 = vld [vmem:[%s113 + $0xd70] sm:$0xff]
      %v209 = vld [vmem:[%s113 + $0xd78] sm:$0xff]
      %v210 = vld [vmem:[%s113 + $0x1800] sm:$0xff]
      %v211 = vld [vmem:[%s113 + $0x1808] sm:$0xff]
      %v212 = vld [vmem:[%s113 + $0x1810] sm:$0xff]
      %v213 = vld [vmem:[%s113 + $0x1818] sm:$0xff]
      %v214 = vld [vmem:[%s113 + $0x1820] sm:$0xff]
      %v215 = vld [vmem:[%s113 + $0x1828] sm:$0xff]
      %v216 = vld [vmem:[%s113 + $0x1830] sm:$0xff]
      %v217 = vld [vmem:[%s113 + $0x1838] sm:$0xff]
      %v218 = vld [vmem:[%s113 + $0x1840] sm:$0xff]
      %v219 = vld [vmem:[%s113 + $0x1848] sm:$0xff]
      %v220 = vld [vmem:[%s113 + $0x1850] sm:$0xff]
      %v221 = vld [vmem:[%s113 + $0x1858] sm:$0xff]
      %v222 = vld [vmem:[%s113 + $0x1860] sm:$0xff]
      %v223 = vld [vmem:[%s113 + $0x1868] sm:$0xff]
      %v224 = vld [vmem:[%s113 + $0x1870] sm:$0xff]
      %v225 = vld [vmem:[%s113 + $0x1878] sm:$0xff]
      %v226 = vld [vmem:[%s113 + $0x1880] sm:$0xff]
      %v227 = vld [vmem:[%s113 + $0x1888] sm:$0xff]
      %v228 = vld [vmem:[%s113 + $0x1890] sm:$0xff]
      %v229 = vld [vmem:[%s113 + $0x1898] sm:$0xff]
      %v230 = vld [vmem:[%s113 + $0x18a0] sm:$0xff]
      %v231 = vld [vmem:[%s113 + $0x18a8] sm:$0xff]
      %v232 = vld [vmem:[%s113 + $0x18b0] sm:$0xff]
      %v233 = vld [vmem:[%s113 + $0x18b8] sm:$0xff]
      %v234 = vld [vmem:[%s113 + $0x18c0] sm:$0xff]
      %v235 = vld [vmem:[%s113 + $0x18c8] sm:$0xff]
      %v236 = vld [vmem:[%s113 + $0x18d0] sm:$0xff]
      %v237 = vld [vmem:[%s113 + $0x18d8] sm:$0xff]
      %v238 = vld [vmem:[%s113 + $0x18e0] sm:$0xff]
      %v239 = vld [vmem:[%s113 + $0x18e8] sm:$0xff]
      %v240 = vld [vmem:[%s113 + $0x18f0] sm:$0xff]
      %v241 = vld [vmem:[%s113 + $0x18f8] sm:$0xff]
      %v242 = vld [vmem:[%s113 + $0x1900] sm:$0xff]
      %v243 = vld [vmem:[%s113 + $0x1908] sm:$0xff]
      %v244 = vld [vmem:[%s113 + $0x1910] sm:$0xff]
      %v245 = vld [vmem:[%s113 + $0x1918] sm:$0xff]
      %v246 = vld [vmem:[%s113 + $0x1920] sm:$0xff]
      %v247 = vld [vmem:[%s113 + $0x1928] sm:$0xff]
      %v248 = vld [vmem:[%s113 + $0x1930] sm:$0xff]
      %v249 = vld [vmem:[%s113 + $0x1938] sm:$0xff]
      %v250 = vld [vmem:[%s113 + $0x1940] sm:$0xff]
      %v251 = vld [vmem:[%s113 + $0x1948] sm:$0xff]
      %v252 = vld [vmem:[%s113 + $0x1950] sm:$0xff]
      %v253 = vld [vmem:[%s113 + $0x1958] sm:$0xff]
      %v254 = vld [vmem:[%s113 + $0x1960] sm:$0xff]
      %v255 = vld [vmem:[%s113 + $0x1968] sm:$0xff]
      %v256 = vld [vmem:[%s113 + $0x1970] sm:$0xff]
      %v257 = vld [vmem:[%s113 + $0x1978] sm:$0xff]
      %v258 = vld [vmem:[%s113 + $0x2400] sm:$0xff]
      %v259 = vld [vmem:[%s113 + $0x2408] sm:$0xff]
      %v260 = vld [vmem:[%s113 + $0x2410] sm:$0xff]
      %v261 = vld [vmem:[%s113 + $0x2418] sm:$0xff]
      %v262 = vld [vmem:[%s113 + $0x2420] sm:$0xff]
      %v263 = vld [vmem:[%s113 + $0x2428] sm:$0xff]
      %v264 = vld [vmem:[%s113 + $0x2430] sm:$0xff]
      %v265 = vld [vmem:[%s113 + $0x2438] sm:$0xff]
      %v266 = vld [vmem:[%s113 + $0x2440] sm:$0xff]
      %v267 = vld [vmem:[%s113 + $0x2448] sm:$0xff]
      %v268 = vld [vmem:[%s113 + $0x2450] sm:$0xff]
      %v269 = vld [vmem:[%s113 + $0x2458] sm:$0xff]
      %v270 = vld [vmem:[%s113 + $0x2460] sm:$0xff]
      %v271 = vld [vmem:[%s113 + $0x2468] sm:$0xff]
      %v272 = vld [vmem:[%s113 + $0x2470] sm:$0xff]
      %v273 = vld [vmem:[%s113 + $0x2478] sm:$0xff]
      %v274 = vld [vmem:[%s113 + $0x2480] sm:$0xff]
      %v275 = vld [vmem:[%s113 + $0x2488] sm:$0xff]
      %v276 = vld [vmem:[%s113 + $0x2490] sm:$0xff]
      %v277 = vld [vmem:[%s113 + $0x2498] sm:$0xff]
      %v278 = vld [vmem:[%s113 + $0x24a0] sm:$0xff]
      %v279 = vld [vmem:[%s113 + $0x24a8] sm:$0xff]
      %v280 = vld [vmem:[%s113 + $0x24b0] sm:$0xff]
      %v281 = vld [vmem:[%s113 + $0x24b8] sm:$0xff]
      %v282 = vld [vmem:[%s113 + $0x24c0] sm:$0xff]
      %v283 = vld [vmem:[%s113 + $0x24c8] sm:$0xff]
      %v284 = vld [vmem:[%s113 + $0x24d0] sm:$0xff]
      %v285 = vld [vmem:[%s113 + $0x24d8] sm:$0xff]
      %v286 = vld [vmem:[%s113 + $0x24e0] sm:$0xff]
      %v287 = vld [vmem:[%s113 + $0x24e8] sm:$0xff]
      %v288 = vld [vmem:[%s113 + $0x24f0] sm:$0xff]
      %v289 = vld [vmem:[%s113 + $0x24f8] sm:$0xff]
      %v290 = vld [vmem:[%s113 + $0x2500] sm:$0xff]
      %v291 = vld [vmem:[%s113 + $0x2508] sm:$0xff]
      %v292 = vld [vmem:[%s113 + $0x2510] sm:$0xff]
      %v293 = vld [vmem:[%s113 + $0x2518] sm:$0xff]
      %v294 = vld [vmem:[%s113 + $0x2520] sm:$0xff]
      %v295 = vld [vmem:[%s113 + $0x2528] sm:$0xff]
      %v296 = vld [vmem:[%s113 + $0x2530] sm:$0xff]
      %v297 = vld [vmem:[%s113 + $0x2538] sm:$0xff]
      %v298 = vld [vmem:[%s113 + $0x2540] sm:$0xff]
      %v299 = vld [vmem:[%s113 + $0x2548] sm:$0xff]
      %v300 = vld [vmem:[%s113 + $0x2550] sm:$0xff]
      %v301 = vld [vmem:[%s113 + $0x2558] sm:$0xff]
      %v302 = vld [vmem:[%s113 + $0x2560] sm:$0xff]
      %v303 = vld [vmem:[%s113 + $0x2568] sm:$0xff]
      %v304 = vld [vmem:[%s113 + $0x2570] sm:$0xff]
      %v305 = vld [vmem:[%s113 + $0x2578] sm:$0xff]
      %v306 = vld [vmem:[%s113 + $0x3000] sm:$0xff]
      %v307 = vld [vmem:[%s113 + $0x3008] sm:$0xff]
      %v308 = vld [vmem:[%s113 + $0x3010] sm:$0xff]
      %v309 = vld [vmem:[%s113 + $0x3018] sm:$0xff]
      %v310 = vld [vmem:[%s113 + $0x3020] sm:$0xff]
      %v311 = vld [vmem:[%s113 + $0x3028] sm:$0xff]
      %v312 = vld [vmem:[%s113 + $0x3030] sm:$0xff]
      %v313 = vld [vmem:[%s113 + $0x3038] sm:$0xff]
      %v314 = vld [vmem:[%s113 + $0x3040] sm:$0xff]
      %v315 = vld [vmem:[%s113 + $0x3048] sm:$0xff]
      %v316 = vld [vmem:[%s113 + $0x3050] sm:$0xff]
      %v317 = vld [vmem:[%s113 + $0x3058] sm:$0xff]
      %v318 = vld [vmem:[%s113 + $0x3060] sm:$0xff]
      %v319 = vld [vmem:[%s113 + $0x3068] sm:$0xff]
      %v320 = vld [vmem:[%s113 + $0x3070] sm:$0xff]
      %v321 = vld [vmem:[%s113 + $0x3078] sm:$0xff]
      %v322 = vld [vmem:[%s113 + $0x3080] sm:$0xff]
      %v323 = vld [vmem:[%s113 + $0x3088] sm:$0xff]
      %v324 = vld [vmem:[%s113 + $0x3090] sm:$0xff]
      %v325 = vld [vmem:[%s113 + $0x3098] sm:$0xff]
      %v326 = vld [vmem:[%s113 + $0x30a0] sm:$0xff]
      %v327 = vld [vmem:[%s113 + $0x30a8] sm:$0xff]
      %v328 = vld [vmem:[%s113 + $0x30b0] sm:$0xff]
      %v329 = vld [vmem:[%s113 + $0x30b8] sm:$0xff]
      %v330 = vld [vmem:[%s113 + $0x30c0] sm:$0xff]
      %v331 = vld [vmem:[%s113 + $0x30c8] sm:$0xff]
      %v332 = vld [vmem:[%s113 + $0x30d0] sm:$0xff]
      %v333 = vld [vmem:[%s113 + $0x30d8] sm:$0xff]
      %v334 = vld [vmem:[%s113 + $0x30e0] sm:$0xff]
      %v335 = vld [vmem:[%s113 + $0x30e8] sm:$0xff]
      %v336 = vld [vmem:[%s113 + $0x30f0] sm:$0xff]
      %v337 = vld [vmem:[%s113 + $0x30f8] sm:$0xff]
      %v338 = vld [vmem:[%s113 + $0x3100] sm:$0xff]
      %v339 = vld [vmem:[%s113 + $0x3108] sm:$0xff]
      %v340 = vld [vmem:[%s113 + $0x3110] sm:$0xff]
      %v341 = vld [vmem:[%s113 + $0x3118] sm:$0xff]
      %v342 = vld [vmem:[%s113 + $0x3120] sm:$0xff]
      %v343 = vld [vmem:[%s113 + $0x3128] sm:$0xff]
      %v344 = vld [vmem:[%s113 + $0x3130] sm:$0xff]
      %v345 = vld [vmem:[%s113 + $0x3138] sm:$0xff]
      %v346 = vld [vmem:[%s113 + $0x3140] sm:$0xff]
      %v347 = vld [vmem:[%s113 + $0x3148] sm:$0xff]
      %v348 = vld [vmem:[%s113 + $0x3150] sm:$0xff]
      %v349 = vld [vmem:[%s113 + $0x3158] sm:$0xff]
      %v350 = vld [vmem:[%s113 + $0x3160] sm:$0xff]
      %v351 = vld [vmem:[%s113 + $0x3168] sm:$0xff]
      %v352 = vld [vmem:[%s113 + $0x3170] sm:$0xff]
      %v353 = vld [vmem:[%s113 + $0x3178] sm:$0xff]
      %v354 = vld [vmem:[%s113 + $0x3c00] sm:$0xff]
      %v355 = vld [vmem:[%s113 + $0x3c08] sm:$0xff]
      %v356 = vld [vmem:[%s113 + $0x3c10] sm:$0xff]
      %v357 = vld [vmem:[%s113 + $0x3c18] sm:$0xff]
      %v358 = vld [vmem:[%s113 + $0x3c20] sm:$0xff]
      %v359 = vld [vmem:[%s113 + $0x3c28] sm:$0xff]
      %v360 = vld [vmem:[%s113 + $0x3c30] sm:$0xff]
      %v361 = vld [vmem:[%s113 + $0x3c38] sm:$0xff]
      %v362 = vld [vmem:[%s113 + $0x3c40] sm:$0xff]
      %v363 = vld [vmem:[%s113 + $0x3c48] sm:$0xff]
      %v364 = vld [vmem:[%s113 + $0x3c50] sm:$0xff]
      %v365 = vld [vmem:[%s113 + $0x3c58] sm:$0xff]
      %v366 = vld [vmem:[%s113 + $0x3c60] sm:$0xff]
      %v367 = vld [vmem:[%s113 + $0x3c68] sm:$0xff]
      %v368 = vld [vmem:[%s113 + $0x3c70] sm:$0xff]
      %v369 = vld [vmem:[%s113 + $0x3c78] sm:$0xff]
      %v370 = vld [vmem:[%s113 + $0x3c80] sm:$0xff]
      %v371 = vld [vmem:[%s113 + $0x3c88] sm:$0xff]
      %v372 = vld [vmem:[%s113 + $0x3c90] sm:$0xff]
      %v373 = vld [vmem:[%s113 + $0x3c98] sm:$0xff]
      %v374 = vld [vmem:[%s113 + $0x3ca0] sm:$0xff]
      %v375 = vld [vmem:[%s113 + $0x3ca8] sm:$0xff]
      %v376 = vld [vmem:[%s113 + $0x3cb0] sm:$0xff]
      %v377 = vld [vmem:[%s113 + $0x3cb8] sm:$0xff]
      %v378 = vld [vmem:[%s113 + $0x3cc0] sm:$0xff]
      %v379 = vld [vmem:[%s113 + $0x3cc8] sm:$0xff]
      %v380 = vld [vmem:[%s113 + $0x3cd0] sm:$0xff]
      %v381 = vld [vmem:[%s113 + $0x3cd8] sm:$0xff]
      %v382 = vld [vmem:[%s113 + $0x3ce0] sm:$0xff]
      %v383 = vld [vmem:[%s113 + $0x3ce8] sm:$0xff]
      %v384 = vld [vmem:[%s113 + $0x3cf0] sm:$0xff]
      %v385 = vld [vmem:[%s113 + $0x3cf8] sm:$0xff]
      %v386 = vld [vmem:[%s113 + $0x3d00] sm:$0xff]
      %v387 = vld [vmem:[%s113 + $0x3d08] sm:$0xff]
      %v388 = vld [vmem:[%s113 + $0x3d10] sm:$0xff]
      %v389 = vld [vmem:[%s113 + $0x3d18] sm:$0xff]
      %v390 = vld [vmem:[%s113 + $0x3d20] sm:$0xff]
      %v391 = vld [vmem:[%s113 + $0x3d28] sm:$0xff]
      %v392 = vld [vmem:[%s113 + $0x3d30] sm:$0xff]
      %v393 = vld [vmem:[%s113 + $0x3d38] sm:$0xff]
      %v394 = vld [vmem:[%s113 + $0x3d40] sm:$0xff]
      %v395 = vld [vmem:[%s113 + $0x3d48] sm:$0xff]
      %v396 = vld [vmem:[%s113 + $0x3d50] sm:$0xff]
      %v397 = vld [vmem:[%s113 + $0x3d58] sm:$0xff]
      %v398 = vld [vmem:[%s113 + $0x3d60] sm:$0xff]
      %v399 = vld [vmem:[%s113 + $0x3d68] sm:$0xff]
      %v400 = vld [vmem:[%s113 + $0x3d70] sm:$0xff]
      %v401 = vld [vmem:[%s113 + $0x3d78] sm:$0xff]
      %v402 = vld [vmem:[%s113 + $0x4800] sm:$0xff]
      %v403 = vld [vmem:[%s113 + $0x4808] sm:$0xff]
      %v404 = vld [vmem:[%s113 + $0x4810] sm:$0xff]
      %v405 = vld [vmem:[%s113 + $0x4818] sm:$0xff]
      %v406 = vld [vmem:[%s113 + $0x4820] sm:$0xff]
      %v407 = vld [vmem:[%s113 + $0x4828] sm:$0xff]
      %v408 = vld [vmem:[%s113 + $0x4830] sm:$0xff]
      %v409 = vld [vmem:[%s113 + $0x4838] sm:$0xff]
      %v410 = vld [vmem:[%s113 + $0x4840] sm:$0xff]
      %v411 = vld [vmem:[%s113 + $0x4848] sm:$0xff]
      %v412 = vld [vmem:[%s113 + $0x4850] sm:$0xff]
      %v413 = vld [vmem:[%s113 + $0x4858] sm:$0xff]
      %v414 = vld [vmem:[%s113 + $0x4860] sm:$0xff]
      %v415 = vld [vmem:[%s113 + $0x4868] sm:$0xff]
      %v416 = vld [vmem:[%s113 + $0x4870] sm:$0xff]
      %v417 = vld [vmem:[%s113 + $0x4878] sm:$0xff]
      %v418 = vld [vmem:[%s113 + $0x4880] sm:$0xff]
      %v419 = vld [vmem:[%s113 + $0x4888] sm:$0xff]
      %v420 = vld [vmem:[%s113 + $0x4890] sm:$0xff]
      %v421 = vld [vmem:[%s113 + $0x4898] sm:$0xff]
      %v422 = vld [vmem:[%s113 + $0x48a0] sm:$0xff]
      %v423 = vld [vmem:[%s113 + $0x48a8] sm:$0xff]
      %v424 = vld [vmem:[%s113 + $0x48b0] sm:$0xff]
      %v425 = vld [vmem:[%s113 + $0x48b8] sm:$0xff]
      %v426 = vld [vmem:[%s113 + $0x48c0] sm:$0xff]
      %v427 = vld [vmem:[%s113 + $0x48c8] sm:$0xff]
      %v428 = vld [vmem:[%s113 + $0x48d0] sm:$0xff]
      %v429 = vld [vmem:[%s113 + $0x48d8] sm:$0xff]
      %v430 = vld [vmem:[%s113 + $0x48e0] sm:$0xff]
      %v431 = vld [vmem:[%s113 + $0x48e8] sm:$0xff]
      %v432 = vld [vmem:[%s113 + $0x48f0] sm:$0xff]
      %v433 = vld [vmem:[%s113 + $0x48f8] sm:$0xff]
      %v434 = vld [vmem:[%s113 + $0x4900] sm:$0xff]
      %v435 = vld [vmem:[%s113 + $0x4908] sm:$0xff]
      %v436 = vld [vmem:[%s113 + $0x4910] sm:$0xff]
      %v437 = vld [vmem:[%s113 + $0x4918] sm:$0xff]
      %v438 = vld [vmem:[%s113 + $0x4920] sm:$0xff]
      %v439 = vld [vmem:[%s113 + $0x4928] sm:$0xff]
      %v440 = vld [vmem:[%s113 + $0x4930] sm:$0xff]
      %v441 = vld [vmem:[%s113 + $0x4938] sm:$0xff]
      %v442 = vld [vmem:[%s113 + $0x4940] sm:$0xff]
      %v443 = vld [vmem:[%s113 + $0x4948] sm:$0xff]
      %v444 = vld [vmem:[%s113 + $0x4950] sm:$0xff]
      %v445 = vld [vmem:[%s113 + $0x4958] sm:$0xff]
      %v446 = vld [vmem:[%s113 + $0x4960] sm:$0xff]
      %v447 = vld [vmem:[%s113 + $0x4968] sm:$0xff]
      %v448 = vld [vmem:[%s113 + $0x4970] sm:$0xff]
      %v449 = vld [vmem:[%s113 + $0x4978] sm:$0xff]
      %v450 = vld [vmem:[%s113 + $0x5400] sm:$0xff]
      %v451 = vld [vmem:[%s113 + $0x5408] sm:$0xff]
      %v452 = vld [vmem:[%s113 + $0x5410] sm:$0xff]
      %v453 = vld [vmem:[%s113 + $0x5418] sm:$0xff]
      %v454 = vld [vmem:[%s113 + $0x5420] sm:$0xff]
      %v455 = vld [vmem:[%s113 + $0x5428] sm:$0xff]
      %v456 = vld [vmem:[%s113 + $0x5430] sm:$0xff]
      %v457 = vld [vmem:[%s113 + $0x5438] sm:$0xff]
      %v458 = vld [vmem:[%s113 + $0x5440] sm:$0xff]
      %v459 = vld [vmem:[%s113 + $0x5448] sm:$0xff]
      %v460 = vld [vmem:[%s113 + $0x5450] sm:$0xff]
      %v461 = vld [vmem:[%s113 + $0x5458] sm:$0xff]
      %v462 = vld [vmem:[%s113 + $0x5460] sm:$0xff]
      %v463 = vld [vmem:[%s113 + $0x5468] sm:$0xff]
      %v464 = vld [vmem:[%s113 + $0x5470] sm:$0xff]
      %v465 = vld [vmem:[%s113 + $0x5478] sm:$0xff]
      %v466 = vld [vmem:[%s113 + $0x5480] sm:$0xff]
      %v467 = vld [vmem:[%s113 + $0x5488] sm:$0xff]
      %v468 = vld [vmem:[%s113 + $0x5490] sm:$0xff]
      %v469 = vld [vmem:[%s113 + $0x5498] sm:$0xff]
      %v470 = vld [vmem:[%s113 + $0x54a0] sm:$0xff]
      %v471 = vld [vmem:[%s113 + $0x54a8] sm:$0xff]
      %v472 = vld [vmem:[%s113 + $0x54b0] sm:$0xff]
      %v473 = vld [vmem:[%s113 + $0x54b8] sm:$0xff]
      %v474 = vld [vmem:[%s113 + $0x54c0] sm:$0xff]
      %v475 = vld [vmem:[%s113 + $0x54c8] sm:$0xff]
      %v476 = vld [vmem:[%s113 + $0x54d0] sm:$0xff]
      %v477 = vld [vmem:[%s113 + $0x54d8] sm:$0xff]
      %v478 = vld [vmem:[%s113 + $0x54e0] sm:$0xff]
      %v479 = vld [vmem:[%s113 + $0x54e8] sm:$0xff]
      %v480 = vld [vmem:[%s113 + $0x54f0] sm:$0xff]
      %v481 = vld [vmem:[%s113 + $0x54f8] sm:$0xff]
      %v482 = vld [vmem:[%s113 + $0x5500] sm:$0xff]
      %v483 = vld [vmem:[%s113 + $0x5508] sm:$0xff]
      %v484 = vld [vmem:[%s113 + $0x5510] sm:$0xff]
      %v485 = vld [vmem:[%s113 + $0x5518] sm:$0xff]
      %v486 = vld [vmem:[%s113 + $0x5520] sm:$0xff]
      %v487 = vld [vmem:[%s113 + $0x5528] sm:$0xff]
      %v488 = vld [vmem:[%s113 + $0x5530] sm:$0xff]
      %v489 = vld [vmem:[%s113 + $0x5538] sm:$0xff]
      %v490 = vld [vmem:[%s113 + $0x5540] sm:$0xff]
      %v491 = vld [vmem:[%s113 + $0x5548] sm:$0xff]
      %v492 = vld [vmem:[%s113 + $0x5550] sm:$0xff]
      %v493 = vld [vmem:[%s113 + $0x5558] sm:$0xff]
      %v494 = vld [vmem:[%s113 + $0x5560] sm:$0xff]
      %v495 = vld [vmem:[%s113 + $0x5568] sm:$0xff]
      %v496 = vld [vmem:[%s113 + $0x5570] sm:$0xff]
      %v497 = vld [vmem:[%s113 + $0x5578] sm:$0xff]
      %s498 = smul.addr %s109, 4
      %s499 = scalar_lea.vmem %s1, %s498
      %v500 = vld [vmem:[%s499] sm:$0xf]
      %v501 = vld [vmem:[%s499 + $0x4] sm:$0xf]
      %v502 = vld [vmem:[%s499 + $0x8] sm:$0xf]
      %v503 = vld [vmem:[%s499 + $0xc] sm:$0xf]
      %v504 = vld [vmem:[%s499 + $0x10] sm:$0xf]
      %v505 = vld [vmem:[%s499 + $0x14] sm:$0xf]
      %v506 = vld [vmem:[%s499 + $0x18] sm:$0xf]
      %v507 = vld [vmem:[%s499 + $0x1c] sm:$0xf]
      %v508 = vld [vmem:[%s499 + $0x20] sm:$0xf]
      %v509 = vld [vmem:[%s499 + $0x24] sm:$0xf]
      %v510 = vld [vmem:[%s499 + $0x28] sm:$0xf]
      %v511 = vld [vmem:[%s499 + $0x2c] sm:$0xf]
      %v512 = vld [vmem:[%s499 + $0x30] sm:$0xf]
      %v513 = vld [vmem:[%s499 + $0x34] sm:$0xf]
      %v514 = vld [vmem:[%s499 + $0x38] sm:$0xf]
      %v515 = vld [vmem:[%s499 + $0x3c] sm:$0xf]
      %v516 = vld [vmem:[%s499 + $0x200] sm:$0xf]
      %v517 = vld [vmem:[%s499 + $0x204] sm:$0xf]
      %v518 = vld [vmem:[%s499 + $0x208] sm:$0xf]
      %v519 = vld [vmem:[%s499 + $0x20c] sm:$0xf]
      %v520 = vld [vmem:[%s499 + $0x210] sm:$0xf]
      %v521 = vld [vmem:[%s499 + $0x214] sm:$0xf]
      %v522 = vld [vmem:[%s499 + $0x218] sm:$0xf]
      %v523 = vld [vmem:[%s499 + $0x21c] sm:$0xf]
      %v524 = vld [vmem:[%s499 + $0x220] sm:$0xf]
      %v525 = vld [vmem:[%s499 + $0x224] sm:$0xf]
      %v526 = vld [vmem:[%s499 + $0x228] sm:$0xf]
      %v527 = vld [vmem:[%s499 + $0x22c] sm:$0xf]
      %v528 = vld [vmem:[%s499 + $0x230] sm:$0xf]
      %v529 = vld [vmem:[%s499 + $0x234] sm:$0xf]
      %v530 = vld [vmem:[%s499 + $0x238] sm:$0xf]
      %v531 = vld [vmem:[%s499 + $0x23c] sm:$0xf]
      %v532 = vld [vmem:[%s499 + $0x400] sm:$0xf]
      %v533 = vld [vmem:[%s499 + $0x404] sm:$0xf]
      %v534 = vld [vmem:[%s499 + $0x408] sm:$0xf]
      %v535 = vld [vmem:[%s499 + $0x40c] sm:$0xf]
      %v536 = vld [vmem:[%s499 + $0x410] sm:$0xf]
      %v537 = vld [vmem:[%s499 + $0x414] sm:$0xf]
      %v538 = vld [vmem:[%s499 + $0x418] sm:$0xf]
      %v539 = vld [vmem:[%s499 + $0x41c] sm:$0xf]
      %v540 = vld [vmem:[%s499 + $0x420] sm:$0xf]
      %v541 = vld [vmem:[%s499 + $0x424] sm:$0xf]
      %v542 = vld [vmem:[%s499 + $0x428] sm:$0xf]
      %v543 = vld [vmem:[%s499 + $0x42c] sm:$0xf]
      %v544 = vld [vmem:[%s499 + $0x430] sm:$0xf]
      %v545 = vld [vmem:[%s499 + $0x434] sm:$0xf]
      %v546 = vld [vmem:[%s499 + $0x438] sm:$0xf]
      %v547 = vld [vmem:[%s499 + $0x43c] sm:$0xf]
      %v548 = vld [vmem:[%s499 + $0x600] sm:$0xf]
      %v549 = vld [vmem:[%s499 + $0x604] sm:$0xf]
      %v550 = vld [vmem:[%s499 + $0x608] sm:$0xf]
      %v551 = vld [vmem:[%s499 + $0x60c] sm:$0xf]
      %v552 = vld [vmem:[%s499 + $0x610] sm:$0xf]
      %v553 = vld [vmem:[%s499 + $0x614] sm:$0xf]
      %v554 = vld [vmem:[%s499 + $0x618] sm:$0xf]
      %v555 = vld [vmem:[%s499 + $0x61c] sm:$0xf]
      %v556 = vld [vmem:[%s499 + $0x620] sm:$0xf]
      %v557 = vld [vmem:[%s499 + $0x624] sm:$0xf]
      %v558 = vld [vmem:[%s499 + $0x628] sm:$0xf]
      %v559 = vld [vmem:[%s499 + $0x62c] sm:$0xf]
      %v560 = vld [vmem:[%s499 + $0x630] sm:$0xf]
      %v561 = vld [vmem:[%s499 + $0x634] sm:$0xf]
      %v562 = vld [vmem:[%s499 + $0x638] sm:$0xf]
      %v563 = vld [vmem:[%s499 + $0x63c] sm:$0xf]
      %v564 = vld [vmem:[%s499 + $0x800] sm:$0xf]
      %v565 = vld [vmem:[%s499 + $0x804] sm:$0xf]
      %v566 = vld [vmem:[%s499 + $0x808] sm:$0xf]
      %v567 = vld [vmem:[%s499 + $0x80c] sm:$0xf]
      %v568 = vld [vmem:[%s499 + $0x810] sm:$0xf]
      %v569 = vld [vmem:[%s499 + $0x814] sm:$0xf]
      %v570 = vld [vmem:[%s499 + $0x818] sm:$0xf]
      %v571 = vld [vmem:[%s499 + $0x81c] sm:$0xf]
      %v572 = vld [vmem:[%s499 + $0x820] sm:$0xf]
      %v573 = vld [vmem:[%s499 + $0x824] sm:$0xf]
      %v574 = vld [vmem:[%s499 + $0x828] sm:$0xf]
      %v575 = vld [vmem:[%s499 + $0x82c] sm:$0xf]
      %v576 = vld [vmem:[%s499 + $0x830] sm:$0xf]
      %v577 = vld [vmem:[%s499 + $0x834] sm:$0xf]
      %v578 = vld [vmem:[%s499 + $0x838] sm:$0xf]
      %v579 = vld [vmem:[%s499 + $0x83c] sm:$0xf]
      %v580 = vld [vmem:[%s499 + $0xa00] sm:$0xf]
      %v581 = vld [vmem:[%s499 + $0xa04] sm:$0xf]
      %v582 = vld [vmem:[%s499 + $0xa08] sm:$0xf]
      %v583 = vld [vmem:[%s499 + $0xa0c] sm:$0xf]
      %v584 = vld [vmem:[%s499 + $0xa10] sm:$0xf]
      %v585 = vld [vmem:[%s499 + $0xa14] sm:$0xf]
      %v586 = vld [vmem:[%s499 + $0xa18] sm:$0xf]
      %v587 = vld [vmem:[%s499 + $0xa1c] sm:$0xf]
      %v588 = vld [vmem:[%s499 + $0xa20] sm:$0xf]
      %v589 = vld [vmem:[%s499 + $0xa24] sm:$0xf]
      %v590 = vld [vmem:[%s499 + $0xa28] sm:$0xf]
      %v591 = vld [vmem:[%s499 + $0xa2c] sm:$0xf]
      %v592 = vld [vmem:[%s499 + $0xa30] sm:$0xf]
      %v593 = vld [vmem:[%s499 + $0xa34] sm:$0xf]
      %v594 = vld [vmem:[%s499 + $0xa38] sm:$0xf]
      %v595 = vld [vmem:[%s499 + $0xa3c] sm:$0xf]
      %v596 = vld [vmem:[%s499 + $0xc00] sm:$0xf]
      %v597 = vld [vmem:[%s499 + $0xc04] sm:$0xf]
      %v598 = vld [vmem:[%s499 + $0xc08] sm:$0xf]
      %v599 = vld [vmem:[%s499 + $0xc0c] sm:$0xf]
      %v600 = vld [vmem:[%s499 + $0xc10] sm:$0xf]
      %v601 = vld [vmem:[%s499 + $0xc14] sm:$0xf]
      %v602 = vld [vmem:[%s499 + $0xc18] sm:$0xf]
      %v603 = vld [vmem:[%s499 + $0xc1c] sm:$0xf]
      %v604 = vld [vmem:[%s499 + $0xc20] sm:$0xf]
      %v605 = vld [vmem:[%s499 + $0xc24] sm:$0xf]
      %v606 = vld [vmem:[%s499 + $0xc28] sm:$0xf]
      %v607 = vld [vmem:[%s499 + $0xc2c] sm:$0xf]
      %v608 = vld [vmem:[%s499 + $0xc30] sm:$0xf]
      %v609 = vld [vmem:[%s499 + $0xc34] sm:$0xf]
      %v610 = vld [vmem:[%s499 + $0xc38] sm:$0xf]
      %v611 = vld [vmem:[%s499 + $0xc3c] sm:$0xf]
      %v612 = vld [vmem:[%s499 + $0xe00] sm:$0xf]
      %v613 = vld [vmem:[%s499 + $0xe04] sm:$0xf]
      %v614 = vld [vmem:[%s499 + $0xe08] sm:$0xf]
      %v615 = vld [vmem:[%s499 + $0xe0c] sm:$0xf]
      %v616 = vld [vmem:[%s499 + $0xe10] sm:$0xf]
      %v617 = vld [vmem:[%s499 + $0xe14] sm:$0xf]
      %v618 = vld [vmem:[%s499 + $0xe18] sm:$0xf]
      %v619 = vld [vmem:[%s499 + $0xe1c] sm:$0xf]
      %v620 = vld [vmem:[%s499 + $0xe20] sm:$0xf]
      %v621 = vld [vmem:[%s499 + $0xe24] sm:$0xf]
      %v622 = vld [vmem:[%s499 + $0xe28] sm:$0xf]
      %v623 = vld [vmem:[%s499 + $0xe2c] sm:$0xf]
      %v624 = vld [vmem:[%s499 + $0xe30] sm:$0xf]
      %v625 = vld [vmem:[%s499 + $0xe34] sm:$0xf]
      %v626 = vld [vmem:[%s499 + $0xe38] sm:$0xf]
      %v627 = vld [vmem:[%s499 + $0xe3c] sm:$0xf]
      %629 = vset.pattern.permute.xlu0 0
      %630 = vperm.xlu0 %629, %v500
      %v631 = vpop.permute.xlu0 %630
      %v634 = vunpack.c.l.s4 839922192
      %v635 = vunpack.c.0.s8 %v634
      %v636 = vlaneseq
      %v637 = vshrl.u32 %v636, 7
      %v638 = vsub.s32 %v635, %v637
      %v639 = vrot.slane %v631, %v638
      %641 = vset.pattern.permute.xlu0 0
      %642 = vperm.xlu0 %641, %v501
      %v643 = vpop.permute.xlu0 %642
      %v646 = vunpack.c.l.s4 839922192
      %v647 = vunpack.c.0.s8 %v646
      %v648 = vlaneseq
      %v649 = vshrl.u32 %v648, 7
      %v650 = vsub.s32 %v647, %v649
      %v651 = vrot.slane %v643, %v650
      %653 = vset.pattern.permute.xlu0 0
      %654 = vperm.xlu0 %653, %v502
      %v655 = vpop.permute.xlu0 %654
      %v658 = vunpack.c.l.s4 839922192
      %v659 = vunpack.c.0.s8 %v658
      %v660 = vlaneseq
      %v661 = vshrl.u32 %v660, 7
      %v662 = vsub.s32 %v659, %v661
      %v663 = vrot.slane %v655, %v662
      %665 = vset.pattern.permute.xlu0 0
      %666 = vperm.xlu0 %665, %v503
      %v667 = vpop.permute.xlu0 %666
      %v670 = vunpack.c.l.s4 839922192
      %v671 = vunpack.c.0.s8 %v670
      %v672 = vlaneseq
      %v673 = vshrl.u32 %v672, 7
      %v674 = vsub.s32 %v671, %v673
      %v675 = vrot.slane %v667, %v674
      %677 = vset.pattern.permute.xlu0 0
      %678 = vperm.xlu0 %677, %v504
      %v679 = vpop.permute.xlu0 %678
      %v682 = vunpack.c.l.s4 839922192
      %v683 = vunpack.c.0.s8 %v682
      %v684 = vlaneseq
      %v685 = vshrl.u32 %v684, 7
      %v686 = vsub.s32 %v683, %v685
      %v687 = vrot.slane %v679, %v686
      %689 = vset.pattern.permute.xlu0 0
      %690 = vperm.xlu0 %689, %v505
      %v691 = vpop.permute.xlu0 %690
      %v694 = vunpack.c.l.s4 839922192
      %v695 = vunpack.c.0.s8 %v694
      %v696 = vlaneseq
      %v697 = vshrl.u32 %v696, 7
      %v698 = vsub.s32 %v695, %v697
      %v699 = vrot.slane %v691, %v698
      %701 = vset.pattern.permute.xlu0 0
      %702 = vperm.xlu0 %701, %v506
      %v703 = vpop.permute.xlu0 %702
      %v706 = vunpack.c.l.s4 839922192
      %v707 = vunpack.c.0.s8 %v706
      %v708 = vlaneseq
      %v709 = vshrl.u32 %v708, 7
      %v710 = vsub.s32 %v707, %v709
      %v711 = vrot.slane %v703, %v710
      %713 = vset.pattern.permute.xlu0 0
      %714 = vperm.xlu0 %713, %v507
      %v715 = vpop.permute.xlu0 %714
      %v718 = vunpack.c.l.s4 839922192
      %v719 = vunpack.c.0.s8 %v718
      %v720 = vlaneseq
      %v721 = vshrl.u32 %v720, 7
      %v722 = vsub.s32 %v719, %v721
      %v723 = vrot.slane %v715, %v722
      %725 = vset.pattern.permute.xlu0 0
      %726 = vperm.xlu0 %725, %v508
      %v727 = vpop.permute.xlu0 %726
      %v730 = vunpack.c.l.s4 839922192
      %v731 = vunpack.c.0.s8 %v730
      %v732 = vlaneseq
      %v733 = vshrl.u32 %v732, 7
      %v734 = vsub.s32 %v731, %v733
      %v735 = vrot.slane %v727, %v734
      %737 = vset.pattern.permute.xlu0 0
      %738 = vperm.xlu0 %737, %v509
      %v739 = vpop.permute.xlu0 %738
      %v742 = vunpack.c.l.s4 839922192
      %v743 = vunpack.c.0.s8 %v742
      %v744 = vlaneseq
      %v745 = vshrl.u32 %v744, 7
      %v746 = vsub.s32 %v743, %v745
      %v747 = vrot.slane %v739, %v746
      %749 = vset.pattern.permute.xlu0 0
      %750 = vperm.xlu0 %749, %v510
      %v751 = vpop.permute.xlu0 %750
      %v754 = vunpack.c.l.s4 839922192
      %v755 = vunpack.c.0.s8 %v754
      %v756 = vlaneseq
      %v757 = vshrl.u32 %v756, 7
      %v758 = vsub.s32 %v755, %v757
      %v759 = vrot.slane %v751, %v758
      %761 = vset.pattern.permute.xlu0 0
      %762 = vperm.xlu0 %761, %v511
      %v763 = vpop.permute.xlu0 %762
      %v766 = vunpack.c.l.s4 839922192
      %v767 = vunpack.c.0.s8 %v766
      %v768 = vlaneseq
      %v769 = vshrl.u32 %v768, 7
      %v770 = vsub.s32 %v767, %v769
      %v771 = vrot.slane %v763, %v770
      %773 = vset.pattern.permute.xlu0 0
      %774 = vperm.xlu0 %773, %v512
      %v775 = vpop.permute.xlu0 %774
      %v778 = vunpack.c.l.s4 839922192
      %v779 = vunpack.c.0.s8 %v778
      %v780 = vlaneseq
      %v781 = vshrl.u32 %v780, 7
      %v782 = vsub.s32 %v779, %v781
      %v783 = vrot.slane %v775, %v782
      %785 = vset.pattern.permute.xlu0 0
      %786 = vperm.xlu0 %785, %v513
      %v787 = vpop.permute.xlu0 %786
      %v790 = vunpack.c.l.s4 839922192
      %v791 = vunpack.c.0.s8 %v790
      %v792 = vlaneseq
      %v793 = vshrl.u32 %v792, 7
      %v794 = vsub.s32 %v791, %v793
      %v795 = vrot.slane %v787, %v794
      %797 = vset.pattern.permute.xlu0 0
      %798 = vperm.xlu0 %797, %v514
      %v799 = vpop.permute.xlu0 %798
      %v802 = vunpack.c.l.s4 839922192
      %v803 = vunpack.c.0.s8 %v802
      %v804 = vlaneseq
      %v805 = vshrl.u32 %v804, 7
      %v806 = vsub.s32 %v803, %v805
      %v807 = vrot.slane %v799, %v806
      %809 = vset.pattern.permute.xlu0 0
      %810 = vperm.xlu0 %809, %v515
      %v811 = vpop.permute.xlu0 %810
      %v814 = vunpack.c.l.s4 839922192
      %v815 = vunpack.c.0.s8 %v814
      %v816 = vlaneseq
      %v817 = vshrl.u32 %v816, 7
      %v818 = vsub.s32 %v815, %v817
      %v819 = vrot.slane %v811, %v818
      %821 = vset.pattern.permute.xlu0 0
      %822 = vperm.xlu0 %821, %v516
      %v823 = vpop.permute.xlu0 %822
      %v826 = vunpack.c.l.s4 839922192
      %v827 = vunpack.c.0.s8 %v826
      %v828 = vlaneseq
      %v829 = vshrl.u32 %v828, 7
      %v830 = vsub.s32 %v827, %v829
      %v831 = vrot.slane %v823, %v830
      %833 = vset.pattern.permute.xlu0 0
      %834 = vperm.xlu0 %833, %v517
      %v835 = vpop.permute.xlu0 %834
      %v838 = vunpack.c.l.s4 839922192
      %v839 = vunpack.c.0.s8 %v838
      %v840 = vlaneseq
      %v841 = vshrl.u32 %v840, 7
      %v842 = vsub.s32 %v839, %v841
      %v843 = vrot.slane %v835, %v842
      %845 = vset.pattern.permute.xlu0 0
      %846 = vperm.xlu0 %845, %v518
      %v847 = vpop.permute.xlu0 %846
      %v850 = vunpack.c.l.s4 839922192
      %v851 = vunpack.c.0.s8 %v850
      %v852 = vlaneseq
      %v853 = vshrl.u32 %v852, 7
      %v854 = vsub.s32 %v851, %v853
      %v855 = vrot.slane %v847, %v854
      %857 = vset.pattern.permute.xlu0 0
      %858 = vperm.xlu0 %857, %v519
      %v859 = vpop.permute.xlu0 %858
      %v862 = vunpack.c.l.s4 839922192
      %v863 = vunpack.c.0.s8 %v862
      %v864 = vlaneseq
      %v865 = vshrl.u32 %v864, 7
      %v866 = vsub.s32 %v863, %v865
      %v867 = vrot.slane %v859, %v866
      %869 = vset.pattern.permute.xlu0 0
      %870 = vperm.xlu0 %869, %v520
      %v871 = vpop.permute.xlu0 %870
      %v874 = vunpack.c.l.s4 839922192
      %v875 = vunpack.c.0.s8 %v874
      %v876 = vlaneseq
      %v877 = vshrl.u32 %v876, 7
      %v878 = vsub.s32 %v875, %v877
      %v879 = vrot.slane %v871, %v878
      %881 = vset.pattern.permute.xlu0 0
      %882 = vperm.xlu0 %881, %v521
      %v883 = vpop.permute.xlu0 %882
      %v886 = vunpack.c.l.s4 839922192
      %v887 = vunpack.c.0.s8 %v886
      %v888 = vlaneseq
      %v889 = vshrl.u32 %v888, 7
      %v890 = vsub.s32 %v887, %v889
      %v891 = vrot.slane %v883, %v890
      %893 = vset.pattern.permute.xlu0 0
      %894 = vperm.xlu0 %893, %v522
      %v895 = vpop.permute.xlu0 %894
      %v898 = vunpack.c.l.s4 839922192
      %v899 = vunpack.c.0.s8 %v898
      %v900 = vlaneseq
      %v901 = vshrl.u32 %v900, 7
      %v902 = vsub.s32 %v899, %v901
      %v903 = vrot.slane %v895, %v902
      %905 = vset.pattern.permute.xlu0 0
      %906 = vperm.xlu0 %905, %v523
      %v907 = vpop.permute.xlu0 %906
      %v910 = vunpack.c.l.s4 839922192
      %v911 = vunpack.c.0.s8 %v910
      %v912 = vlaneseq
      %v913 = vshrl.u32 %v912, 7
      %v914 = vsub.s32 %v911, %v913
      %v915 = vrot.slane %v907, %v914
      %917 = vset.pattern.permute.xlu0 0
      %918 = vperm.xlu0 %917, %v524
      %v919 = vpop.permute.xlu0 %918
      %v922 = vunpack.c.l.s4 839922192
      %v923 = vunpack.c.0.s8 %v922
      %v924 = vlaneseq
      %v925 = vshrl.u32 %v924, 7
      %v926 = vsub.s32 %v923, %v925
      %v927 = vrot.slane %v919, %v926
      %929 = vset.pattern.permute.xlu0 0
      %930 = vperm.xlu0 %929, %v525
      %v931 = vpop.permute.xlu0 %930
      %v934 = vunpack.c.l.s4 839922192
      %v935 = vunpack.c.0.s8 %v934
      %v936 = vlaneseq
      %v937 = vshrl.u32 %v936, 7
      %v938 = vsub.s32 %v935, %v937
      %v939 = vrot.slane %v931, %v938
      %941 = vset.pattern.permute.xlu0 0
      %942 = vperm.xlu0 %941, %v526
      %v943 = vpop.permute.xlu0 %942
      %v946 = vunpack.c.l.s4 839922192
      %v947 = vunpack.c.0.s8 %v946
      %v948 = vlaneseq
      %v949 = vshrl.u32 %v948, 7
      %v950 = vsub.s32 %v947, %v949
      %v951 = vrot.slane %v943, %v950
      %953 = vset.pattern.permute.xlu0 0
      %954 = vperm.xlu0 %953, %v527
      %v955 = vpop.permute.xlu0 %954
      %v958 = vunpack.c.l.s4 839922192
      %v959 = vunpack.c.0.s8 %v958
      %v960 = vlaneseq
      %v961 = vshrl.u32 %v960, 7
      %v962 = vsub.s32 %v959, %v961
      %v963 = vrot.slane %v955, %v962
      %965 = vset.pattern.permute.xlu0 0
      %966 = vperm.xlu0 %965, %v528
      %v967 = vpop.permute.xlu0 %966
      %v970 = vunpack.c.l.s4 839922192
      %v971 = vunpack.c.0.s8 %v970
      %v972 = vlaneseq
      %v973 = vshrl.u32 %v972, 7
      %v974 = vsub.s32 %v971, %v973
      %v975 = vrot.slane %v967, %v974
      %977 = vset.pattern.permute.xlu0 0
      %978 = vperm.xlu0 %977, %v529
      %v979 = vpop.permute.xlu0 %978
      %v982 = vunpack.c.l.s4 839922192
      %v983 = vunpack.c.0.s8 %v982
      %v984 = vlaneseq
      %v985 = vshrl.u32 %v984, 7
      %v986 = vsub.s32 %v983, %v985
      %v987 = vrot.slane %v979, %v986
      %989 = vset.pattern.permute.xlu0 0
      %990 = vperm.xlu0 %989, %v530
      %v991 = vpop.permute.xlu0 %990
      %v994 = vunpack.c.l.s4 839922192
      %v995 = vunpack.c.0.s8 %v994
      %v996 = vlaneseq
      %v997 = vshrl.u32 %v996, 7
      %v998 = vsub.s32 %v995, %v997
      %v999 = vrot.slane %v991, %v998
      %1001 = vset.pattern.permute.xlu0 0
      %1002 = vperm.xlu0 %1001, %v531
      %v1003 = vpop.permute.xlu0 %1002
      %v1006 = vunpack.c.l.s4 839922192
      %v1007 = vunpack.c.0.s8 %v1006
      %v1008 = vlaneseq
      %v1009 = vshrl.u32 %v1008, 7
      %v1010 = vsub.s32 %v1007, %v1009
      %v1011 = vrot.slane %v1003, %v1010
      %1013 = vset.pattern.permute.xlu0 0
      %1014 = vperm.xlu0 %1013, %v532
      %v1015 = vpop.permute.xlu0 %1014
      %v1018 = vunpack.c.l.s4 839922192
      %v1019 = vunpack.c.0.s8 %v1018
      %v1020 = vlaneseq
      %v1021 = vshrl.u32 %v1020, 7
      %v1022 = vsub.s32 %v1019, %v1021
      %v1023 = vrot.slane %v1015, %v1022
      %1025 = vset.pattern.permute.xlu0 0
      %1026 = vperm.xlu0 %1025, %v533
      %v1027 = vpop.permute.xlu0 %1026
      %v1030 = vunpack.c.l.s4 839922192
      %v1031 = vunpack.c.0.s8 %v1030
      %v1032 = vlaneseq
      %v1033 = vshrl.u32 %v1032, 7
      %v1034 = vsub.s32 %v1031, %v1033
      %v1035 = vrot.slane %v1027, %v1034
      %1037 = vset.pattern.permute.xlu0 0
      %1038 = vperm.xlu0 %1037, %v534
      %v1039 = vpop.permute.xlu0 %1038
      %v1042 = vunpack.c.l.s4 839922192
      %v1043 = vunpack.c.0.s8 %v1042
      %v1044 = vlaneseq
      %v1045 = vshrl.u32 %v1044, 7
      %v1046 = vsub.s32 %v1043, %v1045
      %v1047 = vrot.slane %v1039, %v1046
      %1049 = vset.pattern.permute.xlu0 0
      %1050 = vperm.xlu0 %1049, %v535
      %v1051 = vpop.permute.xlu0 %1050
      %v1054 = vunpack.c.l.s4 839922192
      %v1055 = vunpack.c.0.s8 %v1054
      %v1056 = vlaneseq
      %v1057 = vshrl.u32 %v1056, 7
      %v1058 = vsub.s32 %v1055, %v1057
      %v1059 = vrot.slane %v1051, %v1058
      %1061 = vset.pattern.permute.xlu0 0
      %1062 = vperm.xlu0 %1061, %v536
      %v1063 = vpop.permute.xlu0 %1062
      %v1066 = vunpack.c.l.s4 839922192
      %v1067 = vunpack.c.0.s8 %v1066
      %v1068 = vlaneseq
      %v1069 = vshrl.u32 %v1068, 7
      %v1070 = vsub.s32 %v1067, %v1069
      %v1071 = vrot.slane %v1063, %v1070
      %1073 = vset.pattern.permute.xlu0 0
      %1074 = vperm.xlu0 %1073, %v537
      %v1075 = vpop.permute.xlu0 %1074
      %v1078 = vunpack.c.l.s4 839922192
      %v1079 = vunpack.c.0.s8 %v1078
      %v1080 = vlaneseq
      %v1081 = vshrl.u32 %v1080, 7
      %v1082 = vsub.s32 %v1079, %v1081
      %v1083 = vrot.slane %v1075, %v1082
      %1085 = vset.pattern.permute.xlu0 0
      %1086 = vperm.xlu0 %1085, %v538
      %v1087 = vpop.permute.xlu0 %1086
      %v1090 = vunpack.c.l.s4 839922192
      %v1091 = vunpack.c.0.s8 %v1090
      %v1092 = vlaneseq
      %v1093 = vshrl.u32 %v1092, 7
      %v1094 = vsub.s32 %v1091, %v1093
      %v1095 = vrot.slane %v1087, %v1094
      %1097 = vset.pattern.permute.xlu0 0
      %1098 = vperm.xlu0 %1097, %v539
      %v1099 = vpop.permute.xlu0 %1098
      %v1102 = vunpack.c.l.s4 839922192
      %v1103 = vunpack.c.0.s8 %v1102
      %v1104 = vlaneseq
      %v1105 = vshrl.u32 %v1104, 7
      %v1106 = vsub.s32 %v1103, %v1105
      %v1107 = vrot.slane %v1099, %v1106
      %1109 = vset.pattern.permute.xlu0 0
      %1110 = vperm.xlu0 %1109, %v540
      %v1111 = vpop.permute.xlu0 %1110
      %v1114 = vunpack.c.l.s4 839922192
      %v1115 = vunpack.c.0.s8 %v1114
      %v1116 = vlaneseq
      %v1117 = vshrl.u32 %v1116, 7
      %v1118 = vsub.s32 %v1115, %v1117
      %v1119 = vrot.slane %v1111, %v1118
      %1121 = vset.pattern.permute.xlu0 0
      %1122 = vperm.xlu0 %1121, %v541
      %v1123 = vpop.permute.xlu0 %1122
      %v1126 = vunpack.c.l.s4 839922192
      %v1127 = vunpack.c.0.s8 %v1126
      %v1128 = vlaneseq
      %v1129 = vshrl.u32 %v1128, 7
      %v1130 = vsub.s32 %v1127, %v1129
      %v1131 = vrot.slane %v1123, %v1130
      %1133 = vset.pattern.permute.xlu0 0
      %1134 = vperm.xlu0 %1133, %v542
      %v1135 = vpop.permute.xlu0 %1134
      %v1138 = vunpack.c.l.s4 839922192
      %v1139 = vunpack.c.0.s8 %v1138
      %v1140 = vlaneseq
      %v1141 = vshrl.u32 %v1140, 7
      %v1142 = vsub.s32 %v1139, %v1141
      %v1143 = vrot.slane %v1135, %v1142
      %1145 = vset.pattern.permute.xlu0 0
      %1146 = vperm.xlu0 %1145, %v543
      %v1147 = vpop.permute.xlu0 %1146
      %v1150 = vunpack.c.l.s4 839922192
      %v1151 = vunpack.c.0.s8 %v1150
      %v1152 = vlaneseq
      %v1153 = vshrl.u32 %v1152, 7
      %v1154 = vsub.s32 %v1151, %v1153
      %v1155 = vrot.slane %v1147, %v1154
      %1157 = vset.pattern.permute.xlu0 0
      %1158 = vperm.xlu0 %1157, %v544
      %v1159 = vpop.permute.xlu0 %1158
      %v1162 = vunpack.c.l.s4 839922192
      %v1163 = vunpack.c.0.s8 %v1162
      %v1164 = vlaneseq
      %v1165 = vshrl.u32 %v1164, 7
      %v1166 = vsub.s32 %v1163, %v1165
      %v1167 = vrot.slane %v1159, %v1166
      %1169 = vset.pattern.permute.xlu0 0
      %1170 = vperm.xlu0 %1169, %v545
      %v1171 = vpop.permute.xlu0 %1170
      %v1174 = vunpack.c.l.s4 839922192
      %v1175 = vunpack.c.0.s8 %v1174
      %v1176 = vlaneseq
      %v1177 = vshrl.u32 %v1176, 7
      %v1178 = vsub.s32 %v1175, %v1177
      %v1179 = vrot.slane %v1171, %v1178
      %1181 = vset.pattern.permute.xlu0 0
      %1182 = vperm.xlu0 %1181, %v546
      %v1183 = vpop.permute.xlu0 %1182
      %v1186 = vunpack.c.l.s4 839922192
      %v1187 = vunpack.c.0.s8 %v1186
      %v1188 = vlaneseq
      %v1189 = vshrl.u32 %v1188, 7
      %v1190 = vsub.s32 %v1187, %v1189
      %v1191 = vrot.slane %v1183, %v1190
      %1193 = vset.pattern.permute.xlu0 0
      %1194 = vperm.xlu0 %1193, %v547
      %v1195 = vpop.permute.xlu0 %1194
      %v1198 = vunpack.c.l.s4 839922192
      %v1199 = vunpack.c.0.s8 %v1198
      %v1200 = vlaneseq
      %v1201 = vshrl.u32 %v1200, 7
      %v1202 = vsub.s32 %v1199, %v1201
      %v1203 = vrot.slane %v1195, %v1202
      %1205 = vset.pattern.permute.xlu0 0
      %1206 = vperm.xlu0 %1205, %v548
      %v1207 = vpop.permute.xlu0 %1206
      %v1210 = vunpack.c.l.s4 839922192
      %v1211 = vunpack.c.0.s8 %v1210
      %v1212 = vlaneseq
      %v1213 = vshrl.u32 %v1212, 7
      %v1214 = vsub.s32 %v1211, %v1213
      %v1215 = vrot.slane %v1207, %v1214
      %1217 = vset.pattern.permute.xlu0 0
      %1218 = vperm.xlu0 %1217, %v549
      %v1219 = vpop.permute.xlu0 %1218
      %v1222 = vunpack.c.l.s4 839922192
      %v1223 = vunpack.c.0.s8 %v1222
      %v1224 = vlaneseq
      %v1225 = vshrl.u32 %v1224, 7
      %v1226 = vsub.s32 %v1223, %v1225
      %v1227 = vrot.slane %v1219, %v1226
      %1229 = vset.pattern.permute.xlu0 0
      %1230 = vperm.xlu0 %1229, %v550
      %v1231 = vpop.permute.xlu0 %1230
      %v1234 = vunpack.c.l.s4 839922192
      %v1235 = vunpack.c.0.s8 %v1234
      %v1236 = vlaneseq
      %v1237 = vshrl.u32 %v1236, 7
      %v1238 = vsub.s32 %v1235, %v1237
      %v1239 = vrot.slane %v1231, %v1238
      %1241 = vset.pattern.permute.xlu0 0
      %1242 = vperm.xlu0 %1241, %v551
      %v1243 = vpop.permute.xlu0 %1242
      %v1246 = vunpack.c.l.s4 839922192
      %v1247 = vunpack.c.0.s8 %v1246
      %v1248 = vlaneseq
      %v1249 = vshrl.u32 %v1248, 7
      %v1250 = vsub.s32 %v1247, %v1249
      %v1251 = vrot.slane %v1243, %v1250
      %1253 = vset.pattern.permute.xlu0 0
      %1254 = vperm.xlu0 %1253, %v552
      %v1255 = vpop.permute.xlu0 %1254
      %v1258 = vunpack.c.l.s4 839922192
      %v1259 = vunpack.c.0.s8 %v1258
      %v1260 = vlaneseq
      %v1261 = vshrl.u32 %v1260, 7
      %v1262 = vsub.s32 %v1259, %v1261
      %v1263 = vrot.slane %v1255, %v1262
      %1265 = vset.pattern.permute.xlu0 0
      %1266 = vperm.xlu0 %1265, %v553
      %v1267 = vpop.permute.xlu0 %1266
      %v1270 = vunpack.c.l.s4 839922192
      %v1271 = vunpack.c.0.s8 %v1270
      %v1272 = vlaneseq
      %v1273 = vshrl.u32 %v1272, 7
      %v1274 = vsub.s32 %v1271, %v1273
      %v1275 = vrot.slane %v1267, %v1274
      %1277 = vset.pattern.permute.xlu0 0
      %1278 = vperm.xlu0 %1277, %v554
      %v1279 = vpop.permute.xlu0 %1278
      %v1282 = vunpack.c.l.s4 839922192
      %v1283 = vunpack.c.0.s8 %v1282
      %v1284 = vlaneseq
      %v1285 = vshrl.u32 %v1284, 7
      %v1286 = vsub.s32 %v1283, %v1285
      %v1287 = vrot.slane %v1279, %v1286
      %1289 = vset.pattern.permute.xlu0 0
      %1290 = vperm.xlu0 %1289, %v555
      %v1291 = vpop.permute.xlu0 %1290
      %v1294 = vunpack.c.l.s4 839922192
      %v1295 = vunpack.c.0.s8 %v1294
      %v1296 = vlaneseq
      %v1297 = vshrl.u32 %v1296, 7
      %v1298 = vsub.s32 %v1295, %v1297
      %v1299 = vrot.slane %v1291, %v1298
      %1301 = vset.pattern.permute.xlu0 0
      %1302 = vperm.xlu0 %1301, %v556
      %v1303 = vpop.permute.xlu0 %1302
      %v1306 = vunpack.c.l.s4 839922192
      %v1307 = vunpack.c.0.s8 %v1306
      %v1308 = vlaneseq
      %v1309 = vshrl.u32 %v1308, 7
      %v1310 = vsub.s32 %v1307, %v1309
      %v1311 = vrot.slane %v1303, %v1310
      %1313 = vset.pattern.permute.xlu0 0
      %1314 = vperm.xlu0 %1313, %v557
      %v1315 = vpop.permute.xlu0 %1314
      %v1318 = vunpack.c.l.s4 839922192
      %v1319 = vunpack.c.0.s8 %v1318
      %v1320 = vlaneseq
      %v1321 = vshrl.u32 %v1320, 7
      %v1322 = vsub.s32 %v1319, %v1321
      %v1323 = vrot.slane %v1315, %v1322
      %1325 = vset.pattern.permute.xlu0 0
      %1326 = vperm.xlu0 %1325, %v558
      %v1327 = vpop.permute.xlu0 %1326
      %v1330 = vunpack.c.l.s4 839922192
      %v1331 = vunpack.c.0.s8 %v1330
      %v1332 = vlaneseq
      %v1333 = vshrl.u32 %v1332, 7
      %v1334 = vsub.s32 %v1331, %v1333
      %v1335 = vrot.slane %v1327, %v1334
      %1337 = vset.pattern.permute.xlu0 0
      %1338 = vperm.xlu0 %1337, %v559
      %v1339 = vpop.permute.xlu0 %1338
      %v1342 = vunpack.c.l.s4 839922192
      %v1343 = vunpack.c.0.s8 %v1342
      %v1344 = vlaneseq
      %v1345 = vshrl.u32 %v1344, 7
      %v1346 = vsub.s32 %v1343, %v1345
      %v1347 = vrot.slane %v1339, %v1346
      %1349 = vset.pattern.permute.xlu0 0
      %1350 = vperm.xlu0 %1349, %v560
      %v1351 = vpop.permute.xlu0 %1350
      %v1354 = vunpack.c.l.s4 839922192
      %v1355 = vunpack.c.0.s8 %v1354
      %v1356 = vlaneseq
      %v1357 = vshrl.u32 %v1356, 7
      %v1358 = vsub.s32 %v1355, %v1357
      %v1359 = vrot.slane %v1351, %v1358
      %1361 = vset.pattern.permute.xlu0 0
      %1362 = vperm.xlu0 %1361, %v561
      %v1363 = vpop.permute.xlu0 %1362
      %v1366 = vunpack.c.l.s4 839922192
      %v1367 = vunpack.c.0.s8 %v1366
      %v1368 = vlaneseq
      %v1369 = vshrl.u32 %v1368, 7
      %v1370 = vsub.s32 %v1367, %v1369
      %v1371 = vrot.slane %v1363, %v1370
      %1373 = vset.pattern.permute.xlu0 0
      %1374 = vperm.xlu0 %1373, %v562
      %v1375 = vpop.permute.xlu0 %1374
      %v1378 = vunpack.c.l.s4 839922192
      %v1379 = vunpack.c.0.s8 %v1378
      %v1380 = vlaneseq
      %v1381 = vshrl.u32 %v1380, 7
      %v1382 = vsub.s32 %v1379, %v1381
      %v1383 = vrot.slane %v1375, %v1382
      %1385 = vset.pattern.permute.xlu0 0
      %1386 = vperm.xlu0 %1385, %v563
      %v1387 = vpop.permute.xlu0 %1386
      %v1390 = vunpack.c.l.s4 839922192
      %v1391 = vunpack.c.0.s8 %v1390
      %v1392 = vlaneseq
      %v1393 = vshrl.u32 %v1392, 7
      %v1394 = vsub.s32 %v1391, %v1393
      %v1395 = vrot.slane %v1387, %v1394
      %1397 = vset.pattern.permute.xlu0 0
      %1398 = vperm.xlu0 %1397, %v564
      %v1399 = vpop.permute.xlu0 %1398
      %v1402 = vunpack.c.l.s4 839922192
      %v1403 = vunpack.c.0.s8 %v1402
      %v1404 = vlaneseq
      %v1405 = vshrl.u32 %v1404, 7
      %v1406 = vsub.s32 %v1403, %v1405
      %v1407 = vrot.slane %v1399, %v1406
      %1409 = vset.pattern.permute.xlu0 0
      %1410 = vperm.xlu0 %1409, %v565
      %v1411 = vpop.permute.xlu0 %1410
      %v1414 = vunpack.c.l.s4 839922192
      %v1415 = vunpack.c.0.s8 %v1414
      %v1416 = vlaneseq
      %v1417 = vshrl.u32 %v1416, 7
      %v1418 = vsub.s32 %v1415, %v1417
      %v1419 = vrot.slane %v1411, %v1418
      %1421 = vset.pattern.permute.xlu0 0
      %1422 = vperm.xlu0 %1421, %v566
      %v1423 = vpop.permute.xlu0 %1422
      %v1426 = vunpack.c.l.s4 839922192
      %v1427 = vunpack.c.0.s8 %v1426
      %v1428 = vlaneseq
      %v1429 = vshrl.u32 %v1428, 7
      %v1430 = vsub.s32 %v1427, %v1429
      %v1431 = vrot.slane %v1423, %v1430
      %1433 = vset.pattern.permute.xlu0 0
      %1434 = vperm.xlu0 %1433, %v567
      %v1435 = vpop.permute.xlu0 %1434
      %v1438 = vunpack.c.l.s4 839922192
      %v1439 = vunpack.c.0.s8 %v1438
      %v1440 = vlaneseq
      %v1441 = vshrl.u32 %v1440, 7
      %v1442 = vsub.s32 %v1439, %v1441
      %v1443 = vrot.slane %v1435, %v1442
      %1445 = vset.pattern.permute.xlu0 0
      %1446 = vperm.xlu0 %1445, %v568
      %v1447 = vpop.permute.xlu0 %1446
      %v1450 = vunpack.c.l.s4 839922192
      %v1451 = vunpack.c.0.s8 %v1450
      %v1452 = vlaneseq
      %v1453 = vshrl.u32 %v1452, 7
      %v1454 = vsub.s32 %v1451, %v1453
      %v1455 = vrot.slane %v1447, %v1454
      %1457 = vset.pattern.permute.xlu0 0
      %1458 = vperm.xlu0 %1457, %v569
      %v1459 = vpop.permute.xlu0 %1458
      %v1462 = vunpack.c.l.s4 839922192
      %v1463 = vunpack.c.0.s8 %v1462
      %v1464 = vlaneseq
      %v1465 = vshrl.u32 %v1464, 7
      %v1466 = vsub.s32 %v1463, %v1465
      %v1467 = vrot.slane %v1459, %v1466
      %1469 = vset.pattern.permute.xlu0 0
      %1470 = vperm.xlu0 %1469, %v570
      %v1471 = vpop.permute.xlu0 %1470
      %v1474 = vunpack.c.l.s4 839922192
      %v1475 = vunpack.c.0.s8 %v1474
      %v1476 = vlaneseq
      %v1477 = vshrl.u32 %v1476, 7
      %v1478 = vsub.s32 %v1475, %v1477
      %v1479 = vrot.slane %v1471, %v1478
      %1481 = vset.pattern.permute.xlu0 0
      %1482 = vperm.xlu0 %1481, %v571
      %v1483 = vpop.permute.xlu0 %1482
      %v1486 = vunpack.c.l.s4 839922192
      %v1487 = vunpack.c.0.s8 %v1486
      %v1488 = vlaneseq
      %v1489 = vshrl.u32 %v1488, 7
      %v1490 = vsub.s32 %v1487, %v1489
      %v1491 = vrot.slane %v1483, %v1490
      %1493 = vset.pattern.permute.xlu0 0
      %1494 = vperm.xlu0 %1493, %v572
      %v1495 = vpop.permute.xlu0 %1494
      %v1498 = vunpack.c.l.s4 839922192
      %v1499 = vunpack.c.0.s8 %v1498
      %v1500 = vlaneseq
      %v1501 = vshrl.u32 %v1500, 7
      %v1502 = vsub.s32 %v1499, %v1501
      %v1503 = vrot.slane %v1495, %v1502
      %1505 = vset.pattern.permute.xlu0 0
      %1506 = vperm.xlu0 %1505, %v573
      %v1507 = vpop.permute.xlu0 %1506
      %v1510 = vunpack.c.l.s4 839922192
      %v1511 = vunpack.c.0.s8 %v1510
      %v1512 = vlaneseq
      %v1513 = vshrl.u32 %v1512, 7
      %v1514 = vsub.s32 %v1511, %v1513
      %v1515 = vrot.slane %v1507, %v1514
      %1517 = vset.pattern.permute.xlu0 0
      %1518 = vperm.xlu0 %1517, %v574
      %v1519 = vpop.permute.xlu0 %1518
      %v1522 = vunpack.c.l.s4 839922192
      %v1523 = vunpack.c.0.s8 %v1522
      %v1524 = vlaneseq
      %v1525 = vshrl.u32 %v1524, 7
      %v1526 = vsub.s32 %v1523, %v1525
      %v1527 = vrot.slane %v1519, %v1526
      %1529 = vset.pattern.permute.xlu0 0
      %1530 = vperm.xlu0 %1529, %v575
      %v1531 = vpop.permute.xlu0 %1530
      %v1534 = vunpack.c.l.s4 839922192
      %v1535 = vunpack.c.0.s8 %v1534
      %v1536 = vlaneseq
      %v1537 = vshrl.u32 %v1536, 7
      %v1538 = vsub.s32 %v1535, %v1537
      %v1539 = vrot.slane %v1531, %v1538
      %1541 = vset.pattern.permute.xlu0 0
      %1542 = vperm.xlu0 %1541, %v576
      %v1543 = vpop.permute.xlu0 %1542
      %v1546 = vunpack.c.l.s4 839922192
      %v1547 = vunpack.c.0.s8 %v1546
      %v1548 = vlaneseq
      %v1549 = vshrl.u32 %v1548, 7
      %v1550 = vsub.s32 %v1547, %v1549
      %v1551 = vrot.slane %v1543, %v1550
      %1553 = vset.pattern.permute.xlu0 0
      %1554 = vperm.xlu0 %1553, %v577
      %v1555 = vpop.permute.xlu0 %1554
      %v1558 = vunpack.c.l.s4 839922192
      %v1559 = vunpack.c.0.s8 %v1558
      %v1560 = vlaneseq
      %v1561 = vshrl.u32 %v1560, 7
      %v1562 = vsub.s32 %v1559, %v1561
      %v1563 = vrot.slane %v1555, %v1562
      %1565 = vset.pattern.permute.xlu0 0
      %1566 = vperm.xlu0 %1565, %v578
      %v1567 = vpop.permute.xlu0 %1566
      %v1570 = vunpack.c.l.s4 839922192
      %v1571 = vunpack.c.0.s8 %v1570
      %v1572 = vlaneseq
      %v1573 = vshrl.u32 %v1572, 7
      %v1574 = vsub.s32 %v1571, %v1573
      %v1575 = vrot.slane %v1567, %v1574
      %1577 = vset.pattern.permute.xlu0 0
      %1578 = vperm.xlu0 %1577, %v579
      %v1579 = vpop.permute.xlu0 %1578
      %v1582 = vunpack.c.l.s4 839922192
      %v1583 = vunpack.c.0.s8 %v1582
      %v1584 = vlaneseq
      %v1585 = vshrl.u32 %v1584, 7
      %v1586 = vsub.s32 %v1583, %v1585
      %v1587 = vrot.slane %v1579, %v1586
      %1589 = vset.pattern.permute.xlu0 0
      %1590 = vperm.xlu0 %1589, %v580
      %v1591 = vpop.permute.xlu0 %1590
      %v1594 = vunpack.c.l.s4 839922192
      %v1595 = vunpack.c.0.s8 %v1594
      %v1596 = vlaneseq
      %v1597 = vshrl.u32 %v1596, 7
      %v1598 = vsub.s32 %v1595, %v1597
      %v1599 = vrot.slane %v1591, %v1598
      %1601 = vset.pattern.permute.xlu0 0
      %1602 = vperm.xlu0 %1601, %v581
      %v1603 = vpop.permute.xlu0 %1602
      %v1606 = vunpack.c.l.s4 839922192
      %v1607 = vunpack.c.0.s8 %v1606
      %v1608 = vlaneseq
      %v1609 = vshrl.u32 %v1608, 7
      %v1610 = vsub.s32 %v1607, %v1609
      %v1611 = vrot.slane %v1603, %v1610
      %1613 = vset.pattern.permute.xlu0 0
      %1614 = vperm.xlu0 %1613, %v582
      %v1615 = vpop.permute.xlu0 %1614
      %v1618 = vunpack.c.l.s4 839922192
      %v1619 = vunpack.c.0.s8 %v1618
      %v1620 = vlaneseq
      %v1621 = vshrl.u32 %v1620, 7
      %v1622 = vsub.s32 %v1619, %v1621
      %v1623 = vrot.slane %v1615, %v1622
      %1625 = vset.pattern.permute.xlu0 0
      %1626 = vperm.xlu0 %1625, %v583
      %v1627 = vpop.permute.xlu0 %1626
      %v1630 = vunpack.c.l.s4 839922192
      %v1631 = vunpack.c.0.s8 %v1630
      %v1632 = vlaneseq
      %v1633 = vshrl.u32 %v1632, 7
      %v1634 = vsub.s32 %v1631, %v1633
      %v1635 = vrot.slane %v1627, %v1634
      %1637 = vset.pattern.permute.xlu0 0
      %1638 = vperm.xlu0 %1637, %v584
      %v1639 = vpop.permute.xlu0 %1638
      %v1642 = vunpack.c.l.s4 839922192
      %v1643 = vunpack.c.0.s8 %v1642
      %v1644 = vlaneseq
      %v1645 = vshrl.u32 %v1644, 7
      %v1646 = vsub.s32 %v1643, %v1645
      %v1647 = vrot.slane %v1639, %v1646
      %1649 = vset.pattern.permute.xlu0 0
      %1650 = vperm.xlu0 %1649, %v585
      %v1651 = vpop.permute.xlu0 %1650
      %v1654 = vunpack.c.l.s4 839922192
      %v1655 = vunpack.c.0.s8 %v1654
      %v1656 = vlaneseq
      %v1657 = vshrl.u32 %v1656, 7
      %v1658 = vsub.s32 %v1655, %v1657
      %v1659 = vrot.slane %v1651, %v1658
      %1661 = vset.pattern.permute.xlu0 0
      %1662 = vperm.xlu0 %1661, %v586
      %v1663 = vpop.permute.xlu0 %1662
      %v1666 = vunpack.c.l.s4 839922192
      %v1667 = vunpack.c.0.s8 %v1666
      %v1668 = vlaneseq
      %v1669 = vshrl.u32 %v1668, 7
      %v1670 = vsub.s32 %v1667, %v1669
      %v1671 = vrot.slane %v1663, %v1670
      %1673 = vset.pattern.permute.xlu0 0
      %1674 = vperm.xlu0 %1673, %v587
      %v1675 = vpop.permute.xlu0 %1674
      %v1678 = vunpack.c.l.s4 839922192
      %v1679 = vunpack.c.0.s8 %v1678
      %v1680 = vlaneseq
      %v1681 = vshrl.u32 %v1680, 7
      %v1682 = vsub.s32 %v1679, %v1681
      %v1683 = vrot.slane %v1675, %v1682
      %1685 = vset.pattern.permute.xlu0 0
      %1686 = vperm.xlu0 %1685, %v588
      %v1687 = vpop.permute.xlu0 %1686
      %v1690 = vunpack.c.l.s4 839922192
      %v1691 = vunpack.c.0.s8 %v1690
      %v1692 = vlaneseq
      %v1693 = vshrl.u32 %v1692, 7
      %v1694 = vsub.s32 %v1691, %v1693
      %v1695 = vrot.slane %v1687, %v1694
      %1697 = vset.pattern.permute.xlu0 0
      %1698 = vperm.xlu0 %1697, %v589
      %v1699 = vpop.permute.xlu0 %1698
      %v1702 = vunpack.c.l.s4 839922192
      %v1703 = vunpack.c.0.s8 %v1702
      %v1704 = vlaneseq
      %v1705 = vshrl.u32 %v1704, 7
      %v1706 = vsub.s32 %v1703, %v1705
      %v1707 = vrot.slane %v1699, %v1706
      %1709 = vset.pattern.permute.xlu0 0
      %1710 = vperm.xlu0 %1709, %v590
      %v1711 = vpop.permute.xlu0 %1710
      %v1714 = vunpack.c.l.s4 839922192
      %v1715 = vunpack.c.0.s8 %v1714
      %v1716 = vlaneseq
      %v1717 = vshrl.u32 %v1716, 7
      %v1718 = vsub.s32 %v1715, %v1717
      %v1719 = vrot.slane %v1711, %v1718
      %1721 = vset.pattern.permute.xlu0 0
      %1722 = vperm.xlu0 %1721, %v591
      %v1723 = vpop.permute.xlu0 %1722
      %v1726 = vunpack.c.l.s4 839922192
      %v1727 = vunpack.c.0.s8 %v1726
      %v1728 = vlaneseq
      %v1729 = vshrl.u32 %v1728, 7
      %v1730 = vsub.s32 %v1727, %v1729
      %v1731 = vrot.slane %v1723, %v1730
      %1733 = vset.pattern.permute.xlu0 0
      %1734 = vperm.xlu0 %1733, %v592
      %v1735 = vpop.permute.xlu0 %1734
      %v1738 = vunpack.c.l.s4 839922192
      %v1739 = vunpack.c.0.s8 %v1738
      %v1740 = vlaneseq
      %v1741 = vshrl.u32 %v1740, 7
      %v1742 = vsub.s32 %v1739, %v1741
      %v1743 = vrot.slane %v1735, %v1742
      %1745 = vset.pattern.permute.xlu0 0
      %1746 = vperm.xlu0 %1745, %v593
      %v1747 = vpop.permute.xlu0 %1746
      %v1750 = vunpack.c.l.s4 839922192
      %v1751 = vunpack.c.0.s8 %v1750
      %v1752 = vlaneseq
      %v1753 = vshrl.u32 %v1752, 7
      %v1754 = vsub.s32 %v1751, %v1753
      %v1755 = vrot.slane %v1747, %v1754
      %1757 = vset.pattern.permute.xlu0 0
      %1758 = vperm.xlu0 %1757, %v594
      %v1759 = vpop.permute.xlu0 %1758
      %v1762 = vunpack.c.l.s4 839922192
      %v1763 = vunpack.c.0.s8 %v1762
      %v1764 = vlaneseq
      %v1765 = vshrl.u32 %v1764, 7
      %v1766 = vsub.s32 %v1763, %v1765
      %v1767 = vrot.slane %v1759, %v1766
      %1769 = vset.pattern.permute.xlu0 0
      %1770 = vperm.xlu0 %1769, %v595
      %v1771 = vpop.permute.xlu0 %1770
      %v1774 = vunpack.c.l.s4 839922192
      %v1775 = vunpack.c.0.s8 %v1774
      %v1776 = vlaneseq
      %v1777 = vshrl.u32 %v1776, 7
      %v1778 = vsub.s32 %v1775, %v1777
      %v1779 = vrot.slane %v1771, %v1778
      %1781 = vset.pattern.permute.xlu0 0
      %1782 = vperm.xlu0 %1781, %v596
      %v1783 = vpop.permute.xlu0 %1782
      %v1786 = vunpack.c.l.s4 839922192
      %v1787 = vunpack.c.0.s8 %v1786
      %v1788 = vlaneseq
      %v1789 = vshrl.u32 %v1788, 7
      %v1790 = vsub.s32 %v1787, %v1789
      %v1791 = vrot.slane %v1783, %v1790
      %1793 = vset.pattern.permute.xlu0 0
      %1794 = vperm.xlu0 %1793, %v597
      %v1795 = vpop.permute.xlu0 %1794
      %v1798 = vunpack.c.l.s4 839922192
      %v1799 = vunpack.c.0.s8 %v1798
      %v1800 = vlaneseq
      %v1801 = vshrl.u32 %v1800, 7
      %v1802 = vsub.s32 %v1799, %v1801
      %v1803 = vrot.slane %v1795, %v1802
      %1805 = vset.pattern.permute.xlu0 0
      %1806 = vperm.xlu0 %1805, %v598
      %v1807 = vpop.permute.xlu0 %1806
      %v1810 = vunpack.c.l.s4 839922192
      %v1811 = vunpack.c.0.s8 %v1810
      %v1812 = vlaneseq
      %v1813 = vshrl.u32 %v1812, 7
      %v1814 = vsub.s32 %v1811, %v1813
      %v1815 = vrot.slane %v1807, %v1814
      %1817 = vset.pattern.permute.xlu0 0
      %1818 = vperm.xlu0 %1817, %v599
      %v1819 = vpop.permute.xlu0 %1818
      %v1822 = vunpack.c.l.s4 839922192
      %v1823 = vunpack.c.0.s8 %v1822
      %v1824 = vlaneseq
      %v1825 = vshrl.u32 %v1824, 7
      %v1826 = vsub.s32 %v1823, %v1825
      %v1827 = vrot.slane %v1819, %v1826
      %1829 = vset.pattern.permute.xlu0 0
      %1830 = vperm.xlu0 %1829, %v600
      %v1831 = vpop.permute.xlu0 %1830
      %v1834 = vunpack.c.l.s4 839922192
      %v1835 = vunpack.c.0.s8 %v1834
      %v1836 = vlaneseq
      %v1837 = vshrl.u32 %v1836, 7
      %v1838 = vsub.s32 %v1835, %v1837
      %v1839 = vrot.slane %v1831, %v1838
      %1841 = vset.pattern.permute.xlu0 0
      %1842 = vperm.xlu0 %1841, %v601
      %v1843 = vpop.permute.xlu0 %1842
      %v1846 = vunpack.c.l.s4 839922192
      %v1847 = vunpack.c.0.s8 %v1846
      %v1848 = vlaneseq
      %v1849 = vshrl.u32 %v1848, 7
      %v1850 = vsub.s32 %v1847, %v1849
      %v1851 = vrot.slane %v1843, %v1850
      %1853 = vset.pattern.permute.xlu0 0
      %1854 = vperm.xlu0 %1853, %v602
      %v1855 = vpop.permute.xlu0 %1854
      %v1858 = vunpack.c.l.s4 839922192
      %v1859 = vunpack.c.0.s8 %v1858
      %v1860 = vlaneseq
      %v1861 = vshrl.u32 %v1860, 7
      %v1862 = vsub.s32 %v1859, %v1861
      %v1863 = vrot.slane %v1855, %v1862
      %1865 = vset.pattern.permute.xlu0 0
      %1866 = vperm.xlu0 %1865, %v603
      %v1867 = vpop.permute.xlu0 %1866
      %v1870 = vunpack.c.l.s4 839922192
      %v1871 = vunpack.c.0.s8 %v1870
      %v1872 = vlaneseq
      %v1873 = vshrl.u32 %v1872, 7
      %v1874 = vsub.s32 %v1871, %v1873
      %v1875 = vrot.slane %v1867, %v1874
      %1877 = vset.pattern.permute.xlu0 0
      %1878 = vperm.xlu0 %1877, %v604
      %v1879 = vpop.permute.xlu0 %1878
      %v1882 = vunpack.c.l.s4 839922192
      %v1883 = vunpack.c.0.s8 %v1882
      %v1884 = vlaneseq
      %v1885 = vshrl.u32 %v1884, 7
      %v1886 = vsub.s32 %v1883, %v1885
      %v1887 = vrot.slane %v1879, %v1886
      %1889 = vset.pattern.permute.xlu0 0
      %1890 = vperm.xlu0 %1889, %v605
      %v1891 = vpop.permute.xlu0 %1890
      %v1894 = vunpack.c.l.s4 839922192
      %v1895 = vunpack.c.0.s8 %v1894
      %v1896 = vlaneseq
      %v1897 = vshrl.u32 %v1896, 7
      %v1898 = vsub.s32 %v1895, %v1897
      %v1899 = vrot.slane %v1891, %v1898
      %1901 = vset.pattern.permute.xlu0 0
      %1902 = vperm.xlu0 %1901, %v606
      %v1903 = vpop.permute.xlu0 %1902
      %v1906 = vunpack.c.l.s4 839922192
      %v1907 = vunpack.c.0.s8 %v1906
      %v1908 = vlaneseq
      %v1909 = vshrl.u32 %v1908, 7
      %v1910 = vsub.s32 %v1907, %v1909
      %v1911 = vrot.slane %v1903, %v1910
      %1913 = vset.pattern.permute.xlu0 0
      %1914 = vperm.xlu0 %1913, %v607
      %v1915 = vpop.permute.xlu0 %1914
      %v1918 = vunpack.c.l.s4 839922192
      %v1919 = vunpack.c.0.s8 %v1918
      %v1920 = vlaneseq
      %v1921 = vshrl.u32 %v1920, 7
      %v1922 = vsub.s32 %v1919, %v1921
      %v1923 = vrot.slane %v1915, %v1922
      %1925 = vset.pattern.permute.xlu0 0
      %1926 = vperm.xlu0 %1925, %v608
      %v1927 = vpop.permute.xlu0 %1926
      %v1930 = vunpack.c.l.s4 839922192
      %v1931 = vunpack.c.0.s8 %v1930
      %v1932 = vlaneseq
      %v1933 = vshrl.u32 %v1932, 7
      %v1934 = vsub.s32 %v1931, %v1933
      %v1935 = vrot.slane %v1927, %v1934
      %1937 = vset.pattern.permute.xlu0 0
      %1938 = vperm.xlu0 %1937, %v609
      %v1939 = vpop.permute.xlu0 %1938
      %v1942 = vunpack.c.l.s4 839922192
      %v1943 = vunpack.c.0.s8 %v1942
      %v1944 = vlaneseq
      %v1945 = vshrl.u32 %v1944, 7
      %v1946 = vsub.s32 %v1943, %v1945
      %v1947 = vrot.slane %v1939, %v1946
      %1949 = vset.pattern.permute.xlu0 0
      %1950 = vperm.xlu0 %1949, %v610
      %v1951 = vpop.permute.xlu0 %1950
      %v1954 = vunpack.c.l.s4 839922192
      %v1955 = vunpack.c.0.s8 %v1954
      %v1956 = vlaneseq
      %v1957 = vshrl.u32 %v1956, 7
      %v1958 = vsub.s32 %v1955, %v1957
      %v1959 = vrot.slane %v1951, %v1958
      %1961 = vset.pattern.permute.xlu0 0
      %1962 = vperm.xlu0 %1961, %v611
      %v1963 = vpop.permute.xlu0 %1962
      %v1966 = vunpack.c.l.s4 839922192
      %v1967 = vunpack.c.0.s8 %v1966
      %v1968 = vlaneseq
      %v1969 = vshrl.u32 %v1968, 7
      %v1970 = vsub.s32 %v1967, %v1969
      %v1971 = vrot.slane %v1963, %v1970
      %1973 = vset.pattern.permute.xlu0 0
      %1974 = vperm.xlu0 %1973, %v612
      %v1975 = vpop.permute.xlu0 %1974
      %v1978 = vunpack.c.l.s4 839922192
      %v1979 = vunpack.c.0.s8 %v1978
      %v1980 = vlaneseq
      %v1981 = vshrl.u32 %v1980, 7
      %v1982 = vsub.s32 %v1979, %v1981
      %v1983 = vrot.slane %v1975, %v1982
      %1985 = vset.pattern.permute.xlu0 0
      %1986 = vperm.xlu0 %1985, %v613
      %v1987 = vpop.permute.xlu0 %1986
      %v1990 = vunpack.c.l.s4 839922192
      %v1991 = vunpack.c.0.s8 %v1990
      %v1992 = vlaneseq
      %v1993 = vshrl.u32 %v1992, 7
      %v1994 = vsub.s32 %v1991, %v1993
      %v1995 = vrot.slane %v1987, %v1994
      %1997 = vset.pattern.permute.xlu0 0
      %1998 = vperm.xlu0 %1997, %v614
      %v1999 = vpop.permute.xlu0 %1998
      %v2002 = vunpack.c.l.s4 839922192
      %v2003 = vunpack.c.0.s8 %v2002
      %v2004 = vlaneseq
      %v2005 = vshrl.u32 %v2004, 7
      %v2006 = vsub.s32 %v2003, %v2005
      %v2007 = vrot.slane %v1999, %v2006
      %2009 = vset.pattern.permute.xlu0 0
      %2010 = vperm.xlu0 %2009, %v615
      %v2011 = vpop.permute.xlu0 %2010
      %v2014 = vunpack.c.l.s4 839922192
      %v2015 = vunpack.c.0.s8 %v2014
      %v2016 = vlaneseq
      %v2017 = vshrl.u32 %v2016, 7
      %v2018 = vsub.s32 %v2015, %v2017
      %v2019 = vrot.slane %v2011, %v2018
      %2021 = vset.pattern.permute.xlu0 0
      %2022 = vperm.xlu0 %2021, %v616
      %v2023 = vpop.permute.xlu0 %2022
      %v2026 = vunpack.c.l.s4 839922192
      %v2027 = vunpack.c.0.s8 %v2026
      %v2028 = vlaneseq
      %v2029 = vshrl.u32 %v2028, 7
      %v2030 = vsub.s32 %v2027, %v2029
      %v2031 = vrot.slane %v2023, %v2030
      %2033 = vset.pattern.permute.xlu0 0
      %2034 = vperm.xlu0 %2033, %v617
      %v2035 = vpop.permute.xlu0 %2034
      %v2038 = vunpack.c.l.s4 839922192
      %v2039 = vunpack.c.0.s8 %v2038
      %v2040 = vlaneseq
      %v2041 = vshrl.u32 %v2040, 7
      %v2042 = vsub.s32 %v2039, %v2041
      %v2043 = vrot.slane %v2035, %v2042
      %2045 = vset.pattern.permute.xlu0 0
      %2046 = vperm.xlu0 %2045, %v618
      %v2047 = vpop.permute.xlu0 %2046
      %v2050 = vunpack.c.l.s4 839922192
      %v2051 = vunpack.c.0.s8 %v2050
      %v2052 = vlaneseq
      %v2053 = vshrl.u32 %v2052, 7
      %v2054 = vsub.s32 %v2051, %v2053
      %v2055 = vrot.slane %v2047, %v2054
      %2057 = vset.pattern.permute.xlu0 0
      %2058 = vperm.xlu0 %2057, %v619
      %v2059 = vpop.permute.xlu0 %2058
      %v2062 = vunpack.c.l.s4 839922192
      %v2063 = vunpack.c.0.s8 %v2062
      %v2064 = vlaneseq
      %v2065 = vshrl.u32 %v2064, 7
      %v2066 = vsub.s32 %v2063, %v2065
      %v2067 = vrot.slane %v2059, %v2066
      %2069 = vset.pattern.permute.xlu0 0
      %2070 = vperm.xlu0 %2069, %v620
      %v2071 = vpop.permute.xlu0 %2070
      %v2074 = vunpack.c.l.s4 839922192
      %v2075 = vunpack.c.0.s8 %v2074
      %v2076 = vlaneseq
      %v2077 = vshrl.u32 %v2076, 7
      %v2078 = vsub.s32 %v2075, %v2077
      %v2079 = vrot.slane %v2071, %v2078
      %2081 = vset.pattern.permute.xlu0 0
      %2082 = vperm.xlu0 %2081, %v621
      %v2083 = vpop.permute.xlu0 %2082
      %v2086 = vunpack.c.l.s4 839922192
      %v2087 = vunpack.c.0.s8 %v2086
      %v2088 = vlaneseq
      %v2089 = vshrl.u32 %v2088, 7
      %v2090 = vsub.s32 %v2087, %v2089
      %v2091 = vrot.slane %v2083, %v2090
      %2093 = vset.pattern.permute.xlu0 0
      %2094 = vperm.xlu0 %2093, %v622
      %v2095 = vpop.permute.xlu0 %2094
      %v2098 = vunpack.c.l.s4 839922192
      %v2099 = vunpack.c.0.s8 %v2098
      %v2100 = vlaneseq
      %v2101 = vshrl.u32 %v2100, 7
      %v2102 = vsub.s32 %v2099, %v2101
      %v2103 = vrot.slane %v2095, %v2102
      %2105 = vset.pattern.permute.xlu0 0
      %2106 = vperm.xlu0 %2105, %v623
      %v2107 = vpop.permute.xlu0 %2106
      %v2110 = vunpack.c.l.s4 839922192
      %v2111 = vunpack.c.0.s8 %v2110
      %v2112 = vlaneseq
      %v2113 = vshrl.u32 %v2112, 7
      %v2114 = vsub.s32 %v2111, %v2113
      %v2115 = vrot.slane %v2107, %v2114
      %2117 = vset.pattern.permute.xlu0 0
      %2118 = vperm.xlu0 %2117, %v624
      %v2119 = vpop.permute.xlu0 %2118
      %v2122 = vunpack.c.l.s4 839922192
      %v2123 = vunpack.c.0.s8 %v2122
      %v2124 = vlaneseq
      %v2125 = vshrl.u32 %v2124, 7
      %v2126 = vsub.s32 %v2123, %v2125
      %v2127 = vrot.slane %v2119, %v2126
      %2129 = vset.pattern.permute.xlu0 0
      %2130 = vperm.xlu0 %2129, %v625
      %v2131 = vpop.permute.xlu0 %2130
      %v2134 = vunpack.c.l.s4 839922192
      %v2135 = vunpack.c.0.s8 %v2134
      %v2136 = vlaneseq
      %v2137 = vshrl.u32 %v2136, 7
      %v2138 = vsub.s32 %v2135, %v2137
      %v2139 = vrot.slane %v2131, %v2138
      %2141 = vset.pattern.permute.xlu0 0
      %2142 = vperm.xlu0 %2141, %v626
      %v2143 = vpop.permute.xlu0 %2142
      %v2146 = vunpack.c.l.s4 839922192
      %v2147 = vunpack.c.0.s8 %v2146
      %v2148 = vlaneseq
      %v2149 = vshrl.u32 %v2148, 7
      %v2150 = vsub.s32 %v2147, %v2149
      %v2151 = vrot.slane %v2143, %v2150
      %2153 = vset.pattern.permute.xlu0 0
      %2154 = vperm.xlu0 %2153, %v627
      %v2155 = vpop.permute.xlu0 %2154
      %v2158 = vunpack.c.l.s4 839922192
      %v2159 = vunpack.c.0.s8 %v2158
      %v2160 = vlaneseq
      %v2161 = vshrl.u32 %v2160, 7
      %v2162 = vsub.s32 %v2159, %v2161
      %v2163 = vrot.slane %v2155, %v2162
      %v2164 = vmul.bf16 %v114, %v639
      %v2165 = vmul.bf16 %v115, %v639
      %v2166 = vmul.bf16 %v116, %v639
      %v2167 = vmul.bf16 %v117, %v651
      %v2168 = vmul.bf16 %v118, %v651
      %v2169 = vmul.bf16 %v119, %v651
      %v2170 = vmul.bf16 %v120, %v663
      %v2171 = vmul.bf16 %v121, %v663
      %v2172 = vmul.bf16 %v122, %v663
      %v2173 = vmul.bf16 %v123, %v675
      %v2174 = vmul.bf16 %v124, %v675
      %v2175 = vmul.bf16 %v125, %v675
      %v2176 = vmul.bf16 %v126, %v687
      %v2177 = vmul.bf16 %v127, %v687
      %v2178 = vmul.bf16 %v128, %v687
      %v2179 = vmul.bf16 %v129, %v699
      %v2180 = vmul.bf16 %v130, %v699
      %v2181 = vmul.bf16 %v131, %v699
      %v2182 = vmul.bf16 %v132, %v711
      %v2183 = vmul.bf16 %v133, %v711
      %v2184 = vmul.bf16 %v134, %v711
      %v2185 = vmul.bf16 %v135, %v723
      %v2186 = vmul.bf16 %v136, %v723
      %v2187 = vmul.bf16 %v137, %v723
      %v2188 = vmul.bf16 %v138, %v735
      %v2189 = vmul.bf16 %v139, %v735
      %v2190 = vmul.bf16 %v140, %v735
      %v2191 = vmul.bf16 %v141, %v747
      %v2192 = vmul.bf16 %v142, %v747
      %v2193 = vmul.bf16 %v143, %v747
      %v2194 = vmul.bf16 %v144, %v759
      %v2195 = vmul.bf16 %v145, %v759
      %v2196 = vmul.bf16 %v146, %v759
      %v2197 = vmul.bf16 %v147, %v771
      %v2198 = vmul.bf16 %v148, %v771
      %v2199 = vmul.bf16 %v149, %v771
      %v2200 = vmul.bf16 %v150, %v783
      %v2201 = vmul.bf16 %v151, %v783
      %v2202 = vmul.bf16 %v152, %v783
      %v2203 = vmul.bf16 %v153, %v795
      %v2204 = vmul.bf16 %v154, %v795
      %v2205 = vmul.bf16 %v155, %v795
      %v2206 = vmul.bf16 %v156, %v807
      %v2207 = vmul.bf16 %v157, %v807
      %v2208 = vmul.bf16 %v158, %v807
      %v2209 = vmul.bf16 %v159, %v819
      %v2210 = vmul.bf16 %v160, %v819
      %v2211 = vmul.bf16 %v161, %v819
      %v2212 = vmul.bf16 %v162, %v831
      %v2213 = vmul.bf16 %v163, %v831
      %v2214 = vmul.bf16 %v164, %v831
      %v2215 = vmul.bf16 %v165, %v843
      %v2216 = vmul.bf16 %v166, %v843
      %v2217 = vmul.bf16 %v167, %v843
      %v2218 = vmul.bf16 %v168, %v855
      %v2219 = vmul.bf16 %v169, %v855
      %v2220 = vmul.bf16 %v170, %v855
      %v2221 = vmul.bf16 %v171, %v867
      %v2222 = vmul.bf16 %v172, %v867
      %v2223 = vmul.bf16 %v173, %v867
      %v2224 = vmul.bf16 %v174, %v879
      %v2225 = vmul.bf16 %v175, %v879
      %v2226 = vmul.bf16 %v176, %v879
      %v2227 = vmul.bf16 %v177, %v891
      %v2228 = vmul.bf16 %v178, %v891
      %v2229 = vmul.bf16 %v179, %v891
      %v2230 = vmul.bf16 %v180, %v903
      %v2231 = vmul.bf16 %v181, %v903
      %v2232 = vmul.bf16 %v182, %v903
      %v2233 = vmul.bf16 %v183, %v915
      %v2234 = vmul.bf16 %v184, %v915
      %v2235 = vmul.bf16 %v185, %v915
      %v2236 = vmul.bf16 %v186, %v927
      %v2237 = vmul.bf16 %v187, %v927
      %v2238 = vmul.bf16 %v188, %v927
      %v2239 = vmul.bf16 %v189, %v939
      %v2240 = vmul.bf16 %v190, %v939
      %v2241 = vmul.bf16 %v191, %v939
      %v2242 = vmul.bf16 %v192, %v951
      %v2243 = vmul.bf16 %v193, %v951
      %v2244 = vmul.bf16 %v194, %v951
      %v2245 = vmul.bf16 %v195, %v963
      %v2246 = vmul.bf16 %v196, %v963
      %v2247 = vmul.bf16 %v197, %v963
      %v2248 = vmul.bf16 %v198, %v975
      %v2249 = vmul.bf16 %v199, %v975
      %v2250 = vmul.bf16 %v200, %v975
      %v2251 = vmul.bf16 %v201, %v987
      %v2252 = vmul.bf16 %v202, %v987
      %v2253 = vmul.bf16 %v203, %v987
      %v2254 = vmul.bf16 %v204, %v999
      %v2255 = vmul.bf16 %v205, %v999
      %v2256 = vmul.bf16 %v206, %v999
      %v2257 = vmul.bf16 %v207, %v1011
      %v2258 = vmul.bf16 %v208, %v1011
      %v2259 = vmul.bf16 %v209, %v1011
      %v2260 = vmul.bf16 %v210, %v1023
      %v2261 = vmul.bf16 %v211, %v1023
      %v2262 = vmul.bf16 %v212, %v1023
      %v2263 = vmul.bf16 %v213, %v1035
      %v2264 = vmul.bf16 %v214, %v1035
      %v2265 = vmul.bf16 %v215, %v1035
      %v2266 = vmul.bf16 %v216, %v1047
      %v2267 = vmul.bf16 %v217, %v1047
      %v2268 = vmul.bf16 %v218, %v1047
      %v2269 = vmul.bf16 %v219, %v1059
      %v2270 = vmul.bf16 %v220, %v1059
      %v2271 = vmul.bf16 %v221, %v1059
      %v2272 = vmul.bf16 %v222, %v1071
      %v2273 = vmul.bf16 %v223, %v1071
      %v2274 = vmul.bf16 %v224, %v1071
      %v2275 = vmul.bf16 %v225, %v1083
      %v2276 = vmul.bf16 %v226, %v1083
      %v2277 = vmul.bf16 %v227, %v1083
      %v2278 = vmul.bf16 %v228, %v1095
      %v2279 = vmul.bf16 %v229, %v1095
      %v2280 = vmul.bf16 %v230, %v1095
      %v2281 = vmul.bf16 %v231, %v1107
      %v2282 = vmul.bf16 %v232, %v1107
      %v2283 = vmul.bf16 %v233, %v1107
      %v2284 = vmul.bf16 %v234, %v1119
      %v2285 = vmul.bf16 %v235, %v1119
      %v2286 = vmul.bf16 %v236, %v1119
      %v2287 = vmul.bf16 %v237, %v1131
      %v2288 = vmul.bf16 %v238, %v1131
      %v2289 = vmul.bf16 %v239, %v1131
      %v2290 = vmul.bf16 %v240, %v1143
      %v2291 = vmul.bf16 %v241, %v1143
      %v2292 = vmul.bf16 %v242, %v1143
      %v2293 = vmul.bf16 %v243, %v1155
      %v2294 = vmul.bf16 %v244, %v1155
      %v2295 = vmul.bf16 %v245, %v1155
      %v2296 = vmul.bf16 %v246, %v1167
      %v2297 = vmul.bf16 %v247, %v1167
      %v2298 = vmul.bf16 %v248, %v1167
      %v2299 = vmul.bf16 %v249, %v1179
      %v2300 = vmul.bf16 %v250, %v1179
      %v2301 = vmul.bf16 %v251, %v1179
      %v2302 = vmul.bf16 %v252, %v1191
      %v2303 = vmul.bf16 %v253, %v1191
      %v2304 = vmul.bf16 %v254, %v1191
      %v2305 = vmul.bf16 %v255, %v1203
      %v2306 = vmul.bf16 %v256, %v1203
      %v2307 = vmul.bf16 %v257, %v1203
      %v2308 = vmul.bf16 %v258, %v1215
      %v2309 = vmul.bf16 %v259, %v1215
      %v2310 = vmul.bf16 %v260, %v1215
      %v2311 = vmul.bf16 %v261, %v1227
      %v2312 = vmul.bf16 %v262, %v1227
      %v2313 = vmul.bf16 %v263, %v1227
      %v2314 = vmul.bf16 %v264, %v1239
      %v2315 = vmul.bf16 %v265, %v1239
      %v2316 = vmul.bf16 %v266, %v1239
      %v2317 = vmul.bf16 %v267, %v1251
      %v2318 = vmul.bf16 %v268, %v1251
      %v2319 = vmul.bf16 %v269, %v1251
      %v2320 = vmul.bf16 %v270, %v1263
      %v2321 = vmul.bf16 %v271, %v1263
      %v2322 = vmul.bf16 %v272, %v1263
      %v2323 = vmul.bf16 %v273, %v1275
      %v2324 = vmul.bf16 %v274, %v1275
      %v2325 = vmul.bf16 %v275, %v1275
      %v2326 = vmul.bf16 %v276, %v1287
      %v2327 = vmul.bf16 %v277, %v1287
      %v2328 = vmul.bf16 %v278, %v1287
      %v2329 = vmul.bf16 %v279, %v1299
      %v2330 = vmul.bf16 %v280, %v1299
      %v2331 = vmul.bf16 %v281, %v1299
      %v2332 = vmul.bf16 %v282, %v1311
      %v2333 = vmul.bf16 %v283, %v1311
      %v2334 = vmul.bf16 %v284, %v1311
      %v2335 = vmul.bf16 %v285, %v1323
      %v2336 = vmul.bf16 %v286, %v1323
      %v2337 = vmul.bf16 %v287, %v1323
      %v2338 = vmul.bf16 %v288, %v1335
      %v2339 = vmul.bf16 %v289, %v1335
      %v2340 = vmul.bf16 %v290, %v1335
      %v2341 = vmul.bf16 %v291, %v1347
      %v2342 = vmul.bf16 %v292, %v1347
      %v2343 = vmul.bf16 %v293, %v1347
      %v2344 = vmul.bf16 %v294, %v1359
      %v2345 = vmul.bf16 %v295, %v1359
      %v2346 = vmul.bf16 %v296, %v1359
      %v2347 = vmul.bf16 %v297, %v1371
      %v2348 = vmul.bf16 %v298, %v1371
      %v2349 = vmul.bf16 %v299, %v1371
      %v2350 = vmul.bf16 %v300, %v1383
      %v2351 = vmul.bf16 %v301, %v1383
      %v2352 = vmul.bf16 %v302, %v1383
      %v2353 = vmul.bf16 %v303, %v1395
      %v2354 = vmul.bf16 %v304, %v1395
      %v2355 = vmul.bf16 %v305, %v1395
      %v2356 = vmul.bf16 %v306, %v1407
      %v2357 = vmul.bf16 %v307, %v1407
      %v2358 = vmul.bf16 %v308, %v1407
      %v2359 = vmul.bf16 %v309, %v1419
      %v2360 = vmul.bf16 %v310, %v1419
      %v2361 = vmul.bf16 %v311, %v1419
      %v2362 = vmul.bf16 %v312, %v1431
      %v2363 = vmul.bf16 %v313, %v1431
      %v2364 = vmul.bf16 %v314, %v1431
      %v2365 = vmul.bf16 %v315, %v1443
      %v2366 = vmul.bf16 %v316, %v1443
      %v2367 = vmul.bf16 %v317, %v1443
      %v2368 = vmul.bf16 %v318, %v1455
      %v2369 = vmul.bf16 %v319, %v1455
      %v2370 = vmul.bf16 %v320, %v1455
      %v2371 = vmul.bf16 %v321, %v1467
      %v2372 = vmul.bf16 %v322, %v1467
      %v2373 = vmul.bf16 %v323, %v1467
      %v2374 = vmul.bf16 %v324, %v1479
      %v2375 = vmul.bf16 %v325, %v1479
      %v2376 = vmul.bf16 %v326, %v1479
      %v2377 = vmul.bf16 %v327, %v1491
      %v2378 = vmul.bf16 %v328, %v1491
      %v2379 = vmul.bf16 %v329, %v1491
      %v2380 = vmul.bf16 %v330, %v1503
      %v2381 = vmul.bf16 %v331, %v1503
      %v2382 = vmul.bf16 %v332, %v1503
      %v2383 = vmul.bf16 %v333, %v1515
      %v2384 = vmul.bf16 %v334, %v1515
      %v2385 = vmul.bf16 %v335, %v1515
      %v2386 = vmul.bf16 %v336, %v1527
      %v2387 = vmul.bf16 %v337, %v1527
      %v2388 = vmul.bf16 %v338, %v1527
      %v2389 = vmul.bf16 %v339, %v1539
      %v2390 = vmul.bf16 %v340, %v1539
      %v2391 = vmul.bf16 %v341, %v1539
      %v2392 = vmul.bf16 %v342, %v1551
      %v2393 = vmul.bf16 %v343, %v1551
      %v2394 = vmul.bf16 %v344, %v1551
      %v2395 = vmul.bf16 %v345, %v1563
      %v2396 = vmul.bf16 %v346, %v1563
      %v2397 = vmul.bf16 %v347, %v1563
      %v2398 = vmul.bf16 %v348, %v1575
      %v2399 = vmul.bf16 %v349, %v1575
      %v2400 = vmul.bf16 %v350, %v1575
      %v2401 = vmul.bf16 %v351, %v1587
      %v2402 = vmul.bf16 %v352, %v1587
      %v2403 = vmul.bf16 %v353, %v1587
      %v2404 = vmul.bf16 %v354, %v1599
      %v2405 = vmul.bf16 %v355, %v1599
      %v2406 = vmul.bf16 %v356, %v1599
      %v2407 = vmul.bf16 %v357, %v1611
      %v2408 = vmul.bf16 %v358, %v1611
      %v2409 = vmul.bf16 %v359, %v1611
      %v2410 = vmul.bf16 %v360, %v1623
      %v2411 = vmul.bf16 %v361, %v1623
      %v2412 = vmul.bf16 %v362, %v1623
      %v2413 = vmul.bf16 %v363, %v1635
      %v2414 = vmul.bf16 %v364, %v1635
      %v2415 = vmul.bf16 %v365, %v1635
      %v2416 = vmul.bf16 %v366, %v1647
      %v2417 = vmul.bf16 %v367, %v1647
      %v2418 = vmul.bf16 %v368, %v1647
      %v2419 = vmul.bf16 %v369, %v1659
      %v2420 = vmul.bf16 %v370, %v1659
      %v2421 = vmul.bf16 %v371, %v1659
      %v2422 = vmul.bf16 %v372, %v1671
      %v2423 = vmul.bf16 %v373, %v1671
      %v2424 = vmul.bf16 %v374, %v1671
      %v2425 = vmul.bf16 %v375, %v1683
      %v2426 = vmul.bf16 %v376, %v1683
      %v2427 = vmul.bf16 %v377, %v1683
      %v2428 = vmul.bf16 %v378, %v1695
      %v2429 = vmul.bf16 %v379, %v1695
      %v2430 = vmul.bf16 %v380, %v1695
      %v2431 = vmul.bf16 %v381, %v1707
      %v2432 = vmul.bf16 %v382, %v1707
      %v2433 = vmul.bf16 %v383, %v1707
      %v2434 = vmul.bf16 %v384, %v1719
      %v2435 = vmul.bf16 %v385, %v1719
      %v2436 = vmul.bf16 %v386, %v1719
      %v2437 = vmul.bf16 %v387, %v1731
      %v2438 = vmul.bf16 %v388, %v1731
      %v2439 = vmul.bf16 %v389, %v1731
      %v2440 = vmul.bf16 %v390, %v1743
      %v2441 = vmul.bf16 %v391, %v1743
      %v2442 = vmul.bf16 %v392, %v1743
      %v2443 = vmul.bf16 %v393, %v1755
      %v2444 = vmul.bf16 %v394, %v1755
      %v2445 = vmul.bf16 %v395, %v1755
      %v2446 = vmul.bf16 %v396, %v1767
      %v2447 = vmul.bf16 %v397, %v1767
      %v2448 = vmul.bf16 %v398, %v1767
      %v2449 = vmul.bf16 %v399, %v1779
      %v2450 = vmul.bf16 %v400, %v1779
      %v2451 = vmul.bf16 %v401, %v1779
      %v2452 = vmul.bf16 %v402, %v1791
      %v2453 = vmul.bf16 %v403, %v1791
      %v2454 = vmul.bf16 %v404, %v1791
      %v2455 = vmul.bf16 %v405, %v1803
      %v2456 = vmul.bf16 %v406, %v1803
      %v2457 = vmul.bf16 %v407, %v1803
      %v2458 = vmul.bf16 %v408, %v1815
      %v2459 = vmul.bf16 %v409, %v1815
      %v2460 = vmul.bf16 %v410, %v1815
      %v2461 = vmul.bf16 %v411, %v1827
      %v2462 = vmul.bf16 %v412, %v1827
      %v2463 = vmul.bf16 %v413, %v1827
      %v2464 = vmul.bf16 %v414, %v1839
      %v2465 = vmul.bf16 %v415, %v1839
      %v2466 = vmul.bf16 %v416, %v1839
      %v2467 = vmul.bf16 %v417, %v1851
      %v2468 = vmul.bf16 %v418, %v1851
      %v2469 = vmul.bf16 %v419, %v1851
      %v2470 = vmul.bf16 %v420, %v1863
      %v2471 = vmul.bf16 %v421, %v1863
      %v2472 = vmul.bf16 %v422, %v1863
      %v2473 = vmul.bf16 %v423, %v1875
      %v2474 = vmul.bf16 %v424, %v1875
      %v2475 = vmul.bf16 %v425, %v1875
      %v2476 = vmul.bf16 %v426, %v1887
      %v2477 = vmul.bf16 %v427, %v1887
      %v2478 = vmul.bf16 %v428, %v1887
      %v2479 = vmul.bf16 %v429, %v1899
      %v2480 = vmul.bf16 %v430, %v1899
      %v2481 = vmul.bf16 %v431, %v1899
      %v2482 = vmul.bf16 %v432, %v1911
      %v2483 = vmul.bf16 %v433, %v1911
      %v2484 = vmul.bf16 %v434, %v1911
      %v2485 = vmul.bf16 %v435, %v1923
      %v2486 = vmul.bf16 %v436, %v1923
      %v2487 = vmul.bf16 %v437, %v1923
      %v2488 = vmul.bf16 %v438, %v1935
      %v2489 = vmul.bf16 %v439, %v1935
      %v2490 = vmul.bf16 %v440, %v1935
      %v2491 = vmul.bf16 %v441, %v1947
      %v2492 = vmul.bf16 %v442, %v1947
      %v2493 = vmul.bf16 %v443, %v1947
      %v2494 = vmul.bf16 %v444, %v1959
      %v2495 = vmul.bf16 %v445, %v1959
      %v2496 = vmul.bf16 %v446, %v1959
      %v2497 = vmul.bf16 %v447, %v1971
      %v2498 = vmul.bf16 %v448, %v1971
      %v2499 = vmul.bf16 %v449, %v1971
      %v2500 = vmul.bf16 %v450, %v1983
      %v2501 = vmul.bf16 %v451, %v1983
      %v2502 = vmul.bf16 %v452, %v1983
      %v2503 = vmul.bf16 %v453, %v1995
      %v2504 = vmul.bf16 %v454, %v1995
      %v2505 = vmul.bf16 %v455, %v1995
      %v2506 = vmul.bf16 %v456, %v2007
      %v2507 = vmul.bf16 %v457, %v2007
      %v2508 = vmul.bf16 %v458, %v2007
      %v2509 = vmul.bf16 %v459, %v2019
      %v2510 = vmul.bf16 %v460, %v2019
      %v2511 = vmul.bf16 %v461, %v2019
      %v2512 = vmul.bf16 %v462, %v2031
      %v2513 = vmul.bf16 %v463, %v2031
      %v2514 = vmul.bf16 %v464, %v2031
      %v2515 = vmul.bf16 %v465, %v2043
      %v2516 = vmul.bf16 %v466, %v2043
      %v2517 = vmul.bf16 %v467, %v2043
      %v2518 = vmul.bf16 %v468, %v2055
      %v2519 = vmul.bf16 %v469, %v2055
      %v2520 = vmul.bf16 %v470, %v2055
      %v2521 = vmul.bf16 %v471, %v2067
      %v2522 = vmul.bf16 %v472, %v2067
      %v2523 = vmul.bf16 %v473, %v2067
      %v2524 = vmul.bf16 %v474, %v2079
      %v2525 = vmul.bf16 %v475, %v2079
      %v2526 = vmul.bf16 %v476, %v2079
      %v2527 = vmul.bf16 %v477, %v2091
      %v2528 = vmul.bf16 %v478, %v2091
      %v2529 = vmul.bf16 %v479, %v2091
      %v2530 = vmul.bf16 %v480, %v2103
      %v2531 = vmul.bf16 %v481, %v2103
      %v2532 = vmul.bf16 %v482, %v2103
      %v2533 = vmul.bf16 %v483, %v2115
      %v2534 = vmul.bf16 %v484, %v2115
      %v2535 = vmul.bf16 %v485, %v2115
      %v2536 = vmul.bf16 %v486, %v2127
      %v2537 = vmul.bf16 %v487, %v2127
      %v2538 = vmul.bf16 %v488, %v2127
      %v2539 = vmul.bf16 %v489, %v2139
      %v2540 = vmul.bf16 %v490, %v2139
      %v2541 = vmul.bf16 %v491, %v2139
      %v2542 = vmul.bf16 %v492, %v2151
      %v2543 = vmul.bf16 %v493, %v2151
      %v2544 = vmul.bf16 %v494, %v2151
      %v2545 = vmul.bf16 %v495, %v2163
      %v2546 = vmul.bf16 %v496, %v2163
      %v2547 = vmul.bf16 %v497, %v2163
      %v2548 = vunpack.c.l.bf16 %v2164
      %v2549 = vunpack.c.h.bf16 %v2164
      %v2550 = vunpack.c.l.bf16 %v2165
      %v2551 = vunpack.c.h.bf16 %v2165
      %v2552 = vunpack.c.l.bf16 %v2166
      %v2553 = vunpack.c.h.bf16 %v2166
      %v2554 = vunpack.c.l.bf16 %v2167
      %v2555 = vunpack.c.h.bf16 %v2167
      %v2556 = vunpack.c.l.bf16 %v2168
      %v2557 = vunpack.c.h.bf16 %v2168
      %v2558 = vunpack.c.l.bf16 %v2169
      %v2559 = vunpack.c.h.bf16 %v2169
      %v2560 = vunpack.c.l.bf16 %v2170
      %v2561 = vunpack.c.h.bf16 %v2170
      %v2562 = vunpack.c.l.bf16 %v2171
      %v2563 = vunpack.c.h.bf16 %v2171
      %v2564 = vunpack.c.l.bf16 %v2172
      %v2565 = vunpack.c.h.bf16 %v2172
      %v2566 = vunpack.c.l.bf16 %v2173
      %v2567 = vunpack.c.h.bf16 %v2173
      %v2568 = vunpack.c.l.bf16 %v2174
      %v2569 = vunpack.c.h.bf16 %v2174
      %v2570 = vunpack.c.l.bf16 %v2175
      %v2571 = vunpack.c.h.bf16 %v2175
      %v2572 = vunpack.c.l.bf16 %v2176
      %v2573 = vunpack.c.h.bf16 %v2176
      %v2574 = vunpack.c.l.bf16 %v2177
      %v2575 = vunpack.c.h.bf16 %v2177
      %v2576 = vunpack.c.l.bf16 %v2178
      %v2577 = vunpack.c.h.bf16 %v2178
      %v2578 = vunpack.c.l.bf16 %v2179
      %v2579 = vunpack.c.h.bf16 %v2179
      %v2580 = vunpack.c.l.bf16 %v2180
      %v2581 = vunpack.c.h.bf16 %v2180
      %v2582 = vunpack.c.l.bf16 %v2181
      %v2583 = vunpack.c.h.bf16 %v2181
      %v2584 = vunpack.c.l.bf16 %v2182
      %v2585 = vunpack.c.h.bf16 %v2182
      %v2586 = vunpack.c.l.bf16 %v2183
      %v2587 = vunpack.c.h.bf16 %v2183
      %v2588 = vunpack.c.l.bf16 %v2184
      %v2589 = vunpack.c.h.bf16 %v2184
      %v2590 = vunpack.c.l.bf16 %v2185
      %v2591 = vunpack.c.h.bf16 %v2185
      %v2592 = vunpack.c.l.bf16 %v2186
      %v2593 = vunpack.c.h.bf16 %v2186
      %v2594 = vunpack.c.l.bf16 %v2187
      %v2595 = vunpack.c.h.bf16 %v2187
      %v2596 = vunpack.c.l.bf16 %v2188
      %v2597 = vunpack.c.h.bf16 %v2188
      %v2598 = vunpack.c.l.bf16 %v2189
      %v2599 = vunpack.c.h.bf16 %v2189
      %v2600 = vunpack.c.l.bf16 %v2190
      %v2601 = vunpack.c.h.bf16 %v2190
      %v2602 = vunpack.c.l.bf16 %v2191
      %v2603 = vunpack.c.h.bf16 %v2191
      %v2604 = vunpack.c.l.bf16 %v2192
      %v2605 = vunpack.c.h.bf16 %v2192
      %v2606 = vunpack.c.l.bf16 %v2193
      %v2607 = vunpack.c.h.bf16 %v2193
      %v2608 = vunpack.c.l.bf16 %v2194
      %v2609 = vunpack.c.h.bf16 %v2194
      %v2610 = vunpack.c.l.bf16 %v2195
      %v2611 = vunpack.c.h.bf16 %v2195
      %v2612 = vunpack.c.l.bf16 %v2196
      %v2613 = vunpack.c.h.bf16 %v2196
      %v2614 = vunpack.c.l.bf16 %v2197
      %v2615 = vunpack.c.h.bf16 %v2197
      %v2616 = vunpack.c.l.bf16 %v2198
      %v2617 = vunpack.c.h.bf16 %v2198
      %v2618 = vunpack.c.l.bf16 %v2199
      %v2619 = vunpack.c.h.bf16 %v2199
      %v2620 = vunpack.c.l.bf16 %v2200
      %v2621 = vunpack.c.h.bf16 %v2200
      %v2622 = vunpack.c.l.bf16 %v2201
      %v2623 = vunpack.c.h.bf16 %v2201
      %v2624 = vunpack.c.l.bf16 %v2202
      %v2625 = vunpack.c.h.bf16 %v2202
      %v2626 = vunpack.c.l.bf16 %v2203
      %v2627 = vunpack.c.h.bf16 %v2203
      %v2628 = vunpack.c.l.bf16 %v2204
      %v2629 = vunpack.c.h.bf16 %v2204
      %v2630 = vunpack.c.l.bf16 %v2205
      %v2631 = vunpack.c.h.bf16 %v2205
      %v2632 = vunpack.c.l.bf16 %v2206
      %v2633 = vunpack.c.h.bf16 %v2206
      %v2634 = vunpack.c.l.bf16 %v2207
      %v2635 = vunpack.c.h.bf16 %v2207
      %v2636 = vunpack.c.l.bf16 %v2208
      %v2637 = vunpack.c.h.bf16 %v2208
      %v2638 = vunpack.c.l.bf16 %v2209
      %v2639 = vunpack.c.h.bf16 %v2209
      %v2640 = vunpack.c.l.bf16 %v2210
      %v2641 = vunpack.c.h.bf16 %v2210
      %v2642 = vunpack.c.l.bf16 %v2211
      %v2643 = vunpack.c.h.bf16 %v2211
      %v2644 = vunpack.c.l.bf16 %v2212
      %v2645 = vunpack.c.h.bf16 %v2212
      %v2646 = vunpack.c.l.bf16 %v2213
      %v2647 = vunpack.c.h.bf16 %v2213
      %v2648 = vunpack.c.l.bf16 %v2214
      %v2649 = vunpack.c.h.bf16 %v2214
      %v2650 = vunpack.c.l.bf16 %v2215
      %v2651 = vunpack.c.h.bf16 %v2215
      %v2652 = vunpack.c.l.bf16 %v2216
      %v2653 = vunpack.c.h.bf16 %v2216
      %v2654 = vunpack.c.l.bf16 %v2217
      %v2655 = vunpack.c.h.bf16 %v2217
      %v2656 = vunpack.c.l.bf16 %v2218
      %v2657 = vunpack.c.h.bf16 %v2218
      %v2658 = vunpack.c.l.bf16 %v2219
      %v2659 = vunpack.c.h.bf16 %v2219
      %v2660 = vunpack.c.l.bf16 %v2220
      %v2661 = vunpack.c.h.bf16 %v2220
      %v2662 = vunpack.c.l.bf16 %v2221
      %v2663 = vunpack.c.h.bf16 %v2221
      %v2664 = vunpack.c.l.bf16 %v2222
      %v2665 = vunpack.c.h.bf16 %v2222
      %v2666 = vunpack.c.l.bf16 %v2223
      %v2667 = vunpack.c.h.bf16 %v2223
      %v2668 = vunpack.c.l.bf16 %v2224
      %v2669 = vunpack.c.h.bf16 %v2224
      %v2670 = vunpack.c.l.bf16 %v2225
      %v2671 = vunpack.c.h.bf16 %v2225
      %v2672 = vunpack.c.l.bf16 %v2226
      %v2673 = vunpack.c.h.bf16 %v2226
      %v2674 = vunpack.c.l.bf16 %v2227
      %v2675 = vunpack.c.h.bf16 %v2227
      %v2676 = vunpack.c.l.bf16 %v2228
      %v2677 = vunpack.c.h.bf16 %v2228
      %v2678 = vunpack.c.l.bf16 %v2229
      %v2679 = vunpack.c.h.bf16 %v2229
      %v2680 = vunpack.c.l.bf16 %v2230
      %v2681 = vunpack.c.h.bf16 %v2230
      %v2682 = vunpack.c.l.bf16 %v2231
      %v2683 = vunpack.c.h.bf16 %v2231
      %v2684 = vunpack.c.l.bf16 %v2232
      %v2685 = vunpack.c.h.bf16 %v2232
      %v2686 = vunpack.c.l.bf16 %v2233
      %v2687 = vunpack.c.h.bf16 %v2233
      %v2688 = vunpack.c.l.bf16 %v2234
      %v2689 = vunpack.c.h.bf16 %v2234
      %v2690 = vunpack.c.l.bf16 %v2235
      %v2691 = vunpack.c.h.bf16 %v2235
      %v2692 = vunpack.c.l.bf16 %v2236
      %v2693 = vunpack.c.h.bf16 %v2236
      %v2694 = vunpack.c.l.bf16 %v2237
      %v2695 = vunpack.c.h.bf16 %v2237
      %v2696 = vunpack.c.l.bf16 %v2238
      %v2697 = vunpack.c.h.bf16 %v2238
      %v2698 = vunpack.c.l.bf16 %v2239
      %v2699 = vunpack.c.h.bf16 %v2239
      %v2700 = vunpack.c.l.bf16 %v2240
      %v2701 = vunpack.c.h.bf16 %v2240
      %v2702 = vunpack.c.l.bf16 %v2241
      %v2703 = vunpack.c.h.bf16 %v2241
      %v2704 = vunpack.c.l.bf16 %v2242
      %v2705 = vunpack.c.h.bf16 %v2242
      %v2706 = vunpack.c.l.bf16 %v2243
      %v2707 = vunpack.c.h.bf16 %v2243
      %v2708 = vunpack.c.l.bf16 %v2244
      %v2709 = vunpack.c.h.bf16 %v2244
      %v2710 = vunpack.c.l.bf16 %v2245
      %v2711 = vunpack.c.h.bf16 %v2245
      %v2712 = vunpack.c.l.bf16 %v2246
      %v2713 = vunpack.c.h.bf16 %v2246
      %v2714 = vunpack.c.l.bf16 %v2247
      %v2715 = vunpack.c.h.bf16 %v2247
      %v2716 = vunpack.c.l.bf16 %v2248
      %v2717 = vunpack.c.h.bf16 %v2248
      %v2718 = vunpack.c.l.bf16 %v2249
      %v2719 = vunpack.c.h.bf16 %v2249
      %v2720 = vunpack.c.l.bf16 %v2250
      %v2721 = vunpack.c.h.bf16 %v2250
      %v2722 = vunpack.c.l.bf16 %v2251
      %v2723 = vunpack.c.h.bf16 %v2251
      %v2724 = vunpack.c.l.bf16 %v2252
      %v2725 = vunpack.c.h.bf16 %v2252
      %v2726 = vunpack.c.l.bf16 %v2253
      %v2727 = vunpack.c.h.bf16 %v2253
      %v2728 = vunpack.c.l.bf16 %v2254
      %v2729 = vunpack.c.h.bf16 %v2254
      %v2730 = vunpack.c.l.bf16 %v2255
      %v2731 = vunpack.c.h.bf16 %v2255
      %v2732 = vunpack.c.l.bf16 %v2256
      %v2733 = vunpack.c.h.bf16 %v2256
      %v2734 = vunpack.c.l.bf16 %v2257
      %v2735 = vunpack.c.h.bf16 %v2257
      %v2736 = vunpack.c.l.bf16 %v2258
      %v2737 = vunpack.c.h.bf16 %v2258
      %v2738 = vunpack.c.l.bf16 %v2259
      %v2739 = vunpack.c.h.bf16 %v2259
      %v2740 = vunpack.c.l.bf16 %v2260
      %v2741 = vunpack.c.h.bf16 %v2260
      %v2742 = vunpack.c.l.bf16 %v2261
      %v2743 = vunpack.c.h.bf16 %v2261
      %v2744 = vunpack.c.l.bf16 %v2262
      %v2745 = vunpack.c.h.bf16 %v2262
      %v2746 = vunpack.c.l.bf16 %v2263
      %v2747 = vunpack.c.h.bf16 %v2263
      %v2748 = vunpack.c.l.bf16 %v2264
      %v2749 = vunpack.c.h.bf16 %v2264
      %v2750 = vunpack.c.l.bf16 %v2265
      %v2751 = vunpack.c.h.bf16 %v2265
      %v2752 = vunpack.c.l.bf16 %v2266
      %v2753 = vunpack.c.h.bf16 %v2266
      %v2754 = vunpack.c.l.bf16 %v2267
      %v2755 = vunpack.c.h.bf16 %v2267
      %v2756 = vunpack.c.l.bf16 %v2268
      %v2757 = vunpack.c.h.bf16 %v2268
      %v2758 = vunpack.c.l.bf16 %v2269
      %v2759 = vunpack.c.h.bf16 %v2269
      %v2760 = vunpack.c.l.bf16 %v2270
      %v2761 = vunpack.c.h.bf16 %v2270
      %v2762 = vunpack.c.l.bf16 %v2271
      %v2763 = vunpack.c.h.bf16 %v2271
      %v2764 = vunpack.c.l.bf16 %v2272
      %v2765 = vunpack.c.h.bf16 %v2272
      %v2766 = vunpack.c.l.bf16 %v2273
      %v2767 = vunpack.c.h.bf16 %v2273
      %v2768 = vunpack.c.l.bf16 %v2274
      %v2769 = vunpack.c.h.bf16 %v2274
      %v2770 = vunpack.c.l.bf16 %v2275
      %v2771 = vunpack.c.h.bf16 %v2275
      %v2772 = vunpack.c.l.bf16 %v2276
      %v2773 = vunpack.c.h.bf16 %v2276
      %v2774 = vunpack.c.l.bf16 %v2277
      %v2775 = vunpack.c.h.bf16 %v2277
      %v2776 = vunpack.c.l.bf16 %v2278
      %v2777 = vunpack.c.h.bf16 %v2278
      %v2778 = vunpack.c.l.bf16 %v2279
      %v2779 = vunpack.c.h.bf16 %v2279
      %v2780 = vunpack.c.l.bf16 %v2280
      %v2781 = vunpack.c.h.bf16 %v2280
      %v2782 = vunpack.c.l.bf16 %v2281
      %v2783 = vunpack.c.h.bf16 %v2281
      %v2784 = vunpack.c.l.bf16 %v2282
      %v2785 = vunpack.c.h.bf16 %v2282
      %v2786 = vunpack.c.l.bf16 %v2283
      %v2787 = vunpack.c.h.bf16 %v2283
      %v2788 = vunpack.c.l.bf16 %v2284
      %v2789 = vunpack.c.h.bf16 %v2284
      %v2790 = vunpack.c.l.bf16 %v2285
      %v2791 = vunpack.c.h.bf16 %v2285
      %v2792 = vunpack.c.l.bf16 %v2286
      %v2793 = vunpack.c.h.bf16 %v2286
      %v2794 = vunpack.c.l.bf16 %v2287
      %v2795 = vunpack.c.h.bf16 %v2287
      %v2796 = vunpack.c.l.bf16 %v2288
      %v2797 = vunpack.c.h.bf16 %v2288
      %v2798 = vunpack.c.l.bf16 %v2289
      %v2799 = vunpack.c.h.bf16 %v2289
      %v2800 = vunpack.c.l.bf16 %v2290
      %v2801 = vunpack.c.h.bf16 %v2290
      %v2802 = vunpack.c.l.bf16 %v2291
      %v2803 = vunpack.c.h.bf16 %v2291
      %v2804 = vunpack.c.l.bf16 %v2292
      %v2805 = vunpack.c.h.bf16 %v2292
      %v2806 = vunpack.c.l.bf16 %v2293
      %v2807 = vunpack.c.h.bf16 %v2293
      %v2808 = vunpack.c.l.bf16 %v2294
      %v2809 = vunpack.c.h.bf16 %v2294
      %v2810 = vunpack.c.l.bf16 %v2295
      %v2811 = vunpack.c.h.bf16 %v2295
      %v2812 = vunpack.c.l.bf16 %v2296
      %v2813 = vunpack.c.h.bf16 %v2296
      %v2814 = vunpack.c.l.bf16 %v2297
      %v2815 = vunpack.c.h.bf16 %v2297
      %v2816 = vunpack.c.l.bf16 %v2298
      %v2817 = vunpack.c.h.bf16 %v2298
      %v2818 = vunpack.c.l.bf16 %v2299
      %v2819 = vunpack.c.h.bf16 %v2299
      %v2820 = vunpack.c.l.bf16 %v2300
      %v2821 = vunpack.c.h.bf16 %v2300
      %v2822 = vunpack.c.l.bf16 %v2301
      %v2823 = vunpack.c.h.bf16 %v2301
      %v2824 = vunpack.c.l.bf16 %v2302
      %v2825 = vunpack.c.h.bf16 %v2302
      %v2826 = vunpack.c.l.bf16 %v2303
      %v2827 = vunpack.c.h.bf16 %v2303
      %v2828 = vunpack.c.l.bf16 %v2304
      %v2829 = vunpack.c.h.bf16 %v2304
      %v2830 = vunpack.c.l.bf16 %v2305
      %v2831 = vunpack.c.h.bf16 %v2305
      %v2832 = vunpack.c.l.bf16 %v2306
      %v2833 = vunpack.c.h.bf16 %v2306
      %v2834 = vunpack.c.l.bf16 %v2307
      %v2835 = vunpack.c.h.bf16 %v2307
      %v2836 = vunpack.c.l.bf16 %v2308
      %v2837 = vunpack.c.h.bf16 %v2308
      %v2838 = vunpack.c.l.bf16 %v2309
      %v2839 = vunpack.c.h.bf16 %v2309
      %v2840 = vunpack.c.l.bf16 %v2310
      %v2841 = vunpack.c.h.bf16 %v2310
      %v2842 = vunpack.c.l.bf16 %v2311
      %v2843 = vunpack.c.h.bf16 %v2311
      %v2844 = vunpack.c.l.bf16 %v2312
      %v2845 = vunpack.c.h.bf16 %v2312
      %v2846 = vunpack.c.l.bf16 %v2313
      %v2847 = vunpack.c.h.bf16 %v2313
      %v2848 = vunpack.c.l.bf16 %v2314
      %v2849 = vunpack.c.h.bf16 %v2314
      %v2850 = vunpack.c.l.bf16 %v2315
      %v2851 = vunpack.c.h.bf16 %v2315
      %v2852 = vunpack.c.l.bf16 %v2316
      %v2853 = vunpack.c.h.bf16 %v2316
      %v2854 = vunpack.c.l.bf16 %v2317
      %v2855 = vunpack.c.h.bf16 %v2317
      %v2856 = vunpack.c.l.bf16 %v2318
      %v2857 = vunpack.c.h.bf16 %v2318
      %v2858 = vunpack.c.l.bf16 %v2319
      %v2859 = vunpack.c.h.bf16 %v2319
      %v2860 = vunpack.c.l.bf16 %v2320
      %v2861 = vunpack.c.h.bf16 %v2320
      %v2862 = vunpack.c.l.bf16 %v2321
      %v2863 = vunpack.c.h.bf16 %v2321
      %v2864 = vunpack.c.l.bf16 %v2322
      %v2865 = vunpack.c.h.bf16 %v2322
      %v2866 = vunpack.c.l.bf16 %v2323
      %v2867 = vunpack.c.h.bf16 %v2323
      %v2868 = vunpack.c.l.bf16 %v2324
      %v2869 = vunpack.c.h.bf16 %v2324
      %v2870 = vunpack.c.l.bf16 %v2325
      %v2871 = vunpack.c.h.bf16 %v2325
      %v2872 = vunpack.c.l.bf16 %v2326
      %v2873 = vunpack.c.h.bf16 %v2326
      %v2874 = vunpack.c.l.bf16 %v2327
      %v2875 = vunpack.c.h.bf16 %v2327
      %v2876 = vunpack.c.l.bf16 %v2328
      %v2877 = vunpack.c.h.bf16 %v2328
      %v2878 = vunpack.c.l.bf16 %v2329
      %v2879 = vunpack.c.h.bf16 %v2329
      %v2880 = vunpack.c.l.bf16 %v2330
      %v2881 = vunpack.c.h.bf16 %v2330
      %v2882 = vunpack.c.l.bf16 %v2331
      %v2883 = vunpack.c.h.bf16 %v2331
      %v2884 = vunpack.c.l.bf16 %v2332
      %v2885 = vunpack.c.h.bf16 %v2332
      %v2886 = vunpack.c.l.bf16 %v2333
      %v2887 = vunpack.c.h.bf16 %v2333
      %v2888 = vunpack.c.l.bf16 %v2334
      %v2889 = vunpack.c.h.bf16 %v2334
      %v2890 = vunpack.c.l.bf16 %v2335
      %v2891 = vunpack.c.h.bf16 %v2335
      %v2892 = vunpack.c.l.bf16 %v2336
      %v2893 = vunpack.c.h.bf16 %v2336
      %v2894 = vunpack.c.l.bf16 %v2337
      %v2895 = vunpack.c.h.bf16 %v2337
      %v2896 = vunpack.c.l.bf16 %v2338
      %v2897 = vunpack.c.h.bf16 %v2338
      %v2898 = vunpack.c.l.bf16 %v2339
      %v2899 = vunpack.c.h.bf16 %v2339
      %v2900 = vunpack.c.l.bf16 %v2340
      %v2901 = vunpack.c.h.bf16 %v2340
      %v2902 = vunpack.c.l.bf16 %v2341
      %v2903 = vunpack.c.h.bf16 %v2341
      %v2904 = vunpack.c.l.bf16 %v2342
      %v2905 = vunpack.c.h.bf16 %v2342
      %v2906 = vunpack.c.l.bf16 %v2343
      %v2907 = vunpack.c.h.bf16 %v2343
      %v2908 = vunpack.c.l.bf16 %v2344
      %v2909 = vunpack.c.h.bf16 %v2344
      %v2910 = vunpack.c.l.bf16 %v2345
      %v2911 = vunpack.c.h.bf16 %v2345
      %v2912 = vunpack.c.l.bf16 %v2346
      %v2913 = vunpack.c.h.bf16 %v2346
      %v2914 = vunpack.c.l.bf16 %v2347
      %v2915 = vunpack.c.h.bf16 %v2347
      %v2916 = vunpack.c.l.bf16 %v2348
      %v2917 = vunpack.c.h.bf16 %v2348
      %v2918 = vunpack.c.l.bf16 %v2349
      %v2919 = vunpack.c.h.bf16 %v2349
      %v2920 = vunpack.c.l.bf16 %v2350
      %v2921 = vunpack.c.h.bf16 %v2350
      %v2922 = vunpack.c.l.bf16 %v2351
      %v2923 = vunpack.c.h.bf16 %v2351
      %v2924 = vunpack.c.l.bf16 %v2352
      %v2925 = vunpack.c.h.bf16 %v2352
      %v2926 = vunpack.c.l.bf16 %v2353
      %v2927 = vunpack.c.h.bf16 %v2353
      %v2928 = vunpack.c.l.bf16 %v2354
      %v2929 = vunpack.c.h.bf16 %v2354
      %v2930 = vunpack.c.l.bf16 %v2355
      %v2931 = vunpack.c.h.bf16 %v2355
      %v2932 = vunpack.c.l.bf16 %v2356
      %v2933 = vunpack.c.h.bf16 %v2356
      %v2934 = vunpack.c.l.bf16 %v2357
      %v2935 = vunpack.c.h.bf16 %v2357
      %v2936 = vunpack.c.l.bf16 %v2358
      %v2937 = vunpack.c.h.bf16 %v2358
      %v2938 = vunpack.c.l.bf16 %v2359
      %v2939 = vunpack.c.h.bf16 %v2359
      %v2940 = vunpack.c.l.bf16 %v2360
      %v2941 = vunpack.c.h.bf16 %v2360
      %v2942 = vunpack.c.l.bf16 %v2361
      %v2943 = vunpack.c.h.bf16 %v2361
      %v2944 = vunpack.c.l.bf16 %v2362
      %v2945 = vunpack.c.h.bf16 %v2362
      %v2946 = vunpack.c.l.bf16 %v2363
      %v2947 = vunpack.c.h.bf16 %v2363
      %v2948 = vunpack.c.l.bf16 %v2364
      %v2949 = vunpack.c.h.bf16 %v2364
      %v2950 = vunpack.c.l.bf16 %v2365
      %v2951 = vunpack.c.h.bf16 %v2365
      %v2952 = vunpack.c.l.bf16 %v2366
      %v2953 = vunpack.c.h.bf16 %v2366
      %v2954 = vunpack.c.l.bf16 %v2367
      %v2955 = vunpack.c.h.bf16 %v2367
      %v2956 = vunpack.c.l.bf16 %v2368
      %v2957 = vunpack.c.h.bf16 %v2368
      %v2958 = vunpack.c.l.bf16 %v2369
      %v2959 = vunpack.c.h.bf16 %v2369
      %v2960 = vunpack.c.l.bf16 %v2370
      %v2961 = vunpack.c.h.bf16 %v2370
      %v2962 = vunpack.c.l.bf16 %v2371
      %v2963 = vunpack.c.h.bf16 %v2371
      %v2964 = vunpack.c.l.bf16 %v2372
      %v2965 = vunpack.c.h.bf16 %v2372
      %v2966 = vunpack.c.l.bf16 %v2373
      %v2967 = vunpack.c.h.bf16 %v2373
      %v2968 = vunpack.c.l.bf16 %v2374
      %v2969 = vunpack.c.h.bf16 %v2374
      %v2970 = vunpack.c.l.bf16 %v2375
      %v2971 = vunpack.c.h.bf16 %v2375
      %v2972 = vunpack.c.l.bf16 %v2376
      %v2973 = vunpack.c.h.bf16 %v2376
      %v2974 = vunpack.c.l.bf16 %v2377
      %v2975 = vunpack.c.h.bf16 %v2377
      %v2976 = vunpack.c.l.bf16 %v2378
      %v2977 = vunpack.c.h.bf16 %v2378
      %v2978 = vunpack.c.l.bf16 %v2379
      %v2979 = vunpack.c.h.bf16 %v2379
      %v2980 = vunpack.c.l.bf16 %v2380
      %v2981 = vunpack.c.h.bf16 %v2380
      %v2982 = vunpack.c.l.bf16 %v2381
      %v2983 = vunpack.c.h.bf16 %v2381
      %v2984 = vunpack.c.l.bf16 %v2382
      %v2985 = vunpack.c.h.bf16 %v2382
      %v2986 = vunpack.c.l.bf16 %v2383
      %v2987 = vunpack.c.h.bf16 %v2383
      %v2988 = vunpack.c.l.bf16 %v2384
      %v2989 = vunpack.c.h.bf16 %v2384
      %v2990 = vunpack.c.l.bf16 %v2385
      %v2991 = vunpack.c.h.bf16 %v2385
      %v2992 = vunpack.c.l.bf16 %v2386
      %v2993 = vunpack.c.h.bf16 %v2386
      %v2994 = vunpack.c.l.bf16 %v2387
      %v2995 = vunpack.c.h.bf16 %v2387
      %v2996 = vunpack.c.l.bf16 %v2388
      %v2997 = vunpack.c.h.bf16 %v2388
      %v2998 = vunpack.c.l.bf16 %v2389
      %v2999 = vunpack.c.h.bf16 %v2389
      %v3000 = vunpack.c.l.bf16 %v2390
      %v3001 = vunpack.c.h.bf16 %v2390
      %v3002 = vunpack.c.l.bf16 %v2391
      %v3003 = vunpack.c.h.bf16 %v2391
      %v3004 = vunpack.c.l.bf16 %v2392
      %v3005 = vunpack.c.h.bf16 %v2392
      %v3006 = vunpack.c.l.bf16 %v2393
      %v3007 = vunpack.c.h.bf16 %v2393
      %v3008 = vunpack.c.l.bf16 %v2394
      %v3009 = vunpack.c.h.bf16 %v2394
      %v3010 = vunpack.c.l.bf16 %v2395
      %v3011 = vunpack.c.h.bf16 %v2395
      %v3012 = vunpack.c.l.bf16 %v2396
      %v3013 = vunpack.c.h.bf16 %v2396
      %v3014 = vunpack.c.l.bf16 %v2397
      %v3015 = vunpack.c.h.bf16 %v2397
      %v3016 = vunpack.c.l.bf16 %v2398
      %v3017 = vunpack.c.h.bf16 %v2398
      %v3018 = vunpack.c.l.bf16 %v2399
      %v3019 = vunpack.c.h.bf16 %v2399
      %v3020 = vunpack.c.l.bf16 %v2400
      %v3021 = vunpack.c.h.bf16 %v2400
      %v3022 = vunpack.c.l.bf16 %v2401
      %v3023 = vunpack.c.h.bf16 %v2401
      %v3024 = vunpack.c.l.bf16 %v2402
      %v3025 = vunpack.c.h.bf16 %v2402
      %v3026 = vunpack.c.l.bf16 %v2403
      %v3027 = vunpack.c.h.bf16 %v2403
      %v3028 = vunpack.c.l.bf16 %v2404
      %v3029 = vunpack.c.h.bf16 %v2404
      %v3030 = vunpack.c.l.bf16 %v2405
      %v3031 = vunpack.c.h.bf16 %v2405
      %v3032 = vunpack.c.l.bf16 %v2406
      %v3033 = vunpack.c.h.bf16 %v2406
      %v3034 = vunpack.c.l.bf16 %v2407
      %v3035 = vunpack.c.h.bf16 %v2407
      %v3036 = vunpack.c.l.bf16 %v2408
      %v3037 = vunpack.c.h.bf16 %v2408
      %v3038 = vunpack.c.l.bf16 %v2409
      %v3039 = vunpack.c.h.bf16 %v2409
      %v3040 = vunpack.c.l.bf16 %v2410
      %v3041 = vunpack.c.h.bf16 %v2410
      %v3042 = vunpack.c.l.bf16 %v2411
      %v3043 = vunpack.c.h.bf16 %v2411
      %v3044 = vunpack.c.l.bf16 %v2412
      %v3045 = vunpack.c.h.bf16 %v2412
      %v3046 = vunpack.c.l.bf16 %v2413
      %v3047 = vunpack.c.h.bf16 %v2413
      %v3048 = vunpack.c.l.bf16 %v2414
      %v3049 = vunpack.c.h.bf16 %v2414
      %v3050 = vunpack.c.l.bf16 %v2415
      %v3051 = vunpack.c.h.bf16 %v2415
      %v3052 = vunpack.c.l.bf16 %v2416
      %v3053 = vunpack.c.h.bf16 %v2416
      %v3054 = vunpack.c.l.bf16 %v2417
      %v3055 = vunpack.c.h.bf16 %v2417
      %v3056 = vunpack.c.l.bf16 %v2418
      %v3057 = vunpack.c.h.bf16 %v2418
      %v3058 = vunpack.c.l.bf16 %v2419
      %v3059 = vunpack.c.h.bf16 %v2419
      %v3060 = vunpack.c.l.bf16 %v2420
      %v3061 = vunpack.c.h.bf16 %v2420
      %v3062 = vunpack.c.l.bf16 %v2421
      %v3063 = vunpack.c.h.bf16 %v2421
      %v3064 = vunpack.c.l.bf16 %v2422
      %v3065 = vunpack.c.h.bf16 %v2422
      %v3066 = vunpack.c.l.bf16 %v2423
      %v3067 = vunpack.c.h.bf16 %v2423
      %v3068 = vunpack.c.l.bf16 %v2424
      %v3069 = vunpack.c.h.bf16 %v2424
      %v3070 = vunpack.c.l.bf16 %v2425
      %v3071 = vunpack.c.h.bf16 %v2425
      %v3072 = vunpack.c.l.bf16 %v2426
      %v3073 = vunpack.c.h.bf16 %v2426
      %v3074 = vunpack.c.l.bf16 %v2427
      %v3075 = vunpack.c.h.bf16 %v2427
      %v3076 = vunpack.c.l.bf16 %v2428
      %v3077 = vunpack.c.h.bf16 %v2428
      %v3078 = vunpack.c.l.bf16 %v2429
      %v3079 = vunpack.c.h.bf16 %v2429
      %v3080 = vunpack.c.l.bf16 %v2430
      %v3081 = vunpack.c.h.bf16 %v2430
      %v3082 = vunpack.c.l.bf16 %v2431
      %v3083 = vunpack.c.h.bf16 %v2431
      %v3084 = vunpack.c.l.bf16 %v2432
      %v3085 = vunpack.c.h.bf16 %v2432
      %v3086 = vunpack.c.l.bf16 %v2433
      %v3087 = vunpack.c.h.bf16 %v2433
      %v3088 = vunpack.c.l.bf16 %v2434
      %v3089 = vunpack.c.h.bf16 %v2434
      %v3090 = vunpack.c.l.bf16 %v2435
      %v3091 = vunpack.c.h.bf16 %v2435
      %v3092 = vunpack.c.l.bf16 %v2436
      %v3093 = vunpack.c.h.bf16 %v2436
      %v3094 = vunpack.c.l.bf16 %v2437
      %v3095 = vunpack.c.h.bf16 %v2437
      %v3096 = vunpack.c.l.bf16 %v2438
      %v3097 = vunpack.c.h.bf16 %v2438
      %v3098 = vunpack.c.l.bf16 %v2439
      %v3099 = vunpack.c.h.bf16 %v2439
      %v3100 = vunpack.c.l.bf16 %v2440
      %v3101 = vunpack.c.h.bf16 %v2440
      %v3102 = vunpack.c.l.bf16 %v2441
      %v3103 = vunpack.c.h.bf16 %v2441
      %v3104 = vunpack.c.l.bf16 %v2442
      %v3105 = vunpack.c.h.bf16 %v2442
      %v3106 = vunpack.c.l.bf16 %v2443
      %v3107 = vunpack.c.h.bf16 %v2443
      %v3108 = vunpack.c.l.bf16 %v2444
      %v3109 = vunpack.c.h.bf16 %v2444
      %v3110 = vunpack.c.l.bf16 %v2445
      %v3111 = vunpack.c.h.bf16 %v2445
      %v3112 = vunpack.c.l.bf16 %v2446
      %v3113 = vunpack.c.h.bf16 %v2446
      %v3114 = vunpack.c.l.bf16 %v2447
      %v3115 = vunpack.c.h.bf16 %v2447
      %v3116 = vunpack.c.l.bf16 %v2448
      %v3117 = vunpack.c.h.bf16 %v2448
      %v3118 = vunpack.c.l.bf16 %v2449
      %v3119 = vunpack.c.h.bf16 %v2449
      %v3120 = vunpack.c.l.bf16 %v2450
      %v3121 = vunpack.c.h.bf16 %v2450
      %v3122 = vunpack.c.l.bf16 %v2451
      %v3123 = vunpack.c.h.bf16 %v2451
      %v3124 = vunpack.c.l.bf16 %v2452
      %v3125 = vunpack.c.h.bf16 %v2452
      %v3126 = vunpack.c.l.bf16 %v2453
      %v3127 = vunpack.c.h.bf16 %v2453
      %v3128 = vunpack.c.l.bf16 %v2454
      %v3129 = vunpack.c.h.bf16 %v2454
      %v3130 = vunpack.c.l.bf16 %v2455
      %v3131 = vunpack.c.h.bf16 %v2455
      %v3132 = vunpack.c.l.bf16 %v2456
      %v3133 = vunpack.c.h.bf16 %v2456
      %v3134 = vunpack.c.l.bf16 %v2457
      %v3135 = vunpack.c.h.bf16 %v2457
      %v3136 = vunpack.c.l.bf16 %v2458
      %v3137 = vunpack.c.h.bf16 %v2458
      %v3138 = vunpack.c.l.bf16 %v2459
      %v3139 = vunpack.c.h.bf16 %v2459
      %v3140 = vunpack.c.l.bf16 %v2460
      %v3141 = vunpack.c.h.bf16 %v2460
      %v3142 = vunpack.c.l.bf16 %v2461
      %v3143 = vunpack.c.h.bf16 %v2461
      %v3144 = vunpack.c.l.bf16 %v2462
      %v3145 = vunpack.c.h.bf16 %v2462
      %v3146 = vunpack.c.l.bf16 %v2463
      %v3147 = vunpack.c.h.bf16 %v2463
      %v3148 = vunpack.c.l.bf16 %v2464
      %v3149 = vunpack.c.h.bf16 %v2464
      %v3150 = vunpack.c.l.bf16 %v2465
      %v3151 = vunpack.c.h.bf16 %v2465
      %v3152 = vunpack.c.l.bf16 %v2466
      %v3153 = vunpack.c.h.bf16 %v2466
      %v3154 = vunpack.c.l.bf16 %v2467
      %v3155 = vunpack.c.h.bf16 %v2467
      %v3156 = vunpack.c.l.bf16 %v2468
      %v3157 = vunpack.c.h.bf16 %v2468
      %v3158 = vunpack.c.l.bf16 %v2469
      %v3159 = vunpack.c.h.bf16 %v2469
      %v3160 = vunpack.c.l.bf16 %v2470
      %v3161 = vunpack.c.h.bf16 %v2470
      %v3162 = vunpack.c.l.bf16 %v2471
      %v3163 = vunpack.c.h.bf16 %v2471
      %v3164 = vunpack.c.l.bf16 %v2472
      %v3165 = vunpack.c.h.bf16 %v2472
      %v3166 = vunpack.c.l.bf16 %v2473
      %v3167 = vunpack.c.h.bf16 %v2473
      %v3168 = vunpack.c.l.bf16 %v2474
      %v3169 = vunpack.c.h.bf16 %v2474
      %v3170 = vunpack.c.l.bf16 %v2475
      %v3171 = vunpack.c.h.bf16 %v2475
      %v3172 = vunpack.c.l.bf16 %v2476
      %v3173 = vunpack.c.h.bf16 %v2476
      %v3174 = vunpack.c.l.bf16 %v2477
      %v3175 = vunpack.c.h.bf16 %v2477
      %v3176 = vunpack.c.l.bf16 %v2478
      %v3177 = vunpack.c.h.bf16 %v2478
      %v3178 = vunpack.c.l.bf16 %v2479
      %v3179 = vunpack.c.h.bf16 %v2479
      %v3180 = vunpack.c.l.bf16 %v2480
      %v3181 = vunpack.c.h.bf16 %v2480
      %v3182 = vunpack.c.l.bf16 %v2481
      %v3183 = vunpack.c.h.bf16 %v2481
      %v3184 = vunpack.c.l.bf16 %v2482
      %v3185 = vunpack.c.h.bf16 %v2482
      %v3186 = vunpack.c.l.bf16 %v2483
      %v3187 = vunpack.c.h.bf16 %v2483
      %v3188 = vunpack.c.l.bf16 %v2484
      %v3189 = vunpack.c.h.bf16 %v2484
      %v3190 = vunpack.c.l.bf16 %v2485
      %v3191 = vunpack.c.h.bf16 %v2485
      %v3192 = vunpack.c.l.bf16 %v2486
      %v3193 = vunpack.c.h.bf16 %v2486
      %v3194 = vunpack.c.l.bf16 %v2487
      %v3195 = vunpack.c.h.bf16 %v2487
      %v3196 = vunpack.c.l.bf16 %v2488
      %v3197 = vunpack.c.h.bf16 %v2488
      %v3198 = vunpack.c.l.bf16 %v2489
      %v3199 = vunpack.c.h.bf16 %v2489
      %v3200 = vunpack.c.l.bf16 %v2490
      %v3201 = vunpack.c.h.bf16 %v2490
      %v3202 = vunpack.c.l.bf16 %v2491
      %v3203 = vunpack.c.h.bf16 %v2491
      %v3204 = vunpack.c.l.bf16 %v2492
      %v3205 = vunpack.c.h.bf16 %v2492
      %v3206 = vunpack.c.l.bf16 %v2493
      %v3207 = vunpack.c.h.bf16 %v2493
      %v3208 = vunpack.c.l.bf16 %v2494
      %v3209 = vunpack.c.h.bf16 %v2494
      %v3210 = vunpack.c.l.bf16 %v2495
      %v3211 = vunpack.c.h.bf16 %v2495
      %v3212 = vunpack.c.l.bf16 %v2496
      %v3213 = vunpack.c.h.bf16 %v2496
      %v3214 = vunpack.c.l.bf16 %v2497
      %v3215 = vunpack.c.h.bf16 %v2497
      %v3216 = vunpack.c.l.bf16 %v2498
      %v3217 = vunpack.c.h.bf16 %v2498
      %v3218 = vunpack.c.l.bf16 %v2499
      %v3219 = vunpack.c.h.bf16 %v2499
      %v3220 = vunpack.c.l.bf16 %v2500
      %v3221 = vunpack.c.h.bf16 %v2500
      %v3222 = vunpack.c.l.bf16 %v2501
      %v3223 = vunpack.c.h.bf16 %v2501
      %v3224 = vunpack.c.l.bf16 %v2502
      %v3225 = vunpack.c.h.bf16 %v2502
      %v3226 = vunpack.c.l.bf16 %v2503
      %v3227 = vunpack.c.h.bf16 %v2503
      %v3228 = vunpack.c.l.bf16 %v2504
      %v3229 = vunpack.c.h.bf16 %v2504
      %v3230 = vunpack.c.l.bf16 %v2505
      %v3231 = vunpack.c.h.bf16 %v2505
      %v3232 = vunpack.c.l.bf16 %v2506
      %v3233 = vunpack.c.h.bf16 %v2506
      %v3234 = vunpack.c.l.bf16 %v2507
      %v3235 = vunpack.c.h.bf16 %v2507
      %v3236 = vunpack.c.l.bf16 %v2508
      %v3237 = vunpack.c.h.bf16 %v2508
      %v3238 = vunpack.c.l.bf16 %v2509
      %v3239 = vunpack.c.h.bf16 %v2509
      %v3240 = vunpack.c.l.bf16 %v2510
      %v3241 = vunpack.c.h.bf16 %v2510
      %v3242 = vunpack.c.l.bf16 %v2511
      %v3243 = vunpack.c.h.bf16 %v2511
      %v3244 = vunpack.c.l.bf16 %v2512
      %v3245 = vunpack.c.h.bf16 %v2512
      %v3246 = vunpack.c.l.bf16 %v2513
      %v3247 = vunpack.c.h.bf16 %v2513
      %v3248 = vunpack.c.l.bf16 %v2514
      %v3249 = vunpack.c.h.bf16 %v2514
      %v3250 = vunpack.c.l.bf16 %v2515
      %v3251 = vunpack.c.h.bf16 %v2515
      %v3252 = vunpack.c.l.bf16 %v2516
      %v3253 = vunpack.c.h.bf16 %v2516
      %v3254 = vunpack.c.l.bf16 %v2517
      %v3255 = vunpack.c.h.bf16 %v2517
      %v3256 = vunpack.c.l.bf16 %v2518
      %v3257 = vunpack.c.h.bf16 %v2518
      %v3258 = vunpack.c.l.bf16 %v2519
      %v3259 = vunpack.c.h.bf16 %v2519
      %v3260 = vunpack.c.l.bf16 %v2520
      %v3261 = vunpack.c.h.bf16 %v2520
      %v3262 = vunpack.c.l.bf16 %v2521
      %v3263 = vunpack.c.h.bf16 %v2521
      %v3264 = vunpack.c.l.bf16 %v2522
      %v3265 = vunpack.c.h.bf16 %v2522
      %v3266 = vunpack.c.l.bf16 %v2523
      %v3267 = vunpack.c.h.bf16 %v2523
      %v3268 = vunpack.c.l.bf16 %v2524
      %v3269 = vunpack.c.h.bf16 %v2524
      %v3270 = vunpack.c.l.bf16 %v2525
      %v3271 = vunpack.c.h.bf16 %v2525
      %v3272 = vunpack.c.l.bf16 %v2526
      %v3273 = vunpack.c.h.bf16 %v2526
      %v3274 = vunpack.c.l.bf16 %v2527
      %v3275 = vunpack.c.h.bf16 %v2527
      %v3276 = vunpack.c.l.bf16 %v2528
      %v3277 = vunpack.c.h.bf16 %v2528
      %v3278 = vunpack.c.l.bf16 %v2529
      %v3279 = vunpack.c.h.bf16 %v2529
      %v3280 = vunpack.c.l.bf16 %v2530
      %v3281 = vunpack.c.h.bf16 %v2530
      %v3282 = vunpack.c.l.bf16 %v2531
      %v3283 = vunpack.c.h.bf16 %v2531
      %v3284 = vunpack.c.l.bf16 %v2532
      %v3285 = vunpack.c.h.bf16 %v2532
      %v3286 = vunpack.c.l.bf16 %v2533
      %v3287 = vunpack.c.h.bf16 %v2533
      %v3288 = vunpack.c.l.bf16 %v2534
      %v3289 = vunpack.c.h.bf16 %v2534
      %v3290 = vunpack.c.l.bf16 %v2535
      %v3291 = vunpack.c.h.bf16 %v2535
      %v3292 = vunpack.c.l.bf16 %v2536
      %v3293 = vunpack.c.h.bf16 %v2536
      %v3294 = vunpack.c.l.bf16 %v2537
      %v3295 = vunpack.c.h.bf16 %v2537
      %v3296 = vunpack.c.l.bf16 %v2538
      %v3297 = vunpack.c.h.bf16 %v2538
      %v3298 = vunpack.c.l.bf16 %v2539
      %v3299 = vunpack.c.h.bf16 %v2539
      %v3300 = vunpack.c.l.bf16 %v2540
      %v3301 = vunpack.c.h.bf16 %v2540
      %v3302 = vunpack.c.l.bf16 %v2541
      %v3303 = vunpack.c.h.bf16 %v2541
      %v3304 = vunpack.c.l.bf16 %v2542
      %v3305 = vunpack.c.h.bf16 %v2542
      %v3306 = vunpack.c.l.bf16 %v2543
      %v3307 = vunpack.c.h.bf16 %v2543
      %v3308 = vunpack.c.l.bf16 %v2544
      %v3309 = vunpack.c.h.bf16 %v2544
      %v3310 = vunpack.c.l.bf16 %v2545
      %v3311 = vunpack.c.h.bf16 %v2545
      %v3312 = vunpack.c.l.bf16 %v2546
      %v3313 = vunpack.c.h.bf16 %v2546
      %v3314 = vunpack.c.l.bf16 %v2547
      %v3315 = vunpack.c.h.bf16 %v2547
      %v3316 = vadd.f32 %v2548, %v2554
      %v3317 = vadd.f32 %v3316, %v2560
      %v3318 = vadd.f32 %v3317, %v2566
      %v3319 = vadd.f32 %v3318, %v2572
      %v3320 = vadd.f32 %v3319, %v2578
      %v3321 = vadd.f32 %v3320, %v2584
      %v3322 = vadd.f32 %v3321, %v2590
      %v3323 = vadd.f32 %v3322, %v2596
      %v3324 = vadd.f32 %v3323, %v2602
      %v3325 = vadd.f32 %v3324, %v2608
      %v3326 = vadd.f32 %v3325, %v2614
      %v3327 = vadd.f32 %v3326, %v2620
      %v3328 = vadd.f32 %v3327, %v2626
      %v3329 = vadd.f32 %v3328, %v2632
      %v3330 = vadd.f32 %v3329, %v2638
      %v3331 = vrot.slane %v3330, 4
      %v3332 = vadd.f32 %v3330, %v3331
      %v3333 = vrot.slane %v3332, 2
      %v3334 = vadd.f32 %v3332, %v3333
      %v3335 = vrot.slane %v3334, 1
      %v3336 = vadd.f32 %v3334, %v3335
      %v3337 = vadd.f32 %v2549, %v2555
      %v3338 = vadd.f32 %v3337, %v2561
      %v3339 = vadd.f32 %v3338, %v2567
      %v3340 = vadd.f32 %v3339, %v2573
      %v3341 = vadd.f32 %v3340, %v2579
      %v3342 = vadd.f32 %v3341, %v2585
      %v3343 = vadd.f32 %v3342, %v2591
      %v3344 = vadd.f32 %v3343, %v2597
      %v3345 = vadd.f32 %v3344, %v2603
      %v3346 = vadd.f32 %v3345, %v2609
      %v3347 = vadd.f32 %v3346, %v2615
      %v3348 = vadd.f32 %v3347, %v2621
      %v3349 = vadd.f32 %v3348, %v2627
      %v3350 = vadd.f32 %v3349, %v2633
      %v3351 = vadd.f32 %v3350, %v2639
      %v3352 = vrot.slane %v3351, 4
      %v3353 = vadd.f32 %v3351, %v3352
      %v3354 = vrot.slane %v3353, 2
      %v3355 = vadd.f32 %v3353, %v3354
      %v3356 = vrot.slane %v3355, 1
      %v3357 = vadd.f32 %v3355, %v3356
      %v3358 = vadd.f32 %v2550, %v2556
      %v3359 = vadd.f32 %v3358, %v2562
      %v3360 = vadd.f32 %v3359, %v2568
      %v3361 = vadd.f32 %v3360, %v2574
      %v3362 = vadd.f32 %v3361, %v2580
      %v3363 = vadd.f32 %v3362, %v2586
      %v3364 = vadd.f32 %v3363, %v2592
      %v3365 = vadd.f32 %v3364, %v2598
      %v3366 = vadd.f32 %v3365, %v2604
      %v3367 = vadd.f32 %v3366, %v2610
      %v3368 = vadd.f32 %v3367, %v2616
      %v3369 = vadd.f32 %v3368, %v2622
      %v3370 = vadd.f32 %v3369, %v2628
      %v3371 = vadd.f32 %v3370, %v2634
      %v3372 = vadd.f32 %v3371, %v2640
      %v3373 = vrot.slane %v3372, 4
      %v3374 = vadd.f32 %v3372, %v3373
      %v3375 = vrot.slane %v3374, 2
      %v3376 = vadd.f32 %v3374, %v3375
      %v3377 = vrot.slane %v3376, 1
      %v3378 = vadd.f32 %v3376, %v3377
      %v3379 = vadd.f32 %v2551, %v2557
      %v3380 = vadd.f32 %v3379, %v2563
      %v3381 = vadd.f32 %v3380, %v2569
      %v3382 = vadd.f32 %v3381, %v2575
      %v3383 = vadd.f32 %v3382, %v2581
      %v3384 = vadd.f32 %v3383, %v2587
      %v3385 = vadd.f32 %v3384, %v2593
      %v3386 = vadd.f32 %v3385, %v2599
      %v3387 = vadd.f32 %v3386, %v2605
      %v3388 = vadd.f32 %v3387, %v2611
      %v3389 = vadd.f32 %v3388, %v2617
      %v3390 = vadd.f32 %v3389, %v2623
      %v3391 = vadd.f32 %v3390, %v2629
      %v3392 = vadd.f32 %v3391, %v2635
      %v3393 = vadd.f32 %v3392, %v2641
      %v3394 = vrot.slane %v3393, 4
      %v3395 = vadd.f32 %v3393, %v3394
      %v3396 = vrot.slane %v3395, 2
      %v3397 = vadd.f32 %v3395, %v3396
      %v3398 = vrot.slane %v3397, 1
      %v3399 = vadd.f32 %v3397, %v3398
      %v3400 = vadd.f32 %v2552, %v2558
      %v3401 = vadd.f32 %v3400, %v2564
      %v3402 = vadd.f32 %v3401, %v2570
      %v3403 = vadd.f32 %v3402, %v2576
      %v3404 = vadd.f32 %v3403, %v2582
      %v3405 = vadd.f32 %v3404, %v2588
      %v3406 = vadd.f32 %v3405, %v2594
      %v3407 = vadd.f32 %v3406, %v2600
      %v3408 = vadd.f32 %v3407, %v2606
      %v3409 = vadd.f32 %v3408, %v2612
      %v3410 = vadd.f32 %v3409, %v2618
      %v3411 = vadd.f32 %v3410, %v2624
      %v3412 = vadd.f32 %v3411, %v2630
      %v3413 = vadd.f32 %v3412, %v2636
      %v3414 = vadd.f32 %v3413, %v2642
      %v3415 = vrot.slane %v3414, 4
      %v3416 = vadd.f32 %v3414, %v3415
      %v3417 = vrot.slane %v3416, 2
      %v3418 = vadd.f32 %v3416, %v3417
      %v3419 = vrot.slane %v3418, 1
      %v3420 = vadd.f32 %v3418, %v3419
      %v3421 = vadd.f32 %v2553, %v2559
      %v3422 = vadd.f32 %v3421, %v2565
      %v3423 = vadd.f32 %v3422, %v2571
      %v3424 = vadd.f32 %v3423, %v2577
      %v3425 = vadd.f32 %v3424, %v2583
      %v3426 = vadd.f32 %v3425, %v2589
      %v3427 = vadd.f32 %v3426, %v2595
      %v3428 = vadd.f32 %v3427, %v2601
      %v3429 = vadd.f32 %v3428, %v2607
      %v3430 = vadd.f32 %v3429, %v2613
      %v3431 = vadd.f32 %v3430, %v2619
      %v3432 = vadd.f32 %v3431, %v2625
      %v3433 = vadd.f32 %v3432, %v2631
      %v3434 = vadd.f32 %v3433, %v2637
      %v3435 = vadd.f32 %v3434, %v2643
      %v3436 = vrot.slane %v3435, 4
      %v3437 = vadd.f32 %v3435, %v3436
      %v3438 = vrot.slane %v3437, 2
      %v3439 = vadd.f32 %v3437, %v3438
      %v3440 = vrot.slane %v3439, 1
      %v3441 = vadd.f32 %v3439, %v3440
      %v3442 = vadd.f32 %v2644, %v2650
      %v3443 = vadd.f32 %v3442, %v2656
      %v3444 = vadd.f32 %v3443, %v2662
      %v3445 = vadd.f32 %v3444, %v2668
      %v3446 = vadd.f32 %v3445, %v2674
      %v3447 = vadd.f32 %v3446, %v2680
      %v3448 = vadd.f32 %v3447, %v2686
      %v3449 = vadd.f32 %v3448, %v2692
      %v3450 = vadd.f32 %v3449, %v2698
      %v3451 = vadd.f32 %v3450, %v2704
      %v3452 = vadd.f32 %v3451, %v2710
      %v3453 = vadd.f32 %v3452, %v2716
      %v3454 = vadd.f32 %v3453, %v2722
      %v3455 = vadd.f32 %v3454, %v2728
      %v3456 = vadd.f32 %v3455, %v2734
      %v3457 = vrot.slane %v3456, 4
      %v3458 = vadd.f32 %v3456, %v3457
      %v3459 = vrot.slane %v3458, 2
      %v3460 = vadd.f32 %v3458, %v3459
      %v3461 = vrot.slane %v3460, 1
      %v3462 = vadd.f32 %v3460, %v3461
      %v3463 = vadd.f32 %v2645, %v2651
      %v3464 = vadd.f32 %v3463, %v2657
      %v3465 = vadd.f32 %v3464, %v2663
      %v3466 = vadd.f32 %v3465, %v2669
      %v3467 = vadd.f32 %v3466, %v2675
      %v3468 = vadd.f32 %v3467, %v2681
      %v3469 = vadd.f32 %v3468, %v2687
      %v3470 = vadd.f32 %v3469, %v2693
      %v3471 = vadd.f32 %v3470, %v2699
      %v3472 = vadd.f32 %v3471, %v2705
      %v3473 = vadd.f32 %v3472, %v2711
      %v3474 = vadd.f32 %v3473, %v2717
      %v3475 = vadd.f32 %v3474, %v2723
      %v3476 = vadd.f32 %v3475, %v2729
      %v3477 = vadd.f32 %v3476, %v2735
      %v3478 = vrot.slane %v3477, 4
      %v3479 = vadd.f32 %v3477, %v3478
      %v3480 = vrot.slane %v3479, 2
      %v3481 = vadd.f32 %v3479, %v3480
      %v3482 = vrot.slane %v3481, 1
      %v3483 = vadd.f32 %v3481, %v3482
      %v3484 = vadd.f32 %v2646, %v2652
      %v3485 = vadd.f32 %v3484, %v2658
      %v3486 = vadd.f32 %v3485, %v2664
      %v3487 = vadd.f32 %v3486, %v2670
      %v3488 = vadd.f32 %v3487, %v2676
      %v3489 = vadd.f32 %v3488, %v2682
      %v3490 = vadd.f32 %v3489, %v2688
      %v3491 = vadd.f32 %v3490, %v2694
      %v3492 = vadd.f32 %v3491, %v2700
      %v3493 = vadd.f32 %v3492, %v2706
      %v3494 = vadd.f32 %v3493, %v2712
      %v3495 = vadd.f32 %v3494, %v2718
      %v3496 = vadd.f32 %v3495, %v2724
      %v3497 = vadd.f32 %v3496, %v2730
      %v3498 = vadd.f32 %v3497, %v2736
      %v3499 = vrot.slane %v3498, 4
      %v3500 = vadd.f32 %v3498, %v3499
      %v3501 = vrot.slane %v3500, 2
      %v3502 = vadd.f32 %v3500, %v3501
      %v3503 = vrot.slane %v3502, 1
      %v3504 = vadd.f32 %v3502, %v3503
      %v3505 = vadd.f32 %v2647, %v2653
      %v3506 = vadd.f32 %v3505, %v2659
      %v3507 = vadd.f32 %v3506, %v2665
      %v3508 = vadd.f32 %v3507, %v2671
      %v3509 = vadd.f32 %v3508, %v2677
      %v3510 = vadd.f32 %v3509, %v2683
      %v3511 = vadd.f32 %v3510, %v2689
      %v3512 = vadd.f32 %v3511, %v2695
      %v3513 = vadd.f32 %v3512, %v2701
      %v3514 = vadd.f32 %v3513, %v2707
      %v3515 = vadd.f32 %v3514, %v2713
      %v3516 = vadd.f32 %v3515, %v2719
      %v3517 = vadd.f32 %v3516, %v2725
      %v3518 = vadd.f32 %v3517, %v2731
      %v3519 = vadd.f32 %v3518, %v2737
      %v3520 = vrot.slane %v3519, 4
      %v3521 = vadd.f32 %v3519, %v3520
      %v3522 = vrot.slane %v3521, 2
      %v3523 = vadd.f32 %v3521, %v3522
      %v3524 = vrot.slane %v3523, 1
      %v3525 = vadd.f32 %v3523, %v3524
      %v3526 = vadd.f32 %v2648, %v2654
      %v3527 = vadd.f32 %v3526, %v2660
      %v3528 = vadd.f32 %v3527, %v2666
      %v3529 = vadd.f32 %v3528, %v2672
      %v3530 = vadd.f32 %v3529, %v2678
      %v3531 = vadd.f32 %v3530, %v2684
      %v3532 = vadd.f32 %v3531, %v2690
      %v3533 = vadd.f32 %v3532, %v2696
      %v3534 = vadd.f32 %v3533, %v2702
      %v3535 = vadd.f32 %v3534, %v2708
      %v3536 = vadd.f32 %v3535, %v2714
      %v3537 = vadd.f32 %v3536, %v2720
      %v3538 = vadd.f32 %v3537, %v2726
      %v3539 = vadd.f32 %v3538, %v2732
      %v3540 = vadd.f32 %v3539, %v2738
      %v3541 = vrot.slane %v3540, 4
      %v3542 = vadd.f32 %v3540, %v3541
      %v3543 = vrot.slane %v3542, 2
      %v3544 = vadd.f32 %v3542, %v3543
      %v3545 = vrot.slane %v3544, 1
      %v3546 = vadd.f32 %v3544, %v3545
      %v3547 = vadd.f32 %v2649, %v2655
      %v3548 = vadd.f32 %v3547, %v2661
      %v3549 = vadd.f32 %v3548, %v2667
      %v3550 = vadd.f32 %v3549, %v2673
      %v3551 = vadd.f32 %v3550, %v2679
      %v3552 = vadd.f32 %v3551, %v2685
      %v3553 = vadd.f32 %v3552, %v2691
      %v3554 = vadd.f32 %v3553, %v2697
      %v3555 = vadd.f32 %v3554, %v2703
      %v3556 = vadd.f32 %v3555, %v2709
      %v3557 = vadd.f32 %v3556, %v2715
      %v3558 = vadd.f32 %v3557, %v2721
      %v3559 = vadd.f32 %v3558, %v2727
      %v3560 = vadd.f32 %v3559, %v2733
      %v3561 = vadd.f32 %v3560, %v2739
      %v3562 = vrot.slane %v3561, 4
      %v3563 = vadd.f32 %v3561, %v3562
      %v3564 = vrot.slane %v3563, 2
      %v3565 = vadd.f32 %v3563, %v3564
      %v3566 = vrot.slane %v3565, 1
      %v3567 = vadd.f32 %v3565, %v3566
      %v3568 = vadd.f32 %v2740, %v2746
      %v3569 = vadd.f32 %v3568, %v2752
      %v3570 = vadd.f32 %v3569, %v2758
      %v3571 = vadd.f32 %v3570, %v2764
      %v3572 = vadd.f32 %v3571, %v2770
      %v3573 = vadd.f32 %v3572, %v2776
      %v3574 = vadd.f32 %v3573, %v2782
      %v3575 = vadd.f32 %v3574, %v2788
      %v3576 = vadd.f32 %v3575, %v2794
      %v3577 = vadd.f32 %v3576, %v2800
      %v3578 = vadd.f32 %v3577, %v2806
      %v3579 = vadd.f32 %v3578, %v2812
      %v3580 = vadd.f32 %v3579, %v2818
      %v3581 = vadd.f32 %v3580, %v2824
      %v3582 = vadd.f32 %v3581, %v2830
      %v3583 = vrot.slane %v3582, 4
      %v3584 = vadd.f32 %v3582, %v3583
      %v3585 = vrot.slane %v3584, 2
      %v3586 = vadd.f32 %v3584, %v3585
      %v3587 = vrot.slane %v3586, 1
      %v3588 = vadd.f32 %v3586, %v3587
      %v3589 = vadd.f32 %v2741, %v2747
      %v3590 = vadd.f32 %v3589, %v2753
      %v3591 = vadd.f32 %v3590, %v2759
      %v3592 = vadd.f32 %v3591, %v2765
      %v3593 = vadd.f32 %v3592, %v2771
      %v3594 = vadd.f32 %v3593, %v2777
      %v3595 = vadd.f32 %v3594, %v2783
      %v3596 = vadd.f32 %v3595, %v2789
      %v3597 = vadd.f32 %v3596, %v2795
      %v3598 = vadd.f32 %v3597, %v2801
      %v3599 = vadd.f32 %v3598, %v2807
      %v3600 = vadd.f32 %v3599, %v2813
      %v3601 = vadd.f32 %v3600, %v2819
      %v3602 = vadd.f32 %v3601, %v2825
      %v3603 = vadd.f32 %v3602, %v2831
      %v3604 = vrot.slane %v3603, 4
      %v3605 = vadd.f32 %v3603, %v3604
      %v3606 = vrot.slane %v3605, 2
      %v3607 = vadd.f32 %v3605, %v3606
      %v3608 = vrot.slane %v3607, 1
      %v3609 = vadd.f32 %v3607, %v3608
      %v3610 = vadd.f32 %v2742, %v2748
      %v3611 = vadd.f32 %v3610, %v2754
      %v3612 = vadd.f32 %v3611, %v2760
      %v3613 = vadd.f32 %v3612, %v2766
      %v3614 = vadd.f32 %v3613, %v2772
      %v3615 = vadd.f32 %v3614, %v2778
      %v3616 = vadd.f32 %v3615, %v2784
      %v3617 = vadd.f32 %v3616, %v2790
      %v3618 = vadd.f32 %v3617, %v2796
      %v3619 = vadd.f32 %v3618, %v2802
      %v3620 = vadd.f32 %v3619, %v2808
      %v3621 = vadd.f32 %v3620, %v2814
      %v3622 = vadd.f32 %v3621, %v2820
      %v3623 = vadd.f32 %v3622, %v2826
      %v3624 = vadd.f32 %v3623, %v2832
      %v3625 = vrot.slane %v3624, 4
      %v3626 = vadd.f32 %v3624, %v3625
      %v3627 = vrot.slane %v3626, 2
      %v3628 = vadd.f32 %v3626, %v3627
      %v3629 = vrot.slane %v3628, 1
      %v3630 = vadd.f32 %v3628, %v3629
      %v3631 = vadd.f32 %v2743, %v2749
      %v3632 = vadd.f32 %v3631, %v2755
      %v3633 = vadd.f32 %v3632, %v2761
      %v3634 = vadd.f32 %v3633, %v2767
      %v3635 = vadd.f32 %v3634, %v2773
      %v3636 = vadd.f32 %v3635, %v2779
      %v3637 = vadd.f32 %v3636, %v2785
      %v3638 = vadd.f32 %v3637, %v2791
      %v3639 = vadd.f32 %v3638, %v2797
      %v3640 = vadd.f32 %v3639, %v2803
      %v3641 = vadd.f32 %v3640, %v2809
      %v3642 = vadd.f32 %v3641, %v2815
      %v3643 = vadd.f32 %v3642, %v2821
      %v3644 = vadd.f32 %v3643, %v2827
      %v3645 = vadd.f32 %v3644, %v2833
      %v3646 = vrot.slane %v3645, 4
      %v3647 = vadd.f32 %v3645, %v3646
      %v3648 = vrot.slane %v3647, 2
      %v3649 = vadd.f32 %v3647, %v3648
      %v3650 = vrot.slane %v3649, 1
      %v3651 = vadd.f32 %v3649, %v3650
      %v3652 = vadd.f32 %v2744, %v2750
      %v3653 = vadd.f32 %v3652, %v2756
      %v3654 = vadd.f32 %v3653, %v2762
      %v3655 = vadd.f32 %v3654, %v2768
      %v3656 = vadd.f32 %v3655, %v2774
      %v3657 = vadd.f32 %v3656, %v2780
      %v3658 = vadd.f32 %v3657, %v2786
      %v3659 = vadd.f32 %v3658, %v2792
      %v3660 = vadd.f32 %v3659, %v2798
      %v3661 = vadd.f32 %v3660, %v2804
      %v3662 = vadd.f32 %v3661, %v2810
      %v3663 = vadd.f32 %v3662, %v2816
      %v3664 = vadd.f32 %v3663, %v2822
      %v3665 = vadd.f32 %v3664, %v2828
      %v3666 = vadd.f32 %v3665, %v2834
      %v3667 = vrot.slane %v3666, 4
      %v3668 = vadd.f32 %v3666, %v3667
      %v3669 = vrot.slane %v3668, 2
      %v3670 = vadd.f32 %v3668, %v3669
      %v3671 = vrot.slane %v3670, 1
      %v3672 = vadd.f32 %v3670, %v3671
      %v3673 = vadd.f32 %v2745, %v2751
      %v3674 = vadd.f32 %v3673, %v2757
      %v3675 = vadd.f32 %v3674, %v2763
      %v3676 = vadd.f32 %v3675, %v2769
      %v3677 = vadd.f32 %v3676, %v2775
      %v3678 = vadd.f32 %v3677, %v2781
      %v3679 = vadd.f32 %v3678, %v2787
      %v3680 = vadd.f32 %v3679, %v2793
      %v3681 = vadd.f32 %v3680, %v2799
      %v3682 = vadd.f32 %v3681, %v2805
      %v3683 = vadd.f32 %v3682, %v2811
      %v3684 = vadd.f32 %v3683, %v2817
      %v3685 = vadd.f32 %v3684, %v2823
      %v3686 = vadd.f32 %v3685, %v2829
      %v3687 = vadd.f32 %v3686, %v2835
      %v3688 = vrot.slane %v3687, 4
      %v3689 = vadd.f32 %v3687, %v3688
      %v3690 = vrot.slane %v3689, 2
      %v3691 = vadd.f32 %v3689, %v3690
      %v3692 = vrot.slane %v3691, 1
      %v3693 = vadd.f32 %v3691, %v3692
      %v3694 = vadd.f32 %v2836, %v2842
      %v3695 = vadd.f32 %v3694, %v2848
      %v3696 = vadd.f32 %v3695, %v2854
      %v3697 = vadd.f32 %v3696, %v2860
      %v3698 = vadd.f32 %v3697, %v2866
      %v3699 = vadd.f32 %v3698, %v2872
      %v3700 = vadd.f32 %v3699, %v2878
      %v3701 = vadd.f32 %v3700, %v2884
      %v3702 = vadd.f32 %v3701, %v2890
      %v3703 = vadd.f32 %v3702, %v2896
      %v3704 = vadd.f32 %v3703, %v2902
      %v3705 = vadd.f32 %v3704, %v2908
      %v3706 = vadd.f32 %v3705, %v2914
      %v3707 = vadd.f32 %v3706, %v2920
      %v3708 = vadd.f32 %v3707, %v2926
      %v3709 = vrot.slane %v3708, 4
      %v3710 = vadd.f32 %v3708, %v3709
      %v3711 = vrot.slane %v3710, 2
      %v3712 = vadd.f32 %v3710, %v3711
      %v3713 = vrot.slane %v3712, 1
      %v3714 = vadd.f32 %v3712, %v3713
      %v3715 = vadd.f32 %v2837, %v2843
      %v3716 = vadd.f32 %v3715, %v2849
      %v3717 = vadd.f32 %v3716, %v2855
      %v3718 = vadd.f32 %v3717, %v2861
      %v3719 = vadd.f32 %v3718, %v2867
      %v3720 = vadd.f32 %v3719, %v2873
      %v3721 = vadd.f32 %v3720, %v2879
      %v3722 = vadd.f32 %v3721, %v2885
      %v3723 = vadd.f32 %v3722, %v2891
      %v3724 = vadd.f32 %v3723, %v2897
      %v3725 = vadd.f32 %v3724, %v2903
      %v3726 = vadd.f32 %v3725, %v2909
      %v3727 = vadd.f32 %v3726, %v2915
      %v3728 = vadd.f32 %v3727, %v2921
      %v3729 = vadd.f32 %v3728, %v2927
      %v3730 = vrot.slane %v3729, 4
      %v3731 = vadd.f32 %v3729, %v3730
      %v3732 = vrot.slane %v3731, 2
      %v3733 = vadd.f32 %v3731, %v3732
      %v3734 = vrot.slane %v3733, 1
      %v3735 = vadd.f32 %v3733, %v3734
      %v3736 = vadd.f32 %v2838, %v2844
      %v3737 = vadd.f32 %v3736, %v2850
      %v3738 = vadd.f32 %v3737, %v2856
      %v3739 = vadd.f32 %v3738, %v2862
      %v3740 = vadd.f32 %v3739, %v2868
      %v3741 = vadd.f32 %v3740, %v2874
      %v3742 = vadd.f32 %v3741, %v2880
      %v3743 = vadd.f32 %v3742, %v2886
      %v3744 = vadd.f32 %v3743, %v2892
      %v3745 = vadd.f32 %v3744, %v2898
      %v3746 = vadd.f32 %v3745, %v2904
      %v3747 = vadd.f32 %v3746, %v2910
      %v3748 = vadd.f32 %v3747, %v2916
      %v3749 = vadd.f32 %v3748, %v2922
      %v3750 = vadd.f32 %v3749, %v2928
      %v3751 = vrot.slane %v3750, 4
      %v3752 = vadd.f32 %v3750, %v3751
      %v3753 = vrot.slane %v3752, 2
      %v3754 = vadd.f32 %v3752, %v3753
      %v3755 = vrot.slane %v3754, 1
      %v3756 = vadd.f32 %v3754, %v3755
      %v3757 = vadd.f32 %v2839, %v2845
      %v3758 = vadd.f32 %v3757, %v2851
      %v3759 = vadd.f32 %v3758, %v2857
      %v3760 = vadd.f32 %v3759, %v2863
      %v3761 = vadd.f32 %v3760, %v2869
      %v3762 = vadd.f32 %v3761, %v2875
      %v3763 = vadd.f32 %v3762, %v2881
      %v3764 = vadd.f32 %v3763, %v2887
      %v3765 = vadd.f32 %v3764, %v2893
      %v3766 = vadd.f32 %v3765, %v2899
      %v3767 = vadd.f32 %v3766, %v2905
      %v3768 = vadd.f32 %v3767, %v2911
      %v3769 = vadd.f32 %v3768, %v2917
      %v3770 = vadd.f32 %v3769, %v2923
      %v3771 = vadd.f32 %v3770, %v2929
      %v3772 = vrot.slane %v3771, 4
      %v3773 = vadd.f32 %v3771, %v3772
      %v3774 = vrot.slane %v3773, 2
      %v3775 = vadd.f32 %v3773, %v3774
      %v3776 = vrot.slane %v3775, 1
      %v3777 = vadd.f32 %v3775, %v3776
      %v3778 = vadd.f32 %v2840, %v2846
      %v3779 = vadd.f32 %v3778, %v2852
      %v3780 = vadd.f32 %v3779, %v2858
      %v3781 = vadd.f32 %v3780, %v2864
      %v3782 = vadd.f32 %v3781, %v2870
      %v3783 = vadd.f32 %v3782, %v2876
      %v3784 = vadd.f32 %v3783, %v2882
      %v3785 = vadd.f32 %v3784, %v2888
      %v3786 = vadd.f32 %v3785, %v2894
      %v3787 = vadd.f32 %v3786, %v2900
      %v3788 = vadd.f32 %v3787, %v2906
      %v3789 = vadd.f32 %v3788, %v2912
      %v3790 = vadd.f32 %v3789, %v2918
      %v3791 = vadd.f32 %v3790, %v2924
      %v3792 = vadd.f32 %v3791, %v2930
      %v3793 = vrot.slane %v3792, 4
      %v3794 = vadd.f32 %v3792, %v3793
      %v3795 = vrot.slane %v3794, 2
      %v3796 = vadd.f32 %v3794, %v3795
      %v3797 = vrot.slane %v3796, 1
      %v3798 = vadd.f32 %v3796, %v3797
      %v3799 = vadd.f32 %v2841, %v2847
      %v3800 = vadd.f32 %v3799, %v2853
      %v3801 = vadd.f32 %v3800, %v2859
      %v3802 = vadd.f32 %v3801, %v2865
      %v3803 = vadd.f32 %v3802, %v2871
      %v3804 = vadd.f32 %v3803, %v2877
      %v3805 = vadd.f32 %v3804, %v2883
      %v3806 = vadd.f32 %v3805, %v2889
      %v3807 = vadd.f32 %v3806, %v2895
      %v3808 = vadd.f32 %v3807, %v2901
      %v3809 = vadd.f32 %v3808, %v2907
      %v3810 = vadd.f32 %v3809, %v2913
      %v3811 = vadd.f32 %v3810, %v2919
      %v3812 = vadd.f32 %v3811, %v2925
      %v3813 = vadd.f32 %v3812, %v2931
      %v3814 = vrot.slane %v3813, 4
      %v3815 = vadd.f32 %v3813, %v3814
      %v3816 = vrot.slane %v3815, 2
      %v3817 = vadd.f32 %v3815, %v3816
      %v3818 = vrot.slane %v3817, 1
      %v3819 = vadd.f32 %v3817, %v3818
      %v3820 = vadd.f32 %v2932, %v2938
      %v3821 = vadd.f32 %v3820, %v2944
      %v3822 = vadd.f32 %v3821, %v2950
      %v3823 = vadd.f32 %v3822, %v2956
      %v3824 = vadd.f32 %v3823, %v2962
      %v3825 = vadd.f32 %v3824, %v2968
      %v3826 = vadd.f32 %v3825, %v2974
      %v3827 = vadd.f32 %v3826, %v2980
      %v3828 = vadd.f32 %v3827, %v2986
      %v3829 = vadd.f32 %v3828, %v2992
      %v3830 = vadd.f32 %v3829, %v2998
      %v3831 = vadd.f32 %v3830, %v3004
      %v3832 = vadd.f32 %v3831, %v3010
      %v3833 = vadd.f32 %v3832, %v3016
      %v3834 = vadd.f32 %v3833, %v3022
      %v3835 = vrot.slane %v3834, 4
      %v3836 = vadd.f32 %v3834, %v3835
      %v3837 = vrot.slane %v3836, 2
      %v3838 = vadd.f32 %v3836, %v3837
      %v3839 = vrot.slane %v3838, 1
      %v3840 = vadd.f32 %v3838, %v3839
      %v3841 = vadd.f32 %v2933, %v2939
      %v3842 = vadd.f32 %v3841, %v2945
      %v3843 = vadd.f32 %v3842, %v2951
      %v3844 = vadd.f32 %v3843, %v2957
      %v3845 = vadd.f32 %v3844, %v2963
      %v3846 = vadd.f32 %v3845, %v2969
      %v3847 = vadd.f32 %v3846, %v2975
      %v3848 = vadd.f32 %v3847, %v2981
      %v3849 = vadd.f32 %v3848, %v2987
      %v3850 = vadd.f32 %v3849, %v2993
      %v3851 = vadd.f32 %v3850, %v2999
      %v3852 = vadd.f32 %v3851, %v3005
      %v3853 = vadd.f32 %v3852, %v3011
      %v3854 = vadd.f32 %v3853, %v3017
      %v3855 = vadd.f32 %v3854, %v3023
      %v3856 = vrot.slane %v3855, 4
      %v3857 = vadd.f32 %v3855, %v3856
      %v3858 = vrot.slane %v3857, 2
      %v3859 = vadd.f32 %v3857, %v3858
      %v3860 = vrot.slane %v3859, 1
      %v3861 = vadd.f32 %v3859, %v3860
      %v3862 = vadd.f32 %v2934, %v2940
      %v3863 = vadd.f32 %v3862, %v2946
      %v3864 = vadd.f32 %v3863, %v2952
      %v3865 = vadd.f32 %v3864, %v2958
      %v3866 = vadd.f32 %v3865, %v2964
      %v3867 = vadd.f32 %v3866, %v2970
      %v3868 = vadd.f32 %v3867, %v2976
      %v3869 = vadd.f32 %v3868, %v2982
      %v3870 = vadd.f32 %v3869, %v2988
      %v3871 = vadd.f32 %v3870, %v2994
      %v3872 = vadd.f32 %v3871, %v3000
      %v3873 = vadd.f32 %v3872, %v3006
      %v3874 = vadd.f32 %v3873, %v3012
      %v3875 = vadd.f32 %v3874, %v3018
      %v3876 = vadd.f32 %v3875, %v3024
      %v3877 = vrot.slane %v3876, 4
      %v3878 = vadd.f32 %v3876, %v3877
      %v3879 = vrot.slane %v3878, 2
      %v3880 = vadd.f32 %v3878, %v3879
      %v3881 = vrot.slane %v3880, 1
      %v3882 = vadd.f32 %v3880, %v3881
      %v3883 = vadd.f32 %v2935, %v2941
      %v3884 = vadd.f32 %v3883, %v2947
      %v3885 = vadd.f32 %v3884, %v2953
      %v3886 = vadd.f32 %v3885, %v2959
      %v3887 = vadd.f32 %v3886, %v2965
      %v3888 = vadd.f32 %v3887, %v2971
      %v3889 = vadd.f32 %v3888, %v2977
      %v3890 = vadd.f32 %v3889, %v2983
      %v3891 = vadd.f32 %v3890, %v2989
      %v3892 = vadd.f32 %v3891, %v2995
      %v3893 = vadd.f32 %v3892, %v3001
      %v3894 = vadd.f32 %v3893, %v3007
      %v3895 = vadd.f32 %v3894, %v3013
      %v3896 = vadd.f32 %v3895, %v3019
      %v3897 = vadd.f32 %v3896, %v3025
      %v3898 = vrot.slane %v3897, 4
      %v3899 = vadd.f32 %v3897, %v3898
      %v3900 = vrot.slane %v3899, 2
      %v3901 = vadd.f32 %v3899, %v3900
      %v3902 = vrot.slane %v3901, 1
      %v3903 = vadd.f32 %v3901, %v3902
      %v3904 = vadd.f32 %v2936, %v2942
      %v3905 = vadd.f32 %v3904, %v2948
      %v3906 = vadd.f32 %v3905, %v2954
      %v3907 = vadd.f32 %v3906, %v2960
      %v3908 = vadd.f32 %v3907, %v2966
      %v3909 = vadd.f32 %v3908, %v2972
      %v3910 = vadd.f32 %v3909, %v2978
      %v3911 = vadd.f32 %v3910, %v2984
      %v3912 = vadd.f32 %v3911, %v2990
      %v3913 = vadd.f32 %v3912, %v2996
      %v3914 = vadd.f32 %v3913, %v3002
      %v3915 = vadd.f32 %v3914, %v3008
      %v3916 = vadd.f32 %v3915, %v3014
      %v3917 = vadd.f32 %v3916, %v3020
      %v3918 = vadd.f32 %v3917, %v3026
      %v3919 = vrot.slane %v3918, 4
      %v3920 = vadd.f32 %v3918, %v3919
      %v3921 = vrot.slane %v3920, 2
      %v3922 = vadd.f32 %v3920, %v3921
      %v3923 = vrot.slane %v3922, 1
      %v3924 = vadd.f32 %v3922, %v3923
      %v3925 = vadd.f32 %v2937, %v2943
      %v3926 = vadd.f32 %v3925, %v2949
      %v3927 = vadd.f32 %v3926, %v2955
      %v3928 = vadd.f32 %v3927, %v2961
      %v3929 = vadd.f32 %v3928, %v2967
      %v3930 = vadd.f32 %v3929, %v2973
      %v3931 = vadd.f32 %v3930, %v2979
      %v3932 = vadd.f32 %v3931, %v2985
      %v3933 = vadd.f32 %v3932, %v2991
      %v3934 = vadd.f32 %v3933, %v2997
      %v3935 = vadd.f32 %v3934, %v3003
      %v3936 = vadd.f32 %v3935, %v3009
      %v3937 = vadd.f32 %v3936, %v3015
      %v3938 = vadd.f32 %v3937, %v3021
      %v3939 = vadd.f32 %v3938, %v3027
      %v3940 = vrot.slane %v3939, 4
      %v3941 = vadd.f32 %v3939, %v3940
      %v3942 = vrot.slane %v3941, 2
      %v3943 = vadd.f32 %v3941, %v3942
      %v3944 = vrot.slane %v3943, 1
      %v3945 = vadd.f32 %v3943, %v3944
      %v3946 = vadd.f32 %v3028, %v3034
      %v3947 = vadd.f32 %v3946, %v3040
      %v3948 = vadd.f32 %v3947, %v3046
      %v3949 = vadd.f32 %v3948, %v3052
      %v3950 = vadd.f32 %v3949, %v3058
      %v3951 = vadd.f32 %v3950, %v3064
      %v3952 = vadd.f32 %v3951, %v3070
      %v3953 = vadd.f32 %v3952, %v3076
      %v3954 = vadd.f32 %v3953, %v3082
      %v3955 = vadd.f32 %v3954, %v3088
      %v3956 = vadd.f32 %v3955, %v3094
      %v3957 = vadd.f32 %v3956, %v3100
      %v3958 = vadd.f32 %v3957, %v3106
      %v3959 = vadd.f32 %v3958, %v3112
      %v3960 = vadd.f32 %v3959, %v3118
      %v3961 = vrot.slane %v3960, 4
      %v3962 = vadd.f32 %v3960, %v3961
      %v3963 = vrot.slane %v3962, 2
      %v3964 = vadd.f32 %v3962, %v3963
      %v3965 = vrot.slane %v3964, 1
      %v3966 = vadd.f32 %v3964, %v3965
      %v3967 = vadd.f32 %v3029, %v3035
      %v3968 = vadd.f32 %v3967, %v3041
      %v3969 = vadd.f32 %v3968, %v3047
      %v3970 = vadd.f32 %v3969, %v3053
      %v3971 = vadd.f32 %v3970, %v3059
      %v3972 = vadd.f32 %v3971, %v3065
      %v3973 = vadd.f32 %v3972, %v3071
      %v3974 = vadd.f32 %v3973, %v3077
      %v3975 = vadd.f32 %v3974, %v3083
      %v3976 = vadd.f32 %v3975, %v3089
      %v3977 = vadd.f32 %v3976, %v3095
      %v3978 = vadd.f32 %v3977, %v3101
      %v3979 = vadd.f32 %v3978, %v3107
      %v3980 = vadd.f32 %v3979, %v3113
      %v3981 = vadd.f32 %v3980, %v3119
      %v3982 = vrot.slane %v3981, 4
      %v3983 = vadd.f32 %v3981, %v3982
      %v3984 = vrot.slane %v3983, 2
      %v3985 = vadd.f32 %v3983, %v3984
      %v3986 = vrot.slane %v3985, 1
      %v3987 = vadd.f32 %v3985, %v3986
      %v3988 = vadd.f32 %v3030, %v3036
      %v3989 = vadd.f32 %v3988, %v3042
      %v3990 = vadd.f32 %v3989, %v3048
      %v3991 = vadd.f32 %v3990, %v3054
      %v3992 = vadd.f32 %v3991, %v3060
      %v3993 = vadd.f32 %v3992, %v3066
      %v3994 = vadd.f32 %v3993, %v3072
      %v3995 = vadd.f32 %v3994, %v3078
      %v3996 = vadd.f32 %v3995, %v3084
      %v3997 = vadd.f32 %v3996, %v3090
      %v3998 = vadd.f32 %v3997, %v3096
      %v3999 = vadd.f32 %v3998, %v3102
      %v4000 = vadd.f32 %v3999, %v3108
      %v4001 = vadd.f32 %v4000, %v3114
      %v4002 = vadd.f32 %v4001, %v3120
      %v4003 = vrot.slane %v4002, 4
      %v4004 = vadd.f32 %v4002, %v4003
      %v4005 = vrot.slane %v4004, 2
      %v4006 = vadd.f32 %v4004, %v4005
      %v4007 = vrot.slane %v4006, 1
      %v4008 = vadd.f32 %v4006, %v4007
      %v4009 = vadd.f32 %v3031, %v3037
      %v4010 = vadd.f32 %v4009, %v3043
      %v4011 = vadd.f32 %v4010, %v3049
      %v4012 = vadd.f32 %v4011, %v3055
      %v4013 = vadd.f32 %v4012, %v3061
      %v4014 = vadd.f32 %v4013, %v3067
      %v4015 = vadd.f32 %v4014, %v3073
      %v4016 = vadd.f32 %v4015, %v3079
      %v4017 = vadd.f32 %v4016, %v3085
      %v4018 = vadd.f32 %v4017, %v3091
      %v4019 = vadd.f32 %v4018, %v3097
      %v4020 = vadd.f32 %v4019, %v3103
      %v4021 = vadd.f32 %v4020, %v3109
      %v4022 = vadd.f32 %v4021, %v3115
      %v4023 = vadd.f32 %v4022, %v3121
      %v4024 = vrot.slane %v4023, 4
      %v4025 = vadd.f32 %v4023, %v4024
      %v4026 = vrot.slane %v4025, 2
      %v4027 = vadd.f32 %v4025, %v4026
      %v4028 = vrot.slane %v4027, 1
      %v4029 = vadd.f32 %v4027, %v4028
      %v4030 = vadd.f32 %v3032, %v3038
      %v4031 = vadd.f32 %v4030, %v3044
      %v4032 = vadd.f32 %v4031, %v3050
      %v4033 = vadd.f32 %v4032, %v3056
      %v4034 = vadd.f32 %v4033, %v3062
      %v4035 = vadd.f32 %v4034, %v3068
      %v4036 = vadd.f32 %v4035, %v3074
      %v4037 = vadd.f32 %v4036, %v3080
      %v4038 = vadd.f32 %v4037, %v3086
      %v4039 = vadd.f32 %v4038, %v3092
      %v4040 = vadd.f32 %v4039, %v3098
      %v4041 = vadd.f32 %v4040, %v3104
      %v4042 = vadd.f32 %v4041, %v3110
      %v4043 = vadd.f32 %v4042, %v3116
      %v4044 = vadd.f32 %v4043, %v3122
      %v4045 = vrot.slane %v4044, 4
      %v4046 = vadd.f32 %v4044, %v4045
      %v4047 = vrot.slane %v4046, 2
      %v4048 = vadd.f32 %v4046, %v4047
      %v4049 = vrot.slane %v4048, 1
      %v4050 = vadd.f32 %v4048, %v4049
      %v4051 = vadd.f32 %v3033, %v3039
      %v4052 = vadd.f32 %v4051, %v3045
      %v4053 = vadd.f32 %v4052, %v3051
      %v4054 = vadd.f32 %v4053, %v3057
      %v4055 = vadd.f32 %v4054, %v3063
      %v4056 = vadd.f32 %v4055, %v3069
      %v4057 = vadd.f32 %v4056, %v3075
      %v4058 = vadd.f32 %v4057, %v3081
      %v4059 = vadd.f32 %v4058, %v3087
      %v4060 = vadd.f32 %v4059, %v3093
      %v4061 = vadd.f32 %v4060, %v3099
      %v4062 = vadd.f32 %v4061, %v3105
      %v4063 = vadd.f32 %v4062, %v3111
      %v4064 = vadd.f32 %v4063, %v3117
      %v4065 = vadd.f32 %v4064, %v3123
      %v4066 = vrot.slane %v4065, 4
      %v4067 = vadd.f32 %v4065, %v4066
      %v4068 = vrot.slane %v4067, 2
      %v4069 = vadd.f32 %v4067, %v4068
      %v4070 = vrot.slane %v4069, 1
      %v4071 = vadd.f32 %v4069, %v4070
      %v4072 = vadd.f32 %v3124, %v3130
      %v4073 = vadd.f32 %v4072, %v3136
      %v4074 = vadd.f32 %v4073, %v3142
      %v4075 = vadd.f32 %v4074, %v3148
      %v4076 = vadd.f32 %v4075, %v3154
      %v4077 = vadd.f32 %v4076, %v3160
      %v4078 = vadd.f32 %v4077, %v3166
      %v4079 = vadd.f32 %v4078, %v3172
      %v4080 = vadd.f32 %v4079, %v3178
      %v4081 = vadd.f32 %v4080, %v3184
      %v4082 = vadd.f32 %v4081, %v3190
      %v4083 = vadd.f32 %v4082, %v3196
      %v4084 = vadd.f32 %v4083, %v3202
      %v4085 = vadd.f32 %v4084, %v3208
      %v4086 = vadd.f32 %v4085, %v3214
      %v4087 = vrot.slane %v4086, 4
      %v4088 = vadd.f32 %v4086, %v4087
      %v4089 = vrot.slane %v4088, 2
      %v4090 = vadd.f32 %v4088, %v4089
      %v4091 = vrot.slane %v4090, 1
      %v4092 = vadd.f32 %v4090, %v4091
      %v4093 = vadd.f32 %v3125, %v3131
      %v4094 = vadd.f32 %v4093, %v3137
      %v4095 = vadd.f32 %v4094, %v3143
      %v4096 = vadd.f32 %v4095, %v3149
      %v4097 = vadd.f32 %v4096, %v3155
      %v4098 = vadd.f32 %v4097, %v3161
      %v4099 = vadd.f32 %v4098, %v3167
      %v4100 = vadd.f32 %v4099, %v3173
      %v4101 = vadd.f32 %v4100, %v3179
      %v4102 = vadd.f32 %v4101, %v3185
      %v4103 = vadd.f32 %v4102, %v3191
      %v4104 = vadd.f32 %v4103, %v3197
      %v4105 = vadd.f32 %v4104, %v3203
      %v4106 = vadd.f32 %v4105, %v3209
      %v4107 = vadd.f32 %v4106, %v3215
      %v4108 = vrot.slane %v4107, 4
      %v4109 = vadd.f32 %v4107, %v4108
      %v4110 = vrot.slane %v4109, 2
      %v4111 = vadd.f32 %v4109, %v4110
      %v4112 = vrot.slane %v4111, 1
      %v4113 = vadd.f32 %v4111, %v4112
      %v4114 = vadd.f32 %v3126, %v3132
      %v4115 = vadd.f32 %v4114, %v3138
      %v4116 = vadd.f32 %v4115, %v3144
      %v4117 = vadd.f32 %v4116, %v3150
      %v4118 = vadd.f32 %v4117, %v3156
      %v4119 = vadd.f32 %v4118, %v3162
      %v4120 = vadd.f32 %v4119, %v3168
      %v4121 = vadd.f32 %v4120, %v3174
      %v4122 = vadd.f32 %v4121, %v3180
      %v4123 = vadd.f32 %v4122, %v3186
      %v4124 = vadd.f32 %v4123, %v3192
      %v4125 = vadd.f32 %v4124, %v3198
      %v4126 = vadd.f32 %v4125, %v3204
      %v4127 = vadd.f32 %v4126, %v3210
      %v4128 = vadd.f32 %v4127, %v3216
      %v4129 = vrot.slane %v4128, 4
      %v4130 = vadd.f32 %v4128, %v4129
      %v4131 = vrot.slane %v4130, 2
      %v4132 = vadd.f32 %v4130, %v4131
      %v4133 = vrot.slane %v4132, 1
      %v4134 = vadd.f32 %v4132, %v4133
      %v4135 = vadd.f32 %v3127, %v3133
      %v4136 = vadd.f32 %v4135, %v3139
      %v4137 = vadd.f32 %v4136, %v3145
      %v4138 = vadd.f32 %v4137, %v3151
      %v4139 = vadd.f32 %v4138, %v3157
      %v4140 = vadd.f32 %v4139, %v3163
      %v4141 = vadd.f32 %v4140, %v3169
      %v4142 = vadd.f32 %v4141, %v3175
      %v4143 = vadd.f32 %v4142, %v3181
      %v4144 = vadd.f32 %v4143, %v3187
      %v4145 = vadd.f32 %v4144, %v3193
      %v4146 = vadd.f32 %v4145, %v3199
      %v4147 = vadd.f32 %v4146, %v3205
      %v4148 = vadd.f32 %v4147, %v3211
      %v4149 = vadd.f32 %v4148, %v3217
      %v4150 = vrot.slane %v4149, 4
      %v4151 = vadd.f32 %v4149, %v4150
      %v4152 = vrot.slane %v4151, 2
      %v4153 = vadd.f32 %v4151, %v4152
      %v4154 = vrot.slane %v4153, 1
      %v4155 = vadd.f32 %v4153, %v4154
      %v4156 = vadd.f32 %v3128, %v3134
      %v4157 = vadd.f32 %v4156, %v3140
      %v4158 = vadd.f32 %v4157, %v3146
      %v4159 = vadd.f32 %v4158, %v3152
      %v4160 = vadd.f32 %v4159, %v3158
      %v4161 = vadd.f32 %v4160, %v3164
      %v4162 = vadd.f32 %v4161, %v3170
      %v4163 = vadd.f32 %v4162, %v3176
      %v4164 = vadd.f32 %v4163, %v3182
      %v4165 = vadd.f32 %v4164, %v3188
      %v4166 = vadd.f32 %v4165, %v3194
      %v4167 = vadd.f32 %v4166, %v3200
      %v4168 = vadd.f32 %v4167, %v3206
      %v4169 = vadd.f32 %v4168, %v3212
      %v4170 = vadd.f32 %v4169, %v3218
      %v4171 = vrot.slane %v4170, 4
      %v4172 = vadd.f32 %v4170, %v4171
      %v4173 = vrot.slane %v4172, 2
      %v4174 = vadd.f32 %v4172, %v4173
      %v4175 = vrot.slane %v4174, 1
      %v4176 = vadd.f32 %v4174, %v4175
      %v4177 = vadd.f32 %v3129, %v3135
      %v4178 = vadd.f32 %v4177, %v3141
      %v4179 = vadd.f32 %v4178, %v3147
      %v4180 = vadd.f32 %v4179, %v3153
      %v4181 = vadd.f32 %v4180, %v3159
      %v4182 = vadd.f32 %v4181, %v3165
      %v4183 = vadd.f32 %v4182, %v3171
      %v4184 = vadd.f32 %v4183, %v3177
      %v4185 = vadd.f32 %v4184, %v3183
      %v4186 = vadd.f32 %v4185, %v3189
      %v4187 = vadd.f32 %v4186, %v3195
      %v4188 = vadd.f32 %v4187, %v3201
      %v4189 = vadd.f32 %v4188, %v3207
      %v4190 = vadd.f32 %v4189, %v3213
      %v4191 = vadd.f32 %v4190, %v3219
      %v4192 = vrot.slane %v4191, 4
      %v4193 = vadd.f32 %v4191, %v4192
      %v4194 = vrot.slane %v4193, 2
      %v4195 = vadd.f32 %v4193, %v4194
      %v4196 = vrot.slane %v4195, 1
      %v4197 = vadd.f32 %v4195, %v4196
      %v4198 = vadd.f32 %v3220, %v3226
      %v4199 = vadd.f32 %v4198, %v3232
      %v4200 = vadd.f32 %v4199, %v3238
      %v4201 = vadd.f32 %v4200, %v3244
      %v4202 = vadd.f32 %v4201, %v3250
      %v4203 = vadd.f32 %v4202, %v3256
      %v4204 = vadd.f32 %v4203, %v3262
      %v4205 = vadd.f32 %v4204, %v3268
      %v4206 = vadd.f32 %v4205, %v3274
      %v4207 = vadd.f32 %v4206, %v3280
      %v4208 = vadd.f32 %v4207, %v3286
      %v4209 = vadd.f32 %v4208, %v3292
      %v4210 = vadd.f32 %v4209, %v3298
      %v4211 = vadd.f32 %v4210, %v3304
      %v4212 = vadd.f32 %v4211, %v3310
      %v4213 = vrot.slane %v4212, 4
      %v4214 = vadd.f32 %v4212, %v4213
      %v4215 = vrot.slane %v4214, 2
      %v4216 = vadd.f32 %v4214, %v4215
      %v4217 = vrot.slane %v4216, 1
      %v4218 = vadd.f32 %v4216, %v4217
      %v4219 = vadd.f32 %v3221, %v3227
      %v4220 = vadd.f32 %v4219, %v3233
      %v4221 = vadd.f32 %v4220, %v3239
      %v4222 = vadd.f32 %v4221, %v3245
      %v4223 = vadd.f32 %v4222, %v3251
      %v4224 = vadd.f32 %v4223, %v3257
      %v4225 = vadd.f32 %v4224, %v3263
      %v4226 = vadd.f32 %v4225, %v3269
      %v4227 = vadd.f32 %v4226, %v3275
      %v4228 = vadd.f32 %v4227, %v3281
      %v4229 = vadd.f32 %v4228, %v3287
      %v4230 = vadd.f32 %v4229, %v3293
      %v4231 = vadd.f32 %v4230, %v3299
      %v4232 = vadd.f32 %v4231, %v3305
      %v4233 = vadd.f32 %v4232, %v3311
      %v4234 = vrot.slane %v4233, 4
      %v4235 = vadd.f32 %v4233, %v4234
      %v4236 = vrot.slane %v4235, 2
      %v4237 = vadd.f32 %v4235, %v4236
      %v4238 = vrot.slane %v4237, 1
      %v4239 = vadd.f32 %v4237, %v4238
      %v4240 = vadd.f32 %v3222, %v3228
      %v4241 = vadd.f32 %v4240, %v3234
      %v4242 = vadd.f32 %v4241, %v3240
      %v4243 = vadd.f32 %v4242, %v3246
      %v4244 = vadd.f32 %v4243, %v3252
      %v4245 = vadd.f32 %v4244, %v3258
      %v4246 = vadd.f32 %v4245, %v3264
      %v4247 = vadd.f32 %v4246, %v3270
      %v4248 = vadd.f32 %v4247, %v3276
      %v4249 = vadd.f32 %v4248, %v3282
      %v4250 = vadd.f32 %v4249, %v3288
      %v4251 = vadd.f32 %v4250, %v3294
      %v4252 = vadd.f32 %v4251, %v3300
      %v4253 = vadd.f32 %v4252, %v3306
      %v4254 = vadd.f32 %v4253, %v3312
      %v4255 = vrot.slane %v4254, 4
      %v4256 = vadd.f32 %v4254, %v4255
      %v4257 = vrot.slane %v4256, 2
      %v4258 = vadd.f32 %v4256, %v4257
      %v4259 = vrot.slane %v4258, 1
      %v4260 = vadd.f32 %v4258, %v4259
      %v4261 = vadd.f32 %v3223, %v3229
      %v4262 = vadd.f32 %v4261, %v3235
      %v4263 = vadd.f32 %v4262, %v3241
      %v4264 = vadd.f32 %v4263, %v3247
      %v4265 = vadd.f32 %v4264, %v3253
      %v4266 = vadd.f32 %v4265, %v3259
      %v4267 = vadd.f32 %v4266, %v3265
      %v4268 = vadd.f32 %v4267, %v3271
      %v4269 = vadd.f32 %v4268, %v3277
      %v4270 = vadd.f32 %v4269, %v3283
      %v4271 = vadd.f32 %v4270, %v3289
      %v4272 = vadd.f32 %v4271, %v3295
      %v4273 = vadd.f32 %v4272, %v3301
      %v4274 = vadd.f32 %v4273, %v3307
      %v4275 = vadd.f32 %v4274, %v3313
      %v4276 = vrot.slane %v4275, 4
      %v4277 = vadd.f32 %v4275, %v4276
      %v4278 = vrot.slane %v4277, 2
      %v4279 = vadd.f32 %v4277, %v4278
      %v4280 = vrot.slane %v4279, 1
      %v4281 = vadd.f32 %v4279, %v4280
      %v4282 = vadd.f32 %v3224, %v3230
      %v4283 = vadd.f32 %v4282, %v3236
      %v4284 = vadd.f32 %v4283, %v3242
      %v4285 = vadd.f32 %v4284, %v3248
      %v4286 = vadd.f32 %v4285, %v3254
      %v4287 = vadd.f32 %v4286, %v3260
      %v4288 = vadd.f32 %v4287, %v3266
      %v4289 = vadd.f32 %v4288, %v3272
      %v4290 = vadd.f32 %v4289, %v3278
      %v4291 = vadd.f32 %v4290, %v3284
      %v4292 = vadd.f32 %v4291, %v3290
      %v4293 = vadd.f32 %v4292, %v3296
      %v4294 = vadd.f32 %v4293, %v3302
      %v4295 = vadd.f32 %v4294, %v3308
      %v4296 = vadd.f32 %v4295, %v3314
      %v4297 = vrot.slane %v4296, 4
      %v4298 = vadd.f32 %v4296, %v4297
      %v4299 = vrot.slane %v4298, 2
      %v4300 = vadd.f32 %v4298, %v4299
      %v4301 = vrot.slane %v4300, 1
      %v4302 = vadd.f32 %v4300, %v4301
      %v4303 = vadd.f32 %v3225, %v3231
      %v4304 = vadd.f32 %v4303, %v3237
      %v4305 = vadd.f32 %v4304, %v3243
      %v4306 = vadd.f32 %v4305, %v3249
      %v4307 = vadd.f32 %v4306, %v3255
      %v4308 = vadd.f32 %v4307, %v3261
      %v4309 = vadd.f32 %v4308, %v3267
      %v4310 = vadd.f32 %v4309, %v3273
      %v4311 = vadd.f32 %v4310, %v3279
      %v4312 = vadd.f32 %v4311, %v3285
      %v4313 = vadd.f32 %v4312, %v3291
      %v4314 = vadd.f32 %v4313, %v3297
      %v4315 = vadd.f32 %v4314, %v3303
      %v4316 = vadd.f32 %v4315, %v3309
      %v4317 = vadd.f32 %v4316, %v3315
      %v4318 = vrot.slane %v4317, 4
      %v4319 = vadd.f32 %v4317, %v4318
      %v4320 = vrot.slane %v4319, 2
      %v4321 = vadd.f32 %v4319, %v4320
      %v4322 = vrot.slane %v4321, 1
      %v4323 = vadd.f32 %v4321, %v4322
      %v4324 = vadd.f32 %v60, %v3336
      %v4325 = vadd.f32 %v61, %v3357
      %v4326 = vadd.f32 %v62, %v3378
      %v4327 = vadd.f32 %v63, %v3399
      %v4328 = vadd.f32 %v64, %v3420
      %v4329 = vadd.f32 %v65, %v3441
      %v4330 = vadd.f32 %v66, %v3462
      %v4331 = vadd.f32 %v67, %v3483
      %v4332 = vadd.f32 %v68, %v3504
      %v4333 = vadd.f32 %v69, %v3525
      %v4334 = vadd.f32 %v70, %v3546
      %v4335 = vadd.f32 %v71, %v3567
      %v4336 = vadd.f32 %v72, %v3588
      %v4337 = vadd.f32 %v73, %v3609
      %v4338 = vadd.f32 %v74, %v3630
      %v4339 = vadd.f32 %v75, %v3651
      %v4340 = vadd.f32 %v76, %v3672
      %v4341 = vadd.f32 %v77, %v3693
      %v4342 = vadd.f32 %v78, %v3714
      %v4343 = vadd.f32 %v79, %v3735
      %v4344 = vadd.f32 %v80, %v3756
      %v4345 = vadd.f32 %v81, %v3777
      %v4346 = vadd.f32 %v82, %v3798
      %v4347 = vadd.f32 %v83, %v3819
      %v4348 = vadd.f32 %v84, %v3840
      %v4349 = vadd.f32 %v85, %v3861
      %v4350 = vadd.f32 %v86, %v3882
      %v4351 = vadd.f32 %v87, %v3903
      %v4352 = vadd.f32 %v88, %v3924
      %v4353 = vadd.f32 %v89, %v3945
      %v4354 = vadd.f32 %v90, %v3966
      %v4355 = vadd.f32 %v91, %v3987
      %v4356 = vadd.f32 %v92, %v4008
      %v4357 = vadd.f32 %v93, %v4029
      %v4358 = vadd.f32 %v94, %v4050
      %v4359 = vadd.f32 %v95, %v4071
      %v4360 = vadd.f32 %v96, %v4092
      %v4361 = vadd.f32 %v97, %v4113
      %v4362 = vadd.f32 %v98, %v4134
      %v4363 = vadd.f32 %v99, %v4155
      %v4364 = vadd.f32 %v100, %v4176
      %v4365 = vadd.f32 %v101, %v4197
      %v4366 = vadd.f32 %v102, %v4218
      %v4367 = vadd.f32 %v103, %v4239
      %v4368 = vadd.f32 %v104, %v4260
      %v4369 = vadd.f32 %v105, %v4281
      %v4370 = vadd.f32 %v106, %v4302
      %v4371 = vadd.f32 %v107, %v4323
    $region34: #{tpu_custom_call.1} parent=1 // loop_footer
      %s59 = sadd.s32 1, %s55
    $region35: #{tpu_custom_call.1} parent=1 // loop_footer_branch
      %54 = sbr.rel target = $region31
    $region36: #{tpu_custom_call.1} parent=1 // loop_exit
      _
    %v4372 = vld [vmem:[#allocation2] sm:$0xff]
    %v4373 = vld [vmem:[#allocation2 + $0x8] sm:$0xff]
    %v4374 = vld [vmem:[#allocation2 + $0x10] sm:$0xff]
    %v4375 = vld [vmem:[#allocation2 + $0x18] sm:$0xff]
    %v4376 = vld [vmem:[#allocation2 + $0x20] sm:$0xff]
    %v4377 = vld [vmem:[#allocation2 + $0x28] sm:$0xff]
    %vm4426 = vcmask 1041409
    %v4427 = vsel %vm4426, %v66, %v60
    %vm4428 = vcmask 1042434
    %v4429 = vsel %vm4428, %v72, %v4427
    %vm4430 = vcmask 1043459
    %v4431 = vsel %vm4430, %v78, %v4429
    %vm4432 = vcmask 1044484
    %v4433 = vsel %vm4432, %v84, %v4431
    %vm4434 = vcmask 1045509
    %v4435 = vsel %vm4434, %v90, %v4433
    %vm4436 = vcmask 1046534
    %v4437 = vsel %vm4436, %v96, %v4435
    %vm4438 = vcmask 1047559
    %v4439 = vsel %vm4438, %v102, %v4437
    %v4440 = vsel %vm4426, %v67, %v61
    %v4441 = vsel %vm4428, %v73, %v4440
    %v4442 = vsel %vm4430, %v79, %v4441
    %v4443 = vsel %vm4432, %v85, %v4442
    %v4444 = vsel %vm4434, %v91, %v4443
    %v4445 = vsel %vm4436, %v97, %v4444
    %v4446 = vsel %vm4438, %v103, %v4445
    %v4447 = vsel %vm4426, %v68, %v62
    %v4448 = vsel %vm4428, %v74, %v4447
    %v4449 = vsel %vm4430, %v80, %v4448
    %v4450 = vsel %vm4432, %v86, %v4449
    %v4451 = vsel %vm4434, %v92, %v4450
    %v4452 = vsel %vm4436, %v98, %v4451
    %v4453 = vsel %vm4438, %v104, %v4452
    %v4454 = vsel %vm4426, %v69, %v63
    %v4455 = vsel %vm4428, %v75, %v4454
    %v4456 = vsel %vm4430, %v81, %v4455
    %v4457 = vsel %vm4432, %v87, %v4456
    %v4458 = vsel %vm4434, %v93, %v4457
    %v4459 = vsel %vm4436, %v99, %v4458
    %v4460 = vsel %vm4438, %v105, %v4459
    %v4461 = vsel %vm4426, %v70, %v64
    %v4462 = vsel %vm4428, %v76, %v4461
    %v4463 = vsel %vm4430, %v82, %v4462
    %v4464 = vsel %vm4432, %v88, %v4463
    %v4465 = vsel %vm4434, %v94, %v4464
    %v4466 = vsel %vm4436, %v100, %v4465
    %v4467 = vsel %vm4438, %v106, %v4466
    %v4468 = vsel %vm4426, %v71, %v65
    %v4469 = vsel %vm4428, %v77, %v4468
    %v4470 = vsel %vm4430, %v83, %v4469
    %v4471 = vsel %vm4432, %v89, %v4470
    %v4472 = vsel %vm4434, %v95, %v4471
    %v4473 = vsel %vm4436, %v101, %v4472
    %v4474 = vsel %vm4438, %v107, %v4473
    %v4481 = vadd.f32 %v4372, %v4439
    %v4482 = vadd.f32 %v4373, %v4446
    %v4483 = vadd.f32 %v4374, %v4453
    %v4484 = vadd.f32 %v4375, %v4460
    %v4485 = vadd.f32 %v4376, %v4467
    %v4486 = vadd.f32 %v4377, %v4474
    %4487 = vst [vmem:[#allocation2] sm:$0xff] %v4481
    %4488 = vst [vmem:[#allocation2 + $0x8] sm:$0xff] %v4482
    %4489 = vst [vmem:[#allocation2 + $0x10] sm:$0xff] %v4483
    %4490 = vst [vmem:[#allocation2 + $0x18] sm:$0xff] %v4484
    %4491 = vst [vmem:[#allocation2 + $0x20] sm:$0xff] %v4485
    %4492 = vst [vmem:[#allocation2 + $0x28] sm:$0xff] %v4486
    // Predicated region
    $region37: #{tpu_custom_call.1} parent=1 // pred_check
      %p4493 = pneg %p44
    $region38: #{tpu_custom_call.1} parent=1 // pred_check_branch
      %4495 = sbr.rel (%p4493) target = $region40
    $region39: #{tpu_custom_call.1} parent=1 // pred_region
      %v4496 = vld [vmem:[#allocation2] sm:$0xff]
      %v4497 = vld [vmem:[#allocation2 + $0x8] sm:$0xff]
      %v4498 = vld [vmem:[#allocation2 + $0x10] sm:$0xff]
      %v4499 = vld [vmem:[#allocation2 + $0x18] sm:$0xff]
      %v4500 = vld [vmem:[#allocation2 + $0x20] sm:$0xff]
      %v4501 = vld [vmem:[#allocation2 + $0x28] sm:$0xff]
      %v4502 = vmul.f32 %v4496, %v4496
      %v4503 = vmul.f32 %v4497, %v4497
      %v4504 = vmul.f32 %v4498, %v4498
      %v4505 = vmul.f32 %v4499, %v4499
      %v4506 = vmul.f32 %v4500, %v4500
      %v4507 = vmul.f32 %v4501, %v4501
      %v4508 = vadd.f32 %v4502, %v4503
      %v4509 = vadd.f32 %v4508, %v4504
      %v4510 = vadd.f32 %v4509, %v4505
      %v4511 = vadd.f32 %v4510, %v4506
      %v4512 = vadd.f32 %v4511, %v4507
      %4513 = vadd.xlane.f32.xlu0 %v4512
      %v4514 = vpop.xlane.xlu0 %4513
      %v4515 = vmax.f32 %v4514, 1e-24
      %v4516 = vrsqrt.pop %v4515
      %v4517 = vmul.f32 %v4496, %v4516
      %v4518 = vmul.f32 %v4497, %v4516
      %v4519 = vmul.f32 %v4498, %v4516
      %v4520 = vmul.f32 %v4499, %v4516
      %v4521 = vmul.f32 %v4500, %v4516
      %v4522 = vmul.f32 %v4501, %v4516
      %v4523 = vld [vmem:[%s2] sm:$0xff]
      %v4524 = vld [vmem:[%s2 + $0x8] sm:$0xff]
      %v4525 = vld [vmem:[%s2 + $0x10] sm:$0xff]
      %v4526 = vld [vmem:[%s2 + $0x18] sm:$0xff]
      %v4527 = vld [vmem:[%s2 + $0x20] sm:$0xff]
      %v4528 = vld [vmem:[%s2 + $0x28] sm:$0xff]
      %v4529 = vld [vmem:[%s2 + $0x30] sm:$0xff]
      %v4530 = vld [vmem:[%s2 + $0x38] sm:$0xff]
      %v4531 = vld [vmem:[%s2 + $0x40] sm:$0xff]
      %v4532 = vld [vmem:[%s2 + $0x48] sm:$0xff]
      %v4533 = vld [vmem:[%s2 + $0x50] sm:$0xff]
      %v4534 = vld [vmem:[%s2 + $0x58] sm:$0xff]
      %v4535 = vld [vmem:[%s2 + $0x60] sm:$0xff]
      %v4536 = vld [vmem:[%s2 + $0x68] sm:$0xff]
      %v4537 = vld [vmem:[%s2 + $0x70] sm:$0xff]
      %v4538 = vld [vmem:[%s2 + $0x78] sm:$0xff]
      %v4539 = vld [vmem:[%s2 + $0x80] sm:$0xff]
      %v4540 = vld [vmem:[%s2 + $0x88] sm:$0xff]
      %v4541 = vld [vmem:[%s2 + $0x90] sm:$0xff]
      %v4542 = vld [vmem:[%s2 + $0x98] sm:$0xff]
      %v4543 = vld [vmem:[%s2 + $0xa0] sm:$0xff]
      %v4544 = vld [vmem:[%s2 + $0xa8] sm:$0xff]
      %v4545 = vld [vmem:[%s2 + $0xb0] sm:$0xff]
      %v4546 = vld [vmem:[%s2 + $0xb8] sm:$0xff]
      %v4547 = vld [vmem:[%s2 + $0xc0] sm:$0xff]
      %v4548 = vld [vmem:[%s2 + $0xc8] sm:$0xff]
      %v4549 = vld [vmem:[%s2 + $0xd0] sm:$0xff]
      %v4550 = vld [vmem:[%s2 + $0xd8] sm:$0xff]
      %v4551 = vld [vmem:[%s2 + $0xe0] sm:$0xff]
      %v4552 = vld [vmem:[%s2 + $0xe8] sm:$0xff]
      %v4553 = vld [vmem:[%s2 + $0xf0] sm:$0xff]
      %v4554 = vld [vmem:[%s2 + $0xf8] sm:$0xff]
      %v4555 = vld [vmem:[%s2 + $0x100] sm:$0xff]
      %v4556 = vld [vmem:[%s2 + $0x108] sm:$0xff]
      %v4557 = vld [vmem:[%s2 + $0x110] sm:$0xff]
      %v4558 = vld [vmem:[%s2 + $0x118] sm:$0xff]
      %v4559 = vld [vmem:[%s2 + $0x120] sm:$0xff]
      %v4560 = vld [vmem:[%s2 + $0x128] sm:$0xff]
      %v4561 = vld [vmem:[%s2 + $0x130] sm:$0xff]
      %v4562 = vld [vmem:[%s2 + $0x138] sm:$0xff]
      %v4563 = vld [vmem:[%s2 + $0x140] sm:$0xff]
      %v4564 = vld [vmem:[%s2 + $0x148] sm:$0xff]
      %v4565 = vld [vmem:[%s2 + $0x150] sm:$0xff]
      %v4566 = vld [vmem:[%s2 + $0x158] sm:$0xff]
      %v4567 = vld [vmem:[%s2 + $0x160] sm:$0xff]
      %v4568 = vld [vmem:[%s2 + $0x168] sm:$0xff]
      %v4569 = vld [vmem:[%s2 + $0x170] sm:$0xff]
      %v4570 = vld [vmem:[%s2 + $0x178] sm:$0xff]
      %v4571 = vld [vmem:[%s2 + $0x180] sm:$0xff]
      %v4572 = vld [vmem:[%s2 + $0x188] sm:$0xff]
      %v4573 = vld [vmem:[%s2 + $0x190] sm:$0xff]
      %v4574 = vld [vmem:[%s2 + $0x198] sm:$0xff]
      %v4575 = vld [vmem:[%s2 + $0x1a0] sm:$0xff]
      %v4576 = vld [vmem:[%s2 + $0x1a8] sm:$0xff]
      %v4577 = vld [vmem:[%s2 + $0x1b0] sm:$0xff]
      %v4578 = vld [vmem:[%s2 + $0x1b8] sm:$0xff]
      %v4579 = vld [vmem:[%s2 + $0x1c0] sm:$0xff]
      %v4580 = vld [vmem:[%s2 + $0x1c8] sm:$0xff]
      %v4581 = vld [vmem:[%s2 + $0x1d0] sm:$0xff]
      %v4582 = vld [vmem:[%s2 + $0x1d8] sm:$0xff]
      %v4583 = vld [vmem:[%s2 + $0x1e0] sm:$0xff]
      %v4584 = vld [vmem:[%s2 + $0x1e8] sm:$0xff]
      %v4585 = vld [vmem:[%s2 + $0x1f0] sm:$0xff]
      %v4586 = vld [vmem:[%s2 + $0x1f8] sm:$0xff]
      %v4587 = vld [vmem:[%s2 + $0x200] sm:$0xff]
      %v4588 = vld [vmem:[%s2 + $0x208] sm:$0xff]
      %v4589 = vld [vmem:[%s2 + $0x210] sm:$0xff]
      %v4590 = vld [vmem:[%s2 + $0x218] sm:$0xff]
      %v4591 = vld [vmem:[%s2 + $0x220] sm:$0xff]
      %v4592 = vld [vmem:[%s2 + $0x228] sm:$0xff]
      %v4593 = vld [vmem:[%s2 + $0x230] sm:$0xff]
      %v4594 = vld [vmem:[%s2 + $0x238] sm:$0xff]
      %v4595 = vld [vmem:[%s2 + $0x240] sm:$0xff]
      %v4596 = vld [vmem:[%s2 + $0x248] sm:$0xff]
      %v4597 = vld [vmem:[%s2 + $0x250] sm:$0xff]
      %v4598 = vld [vmem:[%s2 + $0x258] sm:$0xff]
      %v4599 = vld [vmem:[%s2 + $0x260] sm:$0xff]
      %v4600 = vld [vmem:[%s2 + $0x268] sm:$0xff]
      %v4601 = vld [vmem:[%s2 + $0x270] sm:$0xff]
      %v4602 = vld [vmem:[%s2 + $0x278] sm:$0xff]
      %v4603 = vld [vmem:[%s2 + $0x280] sm:$0xff]
      %v4604 = vld [vmem:[%s2 + $0x288] sm:$0xff]
      %v4605 = vld [vmem:[%s2 + $0x290] sm:$0xff]
      %v4606 = vld [vmem:[%s2 + $0x298] sm:$0xff]
      %v4607 = vld [vmem:[%s2 + $0x2a0] sm:$0xff]
      %v4608 = vld [vmem:[%s2 + $0x2a8] sm:$0xff]
      %v4609 = vld [vmem:[%s2 + $0x2b0] sm:$0xff]
      %v4610 = vld [vmem:[%s2 + $0x2b8] sm:$0xff]
      %v4611 = vld [vmem:[%s2 + $0x2c0] sm:$0xff]
      %v4612 = vld [vmem:[%s2 + $0x2c8] sm:$0xff]
      %v4613 = vld [vmem:[%s2 + $0x2d0] sm:$0xff]
      %v4614 = vld [vmem:[%s2 + $0x2d8] sm:$0xff]
      %v4615 = vld [vmem:[%s2 + $0x2e0] sm:$0xff]
      %v4616 = vld [vmem:[%s2 + $0x2e8] sm:$0xff]
      %v4617 = vld [vmem:[%s2 + $0x2f0] sm:$0xff]
      %v4618 = vld [vmem:[%s2 + $0x2f8] sm:$0xff]
      %v4619 = vld [vmem:[#allocation6] sm:$0x1]
      %v4621 = vlaneseq
      %v4622 = vshrl.u32 %v4621, 7
      %v4623 = vsub.s32 0, %v4622
      %v4624 = vrot.slane %v4619, %v4623
      %4626 = vmatprep.subr.mxu0 0.0
      %4627 = vmatpush1.msra.mxu0 %v4538
      %4628 = vmatprep.subr.mxu0 0.0
      %4629 = vmatpush1.msra.mxu0 %v4537
      %4630 = vmatprep.subr.mxu0 0.0
      %4631 = vmatpush1.msra.mxu0 %v4536
      %4632 = vmatprep.subr.mxu0 0.0
      %4633 = vmatpush1.msra.mxu0 %v4535
      %4634 = vmatprep.subr.mxu0 0.0
      %4635 = vmatpush1.msra.mxu0 %v4534
      %4636 = vmatprep.subr.mxu0 0.0
      %4637 = vmatpush1.msra.mxu0 %v4533
      %4638 = vmatprep.subr.mxu0 0.0
      %4639 = vmatpush1.msra.mxu0 %v4532
      %4640 = vmatprep.subr.mxu0 0.0
      %4641 = vmatpush1.msra.mxu0 %v4531
      %4642 = vmatprep.subr.mxu0 0.0
      %4643 = vmatpush1.msra.mxu0 %v4530
      %4644 = vmatprep.subr.mxu0 0.0
      %4645 = vmatpush1.msra.mxu0 %v4529
      %4646 = vmatprep.subr.mxu0 0.0
      %4647 = vmatpush1.msra.mxu0 %v4528
      %4648 = vmatprep.subr.mxu0 0.0
      %4649 = vmatpush1.msra.mxu0 %v4527
      %4650 = vmatprep.subr.mxu0 0.0
      %4651 = vmatpush1.msra.mxu0 %v4526
      %4652 = vmatprep.subr.mxu0 0.0
      %4653 = vmatpush1.msra.mxu0 %v4525
      %4654 = vmatprep.subr.mxu0 0.0
      %4655 = vmatpush1.msra.mxu0 %v4524
      %4656 = vmatprep.subr.mxu0 0.0
      %4657 = vmatpush1.msra.mxu0 %v4523
      %4658 = vmatprep.subr.mxu0 0.0
      %4659 = vmatpush2.msra.mxu0 %v4554
      %4660 = vmatprep.subr.mxu0 0.0
      %4661 = vmatpush2.msra.mxu0 %v4553
      %4662 = vmatprep.subr.mxu0 0.0
      %4663 = vmatpush2.msra.mxu0 %v4552
      %4664 = vmatprep.subr.mxu0 0.0
      %4665 = vmatpush2.msra.mxu0 %v4551
      %4666 = vmatprep.subr.mxu0 0.0
      %4667 = vmatpush2.msra.mxu0 %v4550
      %4668 = vmatprep.subr.mxu0 0.0
      %4669 = vmatpush2.msra.mxu0 %v4549
      %4670 = vmatprep.subr.mxu0 0.0
      %4671 = vmatpush2.msra.mxu0 %v4548
      %4672 = vmatprep.subr.mxu0 0.0
      %4673 = vmatpush2.msra.mxu0 %v4547
      %4674 = vmatprep.subr.mxu0 0.0
      %4675 = vmatpush2.msra.mxu0 %v4546
      %4676 = vmatprep.subr.mxu0 0.0
      %4677 = vmatpush2.msra.mxu0 %v4545
      %4678 = vmatprep.subr.mxu0 0.0
      %4679 = vmatpush2.msra.mxu0 %v4544
      %4680 = vmatprep.subr.mxu0 0.0
      %4681 = vmatpush2.msra.mxu0 %v4543
      %4682 = vmatprep.subr.mxu0 0.0
      %4683 = vmatpush2.msra.mxu0 %v4542
      %4684 = vmatprep.subr.mxu0 0.0
      %4685 = vmatpush2.msra.mxu0 %v4541
      %4686 = vmatprep.subr.mxu0 0.0
      %4687 = vmatpush2.msra.mxu0 %v4540
      %4688 = vmatprep.subr.mxu0 0.0
      %4689 = vmatpush2.msra.mxu0 %v4539
      %4690 = vmatprep.mubr.f32.mxu0 %v4518
      %4691 = vmatmul.mubr.f32.gmra.mxu0 %v4517
      %v4692 = vpop.f32.mrf.mxu0
      %v4693 = vadd.f32 %v4624, %v4692
      %v4694 = vpop.f32.mrf.mxu0
      %4695 = vdwg.mxu0
      %4696 = vmatprep.subr.mxu0 0.0
      %4697 = vmatpush1.msra.mxu0 %v4570
      %4698 = vmatprep.subr.mxu0 0.0
      %4699 = vmatpush1.msra.mxu0 %v4569
      %4700 = vmatprep.subr.mxu0 0.0
      %4701 = vmatpush1.msra.mxu0 %v4568
      %4702 = vmatprep.subr.mxu0 0.0
      %4703 = vmatpush1.msra.mxu0 %v4567
      %4704 = vmatprep.subr.mxu0 0.0
      %4705 = vmatpush1.msra.mxu0 %v4566
      %4706 = vmatprep.subr.mxu0 0.0
      %4707 = vmatpush1.msra.mxu0 %v4565
      %4708 = vmatprep.subr.mxu0 0.0
      %4709 = vmatpush1.msra.mxu0 %v4564
      %4710 = vmatprep.subr.mxu0 0.0
      %4711 = vmatpush1.msra.mxu0 %v4563
      %4712 = vmatprep.subr.mxu0 0.0
      %4713 = vmatpush1.msra.mxu0 %v4562
      %4714 = vmatprep.subr.mxu0 0.0
      %4715 = vmatpush1.msra.mxu0 %v4561
      %4716 = vmatprep.subr.mxu0 0.0
      %4717 = vmatpush1.msra.mxu0 %v4560
      %4718 = vmatprep.subr.mxu0 0.0
      %4719 = vmatpush1.msra.mxu0 %v4559
      %4720 = vmatprep.subr.mxu0 0.0
      %4721 = vmatpush1.msra.mxu0 %v4558
      %4722 = vmatprep.subr.mxu0 0.0
      %4723 = vmatpush1.msra.mxu0 %v4557
      %4724 = vmatprep.subr.mxu0 0.0
      %4725 = vmatpush1.msra.mxu0 %v4556
      %4726 = vmatprep.subr.mxu0 0.0
      %4727 = vmatpush1.msra.mxu0 %v4555
      %4728 = vmatprep.subr.mxu0 0.0
      %4729 = vmatpush2.msra.mxu0 %v4586
      %4730 = vmatprep.subr.mxu0 0.0
      %4731 = vmatpush2.msra.mxu0 %v4585
      %4732 = vmatprep.subr.mxu0 0.0
      %4733 = vmatpush2.msra.mxu0 %v4584
      %4734 = vmatprep.subr.mxu0 0.0
      %4735 = vmatpush2.msra.mxu0 %v4583
      %4736 = vmatprep.subr.mxu0 0.0
      %4737 = vmatpush2.msra.mxu0 %v4582
      %4738 = vmatprep.subr.mxu0 0.0
      %4739 = vmatpush2.msra.mxu0 %v4581
      %4740 = vmatprep.subr.mxu0 0.0
      %4741 = vmatpush2.msra.mxu0 %v4580
      %4742 = vmatprep.subr.mxu0 0.0
      %4743 = vmatpush2.msra.mxu0 %v4579
      %4744 = vmatprep.subr.mxu0 0.0
      %4745 = vmatpush2.msra.mxu0 %v4578
      %4746 = vmatprep.subr.mxu0 0.0
      %4747 = vmatpush2.msra.mxu0 %v4577
      %4748 = vmatprep.subr.mxu0 0.0
      %4749 = vmatpush2.msra.mxu0 %v4576
      %4750 = vmatprep.subr.mxu0 0.0
      %4751 = vmatpush2.msra.mxu0 %v4575
      %4752 = vmatprep.subr.mxu0 0.0
      %4753 = vmatpush2.msra.mxu0 %v4574
      %4754 = vmatprep.subr.mxu0 0.0
      %4755 = vmatpush2.msra.mxu0 %v4573
      %4756 = vmatprep.subr.mxu0 0.0
      %4757 = vmatpush2.msra.mxu0 %v4572
      %4758 = vmatprep.subr.mxu0 0.0
      %4759 = vmatpush2.msra.mxu0 %v4571
      %4760 = vmatprep.mubr.f32.mxu0 %v4520
      %4761 = vmatmul.mubr.f32.gmra.mxu0 %v4519
      %v4762 = vpop.f32.mrf.mxu0
      %v4763 = vadd.f32 %v4693, %v4762
      %v4764 = vpop.f32.mrf.mxu0
      %4765 = vdwg.mxu0
      %4766 = vmatprep.subr.mxu0 0.0
      %4767 = vmatpush1.msra.mxu0 %v4602
      %4768 = vmatprep.subr.mxu0 0.0
      %4769 = vmatpush1.msra.mxu0 %v4601
      %4770 = vmatprep.subr.mxu0 0.0
      %4771 = vmatpush1.msra.mxu0 %v4600
      %4772 = vmatprep.subr.mxu0 0.0
      %4773 = vmatpush1.msra.mxu0 %v4599
      %4774 = vmatprep.subr.mxu0 0.0
      %4775 = vmatpush1.msra.mxu0 %v4598
      %4776 = vmatprep.subr.mxu0 0.0
      %4777 = vmatpush1.msra.mxu0 %v4597
      %4778 = vmatprep.subr.mxu0 0.0
      %4779 = vmatpush1.msra.mxu0 %v4596
      %4780 = vmatprep.subr.mxu0 0.0
      %4781 = vmatpush1.msra.mxu0 %v4595
      %4782 = vmatprep.subr.mxu0 0.0
      %4783 = vmatpush1.msra.mxu0 %v4594
      %4784 = vmatprep.subr.mxu0 0.0
      %4785 = vmatpush1.msra.mxu0 %v4593
      %4786 = vmatprep.subr.mxu0 0.0
      %4787 = vmatpush1.msra.mxu0 %v4592
      %4788 = vmatprep.subr.mxu0 0.0
      %4789 = vmatpush1.msra.mxu0 %v4591
      %4790 = vmatprep.subr.mxu0 0.0
      %4791 = vmatpush1.msra.mxu0 %v4590
      %4792 = vmatprep.subr.mxu0 0.0
      %4793 = vmatpush1.msra.mxu0 %v4589
      %4794 = vmatprep.subr.mxu0 0.0
      %4795 = vmatpush1.msra.mxu0 %v4588
      %4796 = vmatprep.subr.mxu0 0.0
      %4797 = vmatpush1.msra.mxu0 %v4587
      %4798 = vmatprep.subr.mxu0 0.0
      %4799 = vmatpush2.msra.mxu0 %v4618
      %4800 = vmatprep.subr.mxu0 0.0
      %4801 = vmatpush2.msra.mxu0 %v4617
      %4802 = vmatprep.subr.mxu0 0.0
      %4803 = vmatpush2.msra.mxu0 %v4616
      %4804 = vmatprep.subr.mxu0 0.0
      %4805 = vmatpush2.msra.mxu0 %v4615
      %4806 = vmatprep.subr.mxu0 0.0
      %4807 = vmatpush2.msra.mxu0 %v4614
      %4808 = vmatprep.subr.mxu0 0.0
      %4809 = vmatpush2.msra.mxu0 %v4613
      %4810 = vmatprep.subr.mxu0 0.0
      %4811 = vmatpush2.msra.mxu0 %v4612
      %4812 = vmatprep.subr.mxu0 0.0
      %4813 = vmatpush2.msra.mxu0 %v4611
      %4814 = vmatprep.subr.mxu0 0.0
      %4815 = vmatpush2.msra.mxu0 %v4610
      %4816 = vmatprep.subr.mxu0 0.0
      %4817 = vmatpush2.msra.mxu0 %v4609
      %4818 = vmatprep.subr.mxu0 0.0
      %4819 = vmatpush2.msra.mxu0 %v4608
      %4820 = vmatprep.subr.mxu0 0.0
      %4821 = vmatpush2.msra.mxu0 %v4607
      %4822 = vmatprep.subr.mxu0 0.0
      %4823 = vmatpush2.msra.mxu0 %v4606
      %4824 = vmatprep.subr.mxu0 0.0
      %4825 = vmatpush2.msra.mxu0 %v4605
      %4826 = vmatprep.subr.mxu0 0.0
      %4827 = vmatpush2.msra.mxu0 %v4604
      %4828 = vmatprep.subr.mxu0 0.0
      %4829 = vmatpush2.msra.mxu0 %v4603
      %4830 = vmatprep.mubr.f32.mxu0 %v4522
      %4831 = vmatmul.mubr.f32.gmra.mxu0 %v4521
      %v4832 = vpop.f32.mrf.mxu0
      %v4833 = vadd.f32 %v4763, %v4832
      %v4834 = vpop.f32.mrf.mxu0
      %4835 = vdwg.mxu0
      %vm4836 = vcmask 48128
      %v4837 = vsel %vm4836, %v4833, -inf
      %4838 = vmax.xlane.f32.xlu0 %v4837
      %v4839 = vpop.xlane.xlu0 %4838
      %v4840 = vsub.f32 %v4833, %v4839
      %v4841 = vmul.f32 %v4840, 1.442695
      %v4842 = vpow.pop %v4841
      %v4843 = vsel %vm4836, %v4842, 0.0
      %4844 = vadd.xlane.f32.xlu0 %v4843
      %v4845 = vpop.xlane.xlu0 %4844
      %v4846 = vlog2.pop %v4845
      %v4847 = vmul.f32 %v4846, 0.6931472
      %v4848 = vsub.f32 %v4840, %v4847
      %4849 = vst.msk [vmem:[#allocation8] sm:$0xff] %vm4836, %v4848
    $region40: #{tpu_custom_call.1} parent=1 // pred_fallthru
      _
    // Predicated region
    $region41: #{tpu_custom_call.1} parent=1 // pred_check
      _
    $region42: #{tpu_custom_call.1} parent=1 // pred_check_branch
      %4851 = sbr.rel (0) target = $region44
    $region43: #{tpu_custom_call.1} parent=1 // pred_region
      %s4853 = ssub.s32 128, 128
      %4854 = vsyncadd [#allocation5], %s4853
      %s4856 = sshll.u32 [#allocation8], 4
      %s4857 = int_to_ptr.vmem [resolvable:$true] %s4856
      %4859 = dma.vmem_to_hbm [thread:$0]  %s4857, 128, %s4, [#allocation5]
    $region44: #{tpu_custom_call.1} parent=1 // pred_fallthru
      _
    // Predicated region
    $region45: #{tpu_custom_call.1} parent=1 // pred_check
      _
    $region46: #{tpu_custom_call.1} parent=1 // pred_check_branch
      %4861 = sbr.rel (0) target = $region48
    $region47: #{tpu_custom_call.1} parent=1 // pred_region
      %4862 = dma.done [#allocation5], 128
    $region48: #{tpu_custom_call.1} parent=1 // pred_fallthru
      _
    %4863 = vsyncpa [#allocation4], 1
    %4864 = vsyncpa [#allocation7], 1
    %4865 = vsyncpa [#allocation5], 1

</llo_original>
